<compile_context>
chip_gen: v5e
topology: v5e:2x2
jax: 0.10.0
libtpu: 0.0.40
codegen_flags: <defaults>
</compile_context>

<pallas_src>
import jax
import jax.numpy as jnp
from jax import lax
from jax.experimental import pallas as pl
from jax.experimental.pallas import tpu as pltpu


# ---- static layer dims ------------------------------------------------------
IMG = 16 * 16          # 256   flattened 16x16 input image
C1 = 16 * 8 * 8        # 1024  conv1 output, (h, w, c) flatten
C2 = 32 * 7 * 7        # 1568  conv2 output (true size, torch (c,h,w) flatten)
C2P = 7 * 8 * 32       # 1792  conv2 output as laid out by the kernel (wo padded to 8)
L1, L2, L3, L4 = 128, 64, 32, 4
LP = 128               # padded lane width for the MLP tail
NOUT = 128             # lane-dense output slab (cols 0..3 hold the Q-values)


# ----------------------------------------------------------------------------
# Fused kernel: conv1 (Toeplitz matmul) -> conv2 (7 tap matmuls) -> MLP
# ----------------------------------------------------------------------------
def dqn_fused_kernel(x1_ref, x2_ref, x3_ref,
                     w1f_ref, b1f_ref, k2f_ref, b2f_ref,    # branch 1
                     w1g_ref, b1g_ref, k2g_ref, b2g_ref,    # branch 2
                     wl1a_ref, wl1b_ref, wl1c_ref, bl1_ref,  # Linear(3140,128) split
                     wl2_ref, bl2_ref, wl3_ref, bl3_ref,     # Linear(128,64), (64,32) padded
                     wl4_ref, bl4_ref,                       # Linear(32,4) padded
                     o_ref):
    f32 = jnp.float32
    wdt = wl1a_ref.dtype   # bf16

    def conv_branch(x, w1, b1, k2, b2):
        # conv1: exact dense (Toeplitz) matmul on the flattened image, ReLU fused.
        h = jnp.dot(x, w1, preferred_element_type=f32)
        h = jnp.maximum(h + b1, 0.0).astype(k2.dtype)          # (bm, 1024), (h, w, c)
        # conv2: for each output row ho, matmul the two adjacent 128-wide
        # (w, c) input row groups by the stacked tap weights [K_dh0; K_dh1].
        ys = [jnp.dot(h[:, r * 128:(r + 2) * 128], k2,
                      preferred_element_type=f32) for r in range(7)]
        c2 = jnp.concatenate(ys, axis=1) + b2                  # (bm, 1792) lane-dense
        return jnp.maximum(c2, 0.0).astype(wdt)

    h1 = conv_branch(x1_ref[...], w1f_ref[...], b1f_ref[...], k2f_ref[...], b2f_ref[...])
    h2 = conv_branch(x2_ref[...], w1g_ref[...], b1g_ref[...], k2g_ref[...], b2g_ref[...])

    # Linear(3140, 128): torch.cat replaced by three dots summed in f32.
    acc = jnp.dot(h1, wl1a_ref[...], preferred_element_type=f32)
    acc = acc + jnp.dot(h2, wl1b_ref[...], preferred_element_type=f32)
    acc = acc + jnp.dot(x3_ref[...], wl1c_ref[...], preferred_element_type=f32)
    h = jnp.maximum(acc + bl1_ref[...], 0.0).astype(wdt)       # (bm, 128)

    # Padded MLP tail (all widths 128; padded lanes stay exactly zero).
    h = jnp.maximum(jnp.dot(h, wl2_ref[...], preferred_element_type=f32)
                    + bl2_ref[...], 0.0).astype(wdt)
    h = jnp.maximum(jnp.dot(h, wl3_ref[...], preferred_element_type=f32)
                    + bl3_ref[...], 0.0).astype(wdt)
    # Final layer, no ReLU; lane-dense (bm, 128) unmasked store.
    o_ref[...] = jnp.dot(h, wl4_ref[...], preferred_element_type=f32) + bl4_ref[...]


# ----------------------------------------------------------------------------
# Parameter preparation (one-time, host/XLA side)
# ----------------------------------------------------------------------------
def conv_to_dense(w, b, H, W, stride, pad):
    """Exact dense form of Conv2d acting on (h, w, c)-flattened tensors."""
    O, C, kh, kw = w.shape
    Ho = (H + 2 * pad - kh) // stride + 1
    Wo = (W + 2 * pad - kw) // stride + 1
    h_idx = stride * jnp.arange(Ho)[:, None] - pad + jnp.arange(kh)[None, :]
    w_idx = stride * jnp.arange(Wo)[:, None] - pad + jnp.arange(kw)[None, :]
    h_sel = (h_idx[:, :, None] == jnp.arange(H)[None, None, :]).astype(jnp.float32)
    w_sel = (w_idx[:, :, None] == jnp.arange(W)[None, None, :]).astype(jnp.float32)
    dense = jnp.einsum("pih,qjw,ocij->hwcpqo", h_sel, w_sel, w.astype(jnp.float32))
    W_mat = dense.reshape(H * W * C, Ho * Wo * O)
    b_row = jnp.tile(b.reshape(1, 1, O).astype(jnp.float32),
                     (Ho, Wo, 1)).reshape(1, Ho * Wo * O)
    return W_mat, b_row


def conv2_taps(w, b):
    """Conv2 (16->32, 2x2, stride 1) as a stacked (256,256) tap matrix.

    Row layout: rows 0..127 act on input row ho   (dh=0), (w,c)-flattened,
                rows 128..255 act on input row ho+1 (dh=1).
    Col layout: (wo, o) with wo in [0, 8) (wo=7 is garbage, zeroed in wl1).
    """
    q = jnp.arange(8)
    j = jnp.arange(2)
    wi = jnp.arange(8)
    w_sel = ((q[:, None, None] + j[None, :, None]) == wi[None, None, :]).astype(jnp.float32)

    def tap(dh):
        k = jnp.einsum("qjw,ocj->wcqo", w_sel, w[:, :, dh, :].astype(jnp.float32))
        return k.reshape(8 * 16, 8 * 32)                       # (128, 256)

    k_cat = jnp.concatenate([tap(0), tap(1)], axis=0)          # (256, 256)
    b_row = jnp.tile(b.astype(jnp.float32), 7 * 8).reshape(1, C2P)
    return k_cat, b_row


def split_linear1(l1_w, l1_b):
    """Split/permute Linear(3140,128) to match the kernel's conv2 layout."""
    ho = jnp.arange(7)
    wo = jnp.arange(7)
    o = jnp.arange(32)
    # kernel row index (ho, wo, o) with wo padded to 8; torch row index (c,h,w).
    k_idx = (ho[:, None, None] * 256 + wo[None, :, None] * 32 + o[None, None, :]).reshape(-1)
    t_idx = (o[None, None, :] * 49 + ho[:, None, None] * 7 + wo[None, :, None]).reshape(-1)

    def remap(block):
        return jnp.zeros((C2P, L1), jnp.float32).at[k_idx].set(block[t_idx])

    wl1a = remap(l1_w[:C2])
    wl1b = remap(l1_w[C2:2 * C2])
    wl1c = jnp.zeros((LP, L1), jnp.float32).at[:4].set(l1_w[2 * C2:2 * C2 + 4])
    return wl1a, wl1b, wl1c, l1_b.reshape(1, L1)


def pad_linear(w, b, kin, kout):
    wp = jnp.zeros((kin, kout), jnp.float32).at[:w.shape[0], :w.shape[1]].set(w)
    bp = jnp.zeros((1, kout), jnp.float32).at[:, :b.shape[-1]].set(b.reshape(1, -1))
    return wp, bp


def init_params(key):
    """Parameters: Conv2d weights (O,C,kh,kw); Linear weights stored (in,out)."""
    def nrm(k, shape, scale=0.2):
        return scale * jax.random.normal(k, shape, dtype=jnp.float32)

    ks = jax.random.split(key, 16)
    return {
        "f1c1_w": nrm(ks[0], (16, 1, 4, 4)),  "f1c1_b": nrm(ks[1], (16,)),
        "f1c2_w": nrm(ks[2], (32, 16, 2, 2)), "f1c2_b": nrm(ks[3], (32,)),
        "f2c1_w": nrm(ks[4], (16, 1, 4, 4)),  "f2c1_b": nrm(ks[5], (16,)),
        "f2c2_w": nrm(ks[6], (32, 16, 2, 2)), "f2c2_b": nrm(ks[7], (32,)),
        "l1_w": nrm(ks[8], (2 * C2 + 4, L1)), "l1_b": nrm(ks[9], (1, L1)),
        "l2_w": nrm(ks[10], (L1, L2)),        "l2_b": nrm(ks[11], (1, L2)),
        "l3_w": nrm(ks[12], (L2, L3)),        "l3_b": nrm(ks[13], (1, L3)),
        "l4_w": nrm(ks[14], (L3, L4)),        "l4_b": nrm(ks[15], (1, L4)),
    }


def prepare_params(p, wdtype=jnp.bfloat16):
    """Kernel weight tuple: Toeplitz conv1, tap conv2, permuted/split/padded
    linears.  Matmul weights -> bf16 (f32 accumulation), biases stay f32."""
    w1f, b1f = conv_to_dense(p["f1c1_w"], p["f1c1_b"], 16, 16, stride=2, pad=1)  # (256,1024)
    w1g, b1g = conv_to_dense(p["f2c1_w"], p["f2c1_b"], 16, 16, stride=2, pad=1)
    k2f, b2f = conv2_taps(p["f1c2_w"], p["f1c2_b"])                              # (256,256)
    k2g, b2g = conv2_taps(p["f2c2_w"], p["f2c2_b"])
    wl1a, wl1b, wl1c, bl1 = split_linear1(p["l1_w"], p["l1_b"])
    wl2, bl2 = pad_linear(p["l2_w"], p["l2_b"], LP, LP)
    wl3, bl3 = pad_linear(p["l3_w"], p["l3_b"], LP, LP)
    wl4, bl4 = pad_linear(p["l4_w"], p["l4_b"], LP, NOUT)

    c = lambda a: a.astype(wdtype)
    return (c(w1f), b1f, c(k2f), b2f,
            c(w1g), b1g, c(k2g), b2g,
            c(wl1a), c(wl1b), c(wl1c), bl1,
            c(wl2), bl2, c(wl3), bl3, c(wl4), bl4)


# ----------------------------------------------------------------------------
# Forward wrapper
# ----------------------------------------------------------------------------
def dqn_forward(prepared, x1, x2, x3, *, bm_max=256):
    # bm_max ~256 for v6e/v7x, ~128 is a good v5e choice.
    B = x1.shape[0]
    rup = lambda a, m: -(-a // m) * m
    bp8 = rup(B, 8)
    bm = min(bm_max, bp8)
    # Prefer >= 2 parallel grid steps when the batch allows it (v7x has 2 TCs).
    if bp8 >= 16 and bp8 // bm < 2:
        bm = rup((bp8 + 1) // 2, 8)
    Bp = rup(B, bm)

    dt = jnp.bfloat16
    x1f = x1.reshape(B, IMG).astype(dt)
    x2f = x2.reshape(B, IMG).astype(dt)
    x3f = x3.reshape(B, -1).astype(dt)
    x1f = jnp.pad(x1f, ((0, Bp - B), (0, 0)))
    x2f = jnp.pad(x2f, ((0, Bp - B), (0, 0)))
    x3f = jnp.pad(x3f, ((0, Bp - B), (0, LP - x3f.shape[1])))   # lane-dense 128 wide

    grid = (Bp // bm,)
    row = lambda n: pl.BlockSpec((bm, n), lambda i: (i, 0))

    def wspec(a):               # VMEM-resident weight: full block, constant index
        zeros = (0,) * a.ndim
        return pl.BlockSpec(a.shape, lambda i: zeros)

    args = (x1f, x2f, x3f) + tuple(prepared)
    in_specs = [row(IMG), row(IMG), row(LP)] + [wspec(a) for a in prepared]

    flops_per_row = (2 * (2 * IMG * C1                 # conv1, both branches
                          + 2 * 7 * 256 * 256          # conv2 tap matmuls
                          + 2 * C2P * L1)              # split first Linear
                     + 2 * LP * L1                     # x3 slice of first Linear
                     + 3 * 2 * LP * LP)                # padded MLP tail
    bytes_accessed = (sum(int(a.size) * a.dtype.itemsize for a in args)
                      + Bp * NOUT * 4)

    out = pl.pallas_call(
        dqn_fused_kernel,
        out_shape=jax.ShapeDtypeStruct((Bp, NOUT), jnp.float32),
        grid=grid,
        in_specs=in_specs,
        out_specs=pl.BlockSpec((bm, NOUT), lambda i: (i, 0)),
        compiler_params=pltpu.CompilerParams(
            dimension_semantics=("parallel",),
            vmem_limit_bytes=32 * 1024 * 1024),
        cost_estimate=pl.CostEstimate(flops=Bp * flops_per_row,
                                      transcendentals=0,
                                      bytes_accessed=bytes_accessed),
    )(*args)
    return out[:B, :L4]


# ----------------------------------------------------------------------------
# Pure-JAX reference (torch semantics, same bf16-rounded weights/inputs)
# ----------------------------------------------------------------------------
def reference_forward(p, x1, x2, x3, wdtype=jnp.bfloat16):
    q = lambda a: a.astype(wdtype).astype(jnp.float32)

    def conv(x, w, b, stride, pad):
        y = lax.conv_general_dilated(x, q(w), window_strides=(stride, stride),
                                     padding=[(pad, pad), (pad, pad)],
                                     dimension_numbers=("NCHW", "OIHW", "NCHW"))
        return jax.nn.relu(y + b.reshape(1, -1, 1, 1))

    def lin(x, w, b, relu=True):
        y = x @ q(w) + b.reshape(1, -1)
        return jax.nn.relu(y) if relu else y

    B = x1.shape[0]
    a = q(x1).reshape(B, 1, 16, 16)
    c = q(x2).reshape(B, 1, 16, 16)
    a = conv(conv(a, p["f1c1_w"], p["f1c1_b"], 2, 1), p["f1c2_w"], p["f1c2_b"], 1, 0)
    c = conv(conv(c, p["f2c1_w"], p["f2c1_b"], 2, 1), p["f2c2_w"], p["f2c2_b"], 1, 0)
    x = jnp.concatenate([a.reshape(B, -1), c.reshape(B, -1),
                         q(x3).reshape(B, -1)], axis=1)
    x = lin(x, p["l1_w"], p["l1_b"])
    x = lin(x, p["l2_w"], p["l2_b"])
    x = lin(x, p["l3_w"], p["l3_b"])
    return lin(x, p["l4_w"], p["l4_b"], relu=False)


# ----------------------------------------------------------------------------
# Demo
# ----------------------------------------------------------------------------
if __name__ == "__main__":
    key = jax.random.PRNGKey(0)
    kp, k1, k2, k3 = jax.random.split(key, 4)
    params = init_params(kp)
    prepared = prepare_params(params)

    B = 2
    x1 = jax.random.normal(k1, (B, 16, 16), dtype=jnp.float32)
    x2 = jax.random.normal(k2, (B, 16, 16), dtype=jnp.float32)
    x3 = jax.random.normal(k3, (B, 4), dtype=jnp.float32)

    fwd = jax.jit(dqn_forward)
    out = jax.block_until_ready(fwd(prepared, x1, x2, x3))
    assert out.shape == (B, 4)

    ref = reference_forward(params, x1, x2, x3)
    max_err = float(jnp.max(jnp.abs(out - ref)))
    assert jnp.allclose(out, ref, rtol=3e-2, atol=3e-2), \
        f"kernel/reference mismatch, max|err|={max_err}"

    print("KERNEL_OK")
</pallas_src>

<mosaic_0001>
module attributes {stable_mosaic.version = 11 : i64} {
  func.func @dqn_fused_kernel(%arg0: i32, %arg1: memref<8x256xbf16, #tpu.memory_space<vmem>>, %arg2: memref<8x256xbf16, #tpu.memory_space<vmem>>, %arg3: memref<8x128xbf16, #tpu.memory_space<vmem>>, %arg4: memref<256x1024xbf16, #tpu.memory_space<vmem>>, %arg5: memref<1x1024xf32, #tpu.memory_space<vmem>>, %arg6: memref<256x256xbf16, #tpu.memory_space<vmem>>, %arg7: memref<1x1792xf32, #tpu.memory_space<vmem>>, %arg8: memref<256x1024xbf16, #tpu.memory_space<vmem>>, %arg9: memref<1x1024xf32, #tpu.memory_space<vmem>>, %arg10: memref<256x256xbf16, #tpu.memory_space<vmem>>, %arg11: memref<1x1792xf32, #tpu.memory_space<vmem>>, %arg12: memref<1792x128xbf16, #tpu.memory_space<vmem>>, %arg13: memref<1792x128xbf16, #tpu.memory_space<vmem>>, %arg14: memref<128x128xbf16, #tpu.memory_space<vmem>>, %arg15: memref<1x128xf32, #tpu.memory_space<vmem>>, %arg16: memref<128x128xbf16, #tpu.memory_space<vmem>>, %arg17: memref<1x128xf32, #tpu.memory_space<vmem>>, %arg18: memref<128x128xbf16, #tpu.memory_space<vmem>>, %arg19: memref<1x128xf32, #tpu.memory_space<vmem>>, %arg20: memref<128x128xbf16, #tpu.memory_space<vmem>>, %arg21: memref<1x128xf32, #tpu.memory_space<vmem>>, %arg22: memref<8x128xf32, #tpu.memory_space<vmem>>) attributes {dimension_semantics = [#tpu.dimension_semantics<parallel>], iteration_bounds = array<i64: 1>, scalar_prefetch = 0 : i64, scratch_operands = 0 : i64, tpu.core_type = #tpu.core_type<tc>, window_params = [{transform_indices = @transform_0, window_bounds = array<i64: 8, 256>}, {transform_indices = @transform_1, window_bounds = array<i64: 8, 256>}, {transform_indices = @transform_2, window_bounds = array<i64: 8, 128>}, {pipeline_mode = #tpu.pipeline_mode<synchronous>, transform_indices = @transform_3, window_bounds = array<i64: 256, 1024>}, {pipeline_mode = #tpu.pipeline_mode<synchronous>, transform_indices = @transform_4, window_bounds = array<i64: 1, 1024>}, {pipeline_mode = #tpu.pipeline_mode<synchronous>, transform_indices = @transform_5, window_bounds = array<i64: 256, 256>}, {pipeline_mode = #tpu.pipeline_mode<synchronous>, transform_indices = @transform_6, window_bounds = array<i64: 1, 1792>}, {pipeline_mode = #tpu.pipeline_mode<synchronous>, transform_indices = @transform_7, window_bounds = array<i64: 256, 1024>}, {pipeline_mode = #tpu.pipeline_mode<synchronous>, transform_indices = @transform_8, window_bounds = array<i64: 1, 1024>}, {pipeline_mode = #tpu.pipeline_mode<synchronous>, transform_indices = @transform_9, window_bounds = array<i64: 256, 256>}, {pipeline_mode = #tpu.pipeline_mode<synchronous>, transform_indices = @transform_10, window_bounds = array<i64: 1, 1792>}, {pipeline_mode = #tpu.pipeline_mode<synchronous>, transform_indices = @transform_11, window_bounds = array<i64: 1792, 128>}, {pipeline_mode = #tpu.pipeline_mode<synchronous>, transform_indices = @transform_12, window_bounds = array<i64: 1792, 128>}, {pipeline_mode = #tpu.pipeline_mode<synchronous>, transform_indices = @transform_13, window_bounds = array<i64: 128, 128>}, {pipeline_mode = #tpu.pipeline_mode<synchronous>, transform_indices = @transform_14, window_bounds = array<i64: 1, 128>}, {pipeline_mode = #tpu.pipeline_mode<synchronous>, transform_indices = @transform_15, window_bounds = array<i64: 128, 128>}, {pipeline_mode = #tpu.pipeline_mode<synchronous>, transform_indices = @transform_16, window_bounds = array<i64: 1, 128>}, {pipeline_mode = #tpu.pipeline_mode<synchronous>, transform_indices = @transform_17, window_bounds = array<i64: 128, 128>}, {pipeline_mode = #tpu.pipeline_mode<synchronous>, transform_indices = @transform_18, window_bounds = array<i64: 1, 128>}, {pipeline_mode = #tpu.pipeline_mode<synchronous>, transform_indices = @transform_19, window_bounds = array<i64: 128, 128>}, {pipeline_mode = #tpu.pipeline_mode<synchronous>, transform_indices = @transform_20, window_bounds = array<i64: 1, 128>}, {transform_indices = @transform_21, window_bounds = array<i64: 8, 128>}]} {
    %c0 = arith.constant 0 : index
    %c0_0 = arith.constant 0 : index
    %0 = vector.load %arg1[%c0, %c0_0] : memref<8x256xbf16, #tpu.memory_space<vmem>>, vector<8x256xbf16>
    %c0_1 = arith.constant 0 : index
    %c0_2 = arith.constant 0 : index
    %1 = vector.load %arg4[%c0_1, %c0_2] : memref<256x1024xbf16, #tpu.memory_space<vmem>>, vector<256x1024xbf16>
    %c0_3 = arith.constant 0 : index
    %c0_4 = arith.constant 0 : index
    %2 = vector.load %arg5[%c0_3, %c0_4] : memref<1x1024xf32, #tpu.memory_space<vmem>>, vector<1x1024xf32>
    %c0_5 = arith.constant 0 : index
    %c0_6 = arith.constant 0 : index
    %3 = vector.load %arg6[%c0_5, %c0_6] : memref<256x256xbf16, #tpu.memory_space<vmem>>, vector<256x256xbf16>
    %c0_7 = arith.constant 0 : index
    %c0_8 = arith.constant 0 : index
    %4 = vector.load %arg7[%c0_7, %c0_8] : memref<1x1792xf32, #tpu.memory_space<vmem>>, vector<1x1792xf32>
    %cst = arith.constant dense<0.000000e+00> : vector<8x1024xf32>
    %5 = tpu.matmul %0, %1, %cst {dimension_numbers = #tpu.dot_dimension_numbers<[1], [0], [0], [1], [0, 0, 1, 1], [], []>} : vector<8x256xbf16>, vector<256x1024xbf16>, vector<8x1024xf32> -> vector<8x1024xf32>
    %6 = vector.broadcast %2 : vector<1x1024xf32> to vector<8x1024xf32>
    %7 = arith.addf %5, %6 : vector<8x1024xf32>
    %cst_9 = arith.constant 0.000000e+00 : f32
    %8 = vector.broadcast %cst_9 : f32 to vector<8x1024xf32>
    %9 = arith.maximumf %7, %8 : vector<8x1024xf32>
    %10 = arith.truncf %9 : vector<8x1024xf32> to vector<8x1024xbf16>
    %11 = vector.extract_strided_slice %10 {offsets = [0, 0], sizes = [8, 256], strides = [1, 1]} : vector<8x1024xbf16> to vector<8x256xbf16>
    %cst_10 = arith.constant dense<0.000000e+00> : vector<8x256xf32>
    %12 = tpu.matmul %11, %3, %cst_10 {dimension_numbers = #tpu.dot_dimension_numbers<[1], [0], [0], [1], [0, 0, 1, 1], [], []>} : vector<8x256xbf16>, vector<256x256xbf16>, vector<8x256xf32> -> vector<8x256xf32>
    %13 = vector.extract_strided_slice %10 {offsets = [0, 128], sizes = [8, 256], strides = [1, 1]} : vector<8x1024xbf16> to vector<8x256xbf16>
    %cst_11 = arith.constant dense<0.000000e+00> : vector<8x256xf32>
    %14 = tpu.matmul %13, %3, %cst_11 {dimension_numbers = #tpu.dot_dimension_numbers<[1], [0], [0], [1], [0, 0, 1, 1], [], []>} : vector<8x256xbf16>, vector<256x256xbf16>, vector<8x256xf32> -> vector<8x256xf32>
    %15 = vector.extract_strided_slice %10 {offsets = [0, 256], sizes = [8, 256], strides = [1, 1]} : vector<8x1024xbf16> to vector<8x256xbf16>
    %cst_12 = arith.constant dense<0.000000e+00> : vector<8x256xf32>
    %16 = tpu.matmul %15, %3, %cst_12 {dimension_numbers = #tpu.dot_dimension_numbers<[1], [0], [0], [1], [0, 0, 1, 1], [], []>} : vector<8x256xbf16>, vector<256x256xbf16>, vector<8x256xf32> -> vector<8x256xf32>
    %17 = vector.extract_strided_slice %10 {offsets = [0, 384], sizes = [8, 256], strides = [1, 1]} : vector<8x1024xbf16> to vector<8x256xbf16>
    %cst_13 = arith.constant dense<0.000000e+00> : vector<8x256xf32>
    %18 = tpu.matmul %17, %3, %cst_13 {dimension_numbers = #tpu.dot_dimension_numbers<[1], [0], [0], [1], [0, 0, 1, 1], [], []>} : vector<8x256xbf16>, vector<256x256xbf16>, vector<8x256xf32> -> vector<8x256xf32>
    %19 = vector.extract_strided_slice %10 {offsets = [0, 512], sizes = [8, 256], strides = [1, 1]} : vector<8x1024xbf16> to vector<8x256xbf16>
    %cst_14 = arith.constant dense<0.000000e+00> : vector<8x256xf32>
    %20 = tpu.matmul %19, %3, %cst_14 {dimension_numbers = #tpu.dot_dimension_numbers<[1], [0], [0], [1], [0, 0, 1, 1], [], []>} : vector<8x256xbf16>, vector<256x256xbf16>, vector<8x256xf32> -> vector<8x256xf32>
    %21 = vector.extract_strided_slice %10 {offsets = [0, 640], sizes = [8, 256], strides = [1, 1]} : vector<8x1024xbf16> to vector<8x256xbf16>
    %cst_15 = arith.constant dense<0.000000e+00> : vector<8x256xf32>
    %22 = tpu.matmul %21, %3, %cst_15 {dimension_numbers = #tpu.dot_dimension_numbers<[1], [0], [0], [1], [0, 0, 1, 1], [], []>} : vector<8x256xbf16>, vector<256x256xbf16>, vector<8x256xf32> -> vector<8x256xf32>
    %23 = vector.extract_strided_slice %10 {offsets = [0, 768], sizes = [8, 256], strides = [1, 1]} : vector<8x1024xbf16> to vector<8x256xbf16>
    %cst_16 = arith.constant dense<0.000000e+00> : vector<8x256xf32>
    %24 = tpu.matmul %23, %3, %cst_16 {dimension_numbers = #tpu.dot_dimension_numbers<[1], [0], [0], [1], [0, 0, 1, 1], [], []>} : vector<8x256xbf16>, vector<256x256xbf16>, vector<8x256xf32> -> vector<8x256xf32>
    %25 = tpu.concatenate %12, %14, %16, %18, %20, %22, %24 in 1 : vector<8x256xf32>, vector<8x256xf32>, vector<8x256xf32>, vector<8x256xf32>, vector<8x256xf32>, vector<8x256xf32>, vector<8x256xf32> -> vector<8x1792xf32>
    %26 = vector.broadcast %4 : vector<1x1792xf32> to vector<8x1792xf32>
    %27 = arith.addf %25, %26 : vector<8x1792xf32>
    %cst_17 = arith.constant 0.000000e+00 : f32
    %28 = vector.broadcast %cst_17 : f32 to vector<8x1792xf32>
    %29 = arith.maximumf %27, %28 : vector<8x1792xf32>
    %30 = arith.truncf %29 : vector<8x1792xf32> to vector<8x1792xbf16>
    %c0_18 = arith.constant 0 : index
    %c0_19 = arith.constant 0 : index
    %31 = vector.load %arg2[%c0_18, %c0_19] : memref<8x256xbf16, #tpu.memory_space<vmem>>, vector<8x256xbf16>
    %c0_20 = arith.constant 0 : index
    %c0_21 = arith.constant 0 : index
    %32 = vector.load %arg8[%c0_20, %c0_21] : memref<256x1024xbf16, #tpu.memory_space<vmem>>, vector<256x1024xbf16>
    %c0_22 = arith.constant 0 : index
    %c0_23 = arith.constant 0 : index
    %33 = vector.load %arg9[%c0_22, %c0_23] : memref<1x1024xf32, #tpu.memory_space<vmem>>, vector<1x1024xf32>
    %c0_24 = arith.constant 0 : index
    %c0_25 = arith.constant 0 : index
    %34 = vector.load %arg10[%c0_24, %c0_25] : memref<256x256xbf16, #tpu.memory_space<vmem>>, vector<256x256xbf16>
    %c0_26 = arith.constant 0 : index
    %c0_27 = arith.constant 0 : index
    %35 = vector.load %arg11[%c0_26, %c0_27] : memref<1x1792xf32, #tpu.memory_space<vmem>>, vector<1x1792xf32>
    %cst_28 = arith.constant dense<0.000000e+00> : vector<8x1024xf32>
    %36 = tpu.matmul %31, %32, %cst_28 {dimension_numbers = #tpu.dot_dimension_numbers<[1], [0], [0], [1], [0, 0, 1, 1], [], []>} : vector<8x256xbf16>, vector<256x1024xbf16>, vector<8x1024xf32> -> vector<8x1024xf32>
    %37 = vector.broadcast %33 : vector<1x1024xf32> to vector<8x1024xf32>
    %38 = arith.addf %36, %37 : vector<8x1024xf32>
    %cst_29 = arith.constant 0.000000e+00 : f32
    %39 = vector.broadcast %cst_29 : f32 to vector<8x1024xf32>
    %40 = arith.maximumf %38, %39 : vector<8x1024xf32>
    %41 = arith.truncf %40 : vector<8x1024xf32> to vector<8x1024xbf16>
    %42 = vector.extract_strided_slice %41 {offsets = [0, 0], sizes = [8, 256], strides = [1, 1]} : vector<8x1024xbf16> to vector<8x256xbf16>
    %cst_30 = arith.constant dense<0.000000e+00> : vector<8x256xf32>
    %43 = tpu.matmul %42, %34, %cst_30 {dimension_numbers = #tpu.dot_dimension_numbers<[1], [0], [0], [1], [0, 0, 1, 1], [], []>} : vector<8x256xbf16>, vector<256x256xbf16>, vector<8x256xf32> -> vector<8x256xf32>
    %44 = vector.extract_strided_slice %41 {offsets = [0, 128], sizes = [8, 256], strides = [1, 1]} : vector<8x1024xbf16> to vector<8x256xbf16>
    %cst_31 = arith.constant dense<0.000000e+00> : vector<8x256xf32>
    %45 = tpu.matmul %44, %34, %cst_31 {dimension_numbers = #tpu.dot_dimension_numbers<[1], [0], [0], [1], [0, 0, 1, 1], [], []>} : vector<8x256xbf16>, vector<256x256xbf16>, vector<8x256xf32> -> vector<8x256xf32>
    %46 = vector.extract_strided_slice %41 {offsets = [0, 256], sizes = [8, 256], strides = [1, 1]} : vector<8x1024xbf16> to vector<8x256xbf16>
    %cst_32 = arith.constant dense<0.000000e+00> : vector<8x256xf32>
    %47 = tpu.matmul %46, %34, %cst_32 {dimension_numbers = #tpu.dot_dimension_numbers<[1], [0], [0], [1], [0, 0, 1, 1], [], []>} : vector<8x256xbf16>, vector<256x256xbf16>, vector<8x256xf32> -> vector<8x256xf32>
    %48 = vector.extract_strided_slice %41 {offsets = [0, 384], sizes = [8, 256], strides = [1, 1]} : vector<8x1024xbf16> to vector<8x256xbf16>
    %cst_33 = arith.constant dense<0.000000e+00> : vector<8x256xf32>
    %49 = tpu.matmul %48, %34, %cst_33 {dimension_numbers = #tpu.dot_dimension_numbers<[1], [0], [0], [1], [0, 0, 1, 1], [], []>} : vector<8x256xbf16>, vector<256x256xbf16>, vector<8x256xf32> -> vector<8x256xf32>
    %50 = vector.extract_strided_slice %41 {offsets = [0, 512], sizes = [8, 256], strides = [1, 1]} : vector<8x1024xbf16> to vector<8x256xbf16>
    %cst_34 = arith.constant dense<0.000000e+00> : vector<8x256xf32>
    %51 = tpu.matmul %50, %34, %cst_34 {dimension_numbers = #tpu.dot_dimension_numbers<[1], [0], [0], [1], [0, 0, 1, 1], [], []>} : vector<8x256xbf16>, vector<256x256xbf16>, vector<8x256xf32> -> vector<8x256xf32>
    %52 = vector.extract_strided_slice %41 {offsets = [0, 640], sizes = [8, 256], strides = [1, 1]} : vector<8x1024xbf16> to vector<8x256xbf16>
    %cst_35 = arith.constant dense<0.000000e+00> : vector<8x256xf32>
    %53 = tpu.matmul %52, %34, %cst_35 {dimension_numbers = #tpu.dot_dimension_numbers<[1], [0], [0], [1], [0, 0, 1, 1], [], []>} : vector<8x256xbf16>, vector<256x256xbf16>, vector<8x256xf32> -> vector<8x256xf32>
    %54 = vector.extract_strided_slice %41 {offsets = [0, 768], sizes = [8, 256], strides = [1, 1]} : vector<8x1024xbf16> to vector<8x256xbf16>
    %cst_36 = arith.constant dense<0.000000e+00> : vector<8x256xf32>
    %55 = tpu.matmul %54, %34, %cst_36 {dimension_numbers = #tpu.dot_dimension_numbers<[1], [0], [0], [1], [0, 0, 1, 1], [], []>} : vector<8x256xbf16>, vector<256x256xbf16>, vector<8x256xf32> -> vector<8x256xf32>
    %56 = tpu.concatenate %43, %45, %47, %49, %51, %53, %55 in 1 : vector<8x256xf32>, vector<8x256xf32>, vector<8x256xf32>, vector<8x256xf32>, vector<8x256xf32>, vector<8x256xf32>, vector<8x256xf32> -> vector<8x1792xf32>
    %57 = vector.broadcast %35 : vector<1x1792xf32> to vector<8x1792xf32>
    %58 = arith.addf %56, %57 : vector<8x1792xf32>
    %cst_37 = arith.constant 0.000000e+00 : f32
    %59 = vector.broadcast %cst_37 : f32 to vector<8x1792xf32>
    %60 = arith.maximumf %58, %59 : vector<8x1792xf32>
    %61 = arith.truncf %60 : vector<8x1792xf32> to vector<8x1792xbf16>
    %c0_38 = arith.constant 0 : index
    %c0_39 = arith.constant 0 : index
    %62 = vector.load %arg12[%c0_38, %c0_39] : memref<1792x128xbf16, #tpu.memory_space<vmem>>, vector<1792x128xbf16>
    %cst_40 = arith.constant dense<0.000000e+00> : vector<8x128xf32>
    %63 = tpu.matmul %30, %62, %cst_40 {dimension_numbers = #tpu.dot_dimension_numbers<[1], [0], [0], [1], [0, 0, 1, 1], [], []>} : vector<8x1792xbf16>, vector<1792x128xbf16>, vector<8x128xf32> -> vector<8x128xf32>
    %c0_41 = arith.constant 0 : index
    %c0_42 = arith.constant 0 : index
    %64 = vector.load %arg13[%c0_41, %c0_42] : memref<1792x128xbf16, #tpu.memory_space<vmem>>, vector<1792x128xbf16>
    %cst_43 = arith.constant dense<0.000000e+00> : vector<8x128xf32>
    %65 = tpu.matmul %61, %64, %cst_43 {dimension_numbers = #tpu.dot_dimension_numbers<[1], [0], [0], [1], [0, 0, 1, 1], [], []>} : vector<8x1792xbf16>, vector<1792x128xbf16>, vector<8x128xf32> -> vector<8x128xf32>
    %66 = arith.addf %63, %65 : vector<8x128xf32>
    %c0_44 = arith.constant 0 : index
    %c0_45 = arith.constant 0 : index
    %67 = vector.load %arg3[%c0_44, %c0_45] : memref<8x128xbf16, #tpu.memory_space<vmem>>, vector<8x128xbf16>
    %c0_46 = arith.constant 0 : index
    %c0_47 = arith.constant 0 : index
    %68 = vector.load %arg14[%c0_46, %c0_47] : memref<128x128xbf16, #tpu.memory_space<vmem>>, vector<128x128xbf16>
    %cst_48 = arith.constant dense<0.000000e+00> : vector<8x128xf32>
    %69 = tpu.matmul %67, %68, %cst_48 {dimension_numbers = #tpu.dot_dimension_numbers<[1], [0], [0], [1], [0, 0, 1, 1], [], []>} : vector<8x128xbf16>, vector<128x128xbf16>, vector<8x128xf32> -> vector<8x128xf32>
    %70 = arith.addf %66, %69 : vector<8x128xf32>
    %c0_49 = arith.constant 0 : index
    %c0_50 = arith.constant 0 : index
    %71 = vector.load %arg15[%c0_49, %c0_50] : memref<1x128xf32, #tpu.memory_space<vmem>>, vector<1x128xf32>
    %72 = vector.broadcast %71 : vector<1x128xf32> to vector<8x128xf32>
    %73 = arith.addf %70, %72 : vector<8x128xf32>
    %cst_51 = arith.constant 0.000000e+00 : f32
    %74 = vector.broadcast %cst_51 : f32 to vector<8x128xf32>
    %75 = arith.maximumf %73, %74 : vector<8x128xf32>
    %76 = arith.truncf %75 : vector<8x128xf32> to vector<8x128xbf16>
    %c0_52 = arith.constant 0 : index
    %c0_53 = arith.constant 0 : index
    %77 = vector.load %arg16[%c0_52, %c0_53] : memref<128x128xbf16, #tpu.memory_space<vmem>>, vector<128x128xbf16>
    %cst_54 = arith.constant dense<0.000000e+00> : vector<8x128xf32>
    %78 = tpu.matmul %76, %77, %cst_54 {dimension_numbers = #tpu.dot_dimension_numbers<[1], [0], [0], [1], [0, 0, 1, 1], [], []>} : vector<8x128xbf16>, vector<128x128xbf16>, vector<8x128xf32> -> vector<8x128xf32>
    %c0_55 = arith.constant 0 : index
    %c0_56 = arith.constant 0 : index
    %79 = vector.load %arg17[%c0_55, %c0_56] : memref<1x128xf32, #tpu.memory_space<vmem>>, vector<1x128xf32>
    %80 = vector.broadcast %79 : vector<1x128xf32> to vector<8x128xf32>
    %81 = arith.addf %78, %80 : vector<8x128xf32>
    %cst_57 = arith.constant 0.000000e+00 : f32
    %82 = vector.broadcast %cst_57 : f32 to vector<8x128xf32>
    %83 = arith.maximumf %81, %82 : vector<8x128xf32>
    %84 = arith.truncf %83 : vector<8x128xf32> to vector<8x128xbf16>
    %c0_58 = arith.constant 0 : index
    %c0_59 = arith.constant 0 : index
    %85 = vector.load %arg18[%c0_58, %c0_59] : memref<128x128xbf16, #tpu.memory_space<vmem>>, vector<128x128xbf16>
    %cst_60 = arith.constant dense<0.000000e+00> : vector<8x128xf32>
    %86 = tpu.matmul %84, %85, %cst_60 {dimension_numbers = #tpu.dot_dimension_numbers<[1], [0], [0], [1], [0, 0, 1, 1], [], []>} : vector<8x128xbf16>, vector<128x128xbf16>, vector<8x128xf32> -> vector<8x128xf32>
    %c0_61 = arith.constant 0 : index
    %c0_62 = arith.constant 0 : index
    %87 = vector.load %arg19[%c0_61, %c0_62] : memref<1x128xf32, #tpu.memory_space<vmem>>, vector<1x128xf32>
    %88 = vector.broadcast %87 : vector<1x128xf32> to vector<8x128xf32>
    %89 = arith.addf %86, %88 : vector<8x128xf32>
    %cst_63 = arith.constant 0.000000e+00 : f32
    %90 = vector.broadcast %cst_63 : f32 to vector<8x128xf32>
    %91 = arith.maximumf %89, %90 : vector<8x128xf32>
    %92 = arith.truncf %91 : vector<8x128xf32> to vector<8x128xbf16>
    %c0_64 = arith.constant 0 : index
    %c0_65 = arith.constant 0 : index
    %93 = vector.load %arg20[%c0_64, %c0_65] : memref<128x128xbf16, #tpu.memory_space<vmem>>, vector<128x128xbf16>
    %cst_66 = arith.constant dense<0.000000e+00> : vector<8x128xf32>
    %94 = tpu.matmul %92, %93, %cst_66 {dimension_numbers = #tpu.dot_dimension_numbers<[1], [0], [0], [1], [0, 0, 1, 1], [], []>} : vector<8x128xbf16>, vector<128x128xbf16>, vector<8x128xf32> -> vector<8x128xf32>
    %c0_67 = arith.constant 0 : index
    %c0_68 = arith.constant 0 : index
    %95 = vector.load %arg21[%c0_67, %c0_68] : memref<1x128xf32, #tpu.memory_space<vmem>>, vector<1x128xf32>
    %96 = vector.broadcast %95 : vector<1x128xf32> to vector<8x128xf32>
    %97 = arith.addf %94, %96 : vector<8x128xf32>
    %c0_69 = arith.constant 0 : index
    %c0_70 = arith.constant 0 : index
    %98 = vector.load %arg22[%c0_69, %c0_70] : memref<8x128xf32, #tpu.memory_space<vmem>>, vector<8x128xf32>
    tpu.vector_store %arg22[%c0_69, %c0_70], %97 {strides = array<i32>} : memref<8x128xf32, #tpu.memory_space<vmem>>, vector<8x128xf32>,
    return
  }
  func.func @transform_0(%arg0: i32) -> (i32, i32) {
    %c0_i32 = arith.constant 0 : i32
    %c0_i32_0 = arith.constant 0 : i32
    return %arg0, %c0_i32 : i32, i32
  }
  func.func @transform_1(%arg0: i32) -> (i32, i32) {
    %c0_i32 = arith.constant 0 : i32
    %c0_i32_0 = arith.constant 0 : i32
    return %arg0, %c0_i32 : i32, i32
  }
  func.func @transform_2(%arg0: i32) -> (i32, i32) {
    %c0_i32 = arith.constant 0 : i32
    %c0_i32_0 = arith.constant 0 : i32
    return %arg0, %c0_i32 : i32, i32
  }
  func.func @transform_3(%arg0: i32) -> (i32, i32) {
    %c0_i32 = arith.constant 0 : i32
    %c0_i32_0 = arith.constant 0 : i32
    %c0_i32_1 = arith.constant 0 : i32
    return %c0_i32, %c0_i32_0 : i32, i32
  }
  func.func @transform_4(%arg0: i32) -> (i32, i32) {
    %c0_i32 = arith.constant 0 : i32
    %c0_i32_0 = arith.constant 0 : i32
    %c0_i32_1 = arith.constant 0 : i32
    return %c0_i32, %c0_i32_0 : i32, i32
  }
  func.func @transform_5(%arg0: i32) -> (i32, i32) {
    %c0_i32 = arith.constant 0 : i32
    %c0_i32_0 = arith.constant 0 : i32
    %c0_i32_1 = arith.constant 0 : i32
    return %c0_i32, %c0_i32_0 : i32, i32
  }
  func.func @transform_6(%arg0: i32) -> (i32, i32) {
    %c0_i32 = arith.constant 0 : i32
    %c0_i32_0 = arith.constant 0 : i32
    %c0_i32_1 = arith.constant 0 : i32
    return %c0_i32, %c0_i32_0 : i32, i32
  }
  func.func @transform_7(%arg0: i32) -> (i32, i32) {
    %c0_i32 = arith.constant 0 : i32
    %c0_i32_0 = arith.constant 0 : i32
    %c0_i32_1 = arith.constant 0 : i32
    return %c0_i32, %c0_i32_0 : i32, i32
  }
  func.func @transform_8(%arg0: i32) -> (i32, i32) {
    %c0_i32 = arith.constant 0 : i32
    %c0_i32_0 = arith.constant 0 : i32
    %c0_i32_1 = arith.constant 0 : i32
    return %c0_i32, %c0_i32_0 : i32, i32
  }
  func.func @transform_9(%arg0: i32) -> (i32, i32) {
    %c0_i32 = arith.constant 0 : i32
    %c0_i32_0 = arith.constant 0 : i32
    %c0_i32_1 = arith.constant 0 : i32
    return %c0_i32, %c0_i32_0 : i32, i32
  }
  func.func @transform_10(%arg0: i32) -> (i32, i32) {
    %c0_i32 = arith.constant 0 : i32
    %c0_i32_0 = arith.constant 0 : i32
    %c0_i32_1 = arith.constant 0 : i32
    return %c0_i32, %c0_i32_0 : i32, i32
  }
  func.func @transform_11(%arg0: i32) -> (i32, i32) {
    %c0_i32 = arith.constant 0 : i32
    %c0_i32_0 = arith.constant 0 : i32
    %c0_i32_1 = arith.constant 0 : i32
    return %c0_i32, %c0_i32_0 : i32, i32
  }
  func.func @transform_12(%arg0: i32) -> (i32, i32) {
    %c0_i32 = arith.constant 0 : i32
    %c0_i32_0 = arith.constant 0 : i32
    %c0_i32_1 = arith.constant 0 : i32
    return %c0_i32, %c0_i32_0 : i32, i32
  }
  func.func @transform_13(%arg0: i32) -> (i32, i32) {
    %c0_i32 = arith.constant 0 : i32
    %c0_i32_0 = arith.constant 0 : i32
    %c0_i32_1 = arith.constant 0 : i32
    return %c0_i32, %c0_i32_0 : i32, i32
  }
  func.func @transform_14(%arg0: i32) -> (i32, i32) {
    %c0_i32 = arith.constant 0 : i32
    %c0_i32_0 = arith.constant 0 : i32
    %c0_i32_1 = arith.constant 0 : i32
    return %c0_i32, %c0_i32_0 : i32, i32
  }
  func.func @transform_15(%arg0: i32) -> (i32, i32) {
    %c0_i32 = arith.constant 0 : i32
    %c0_i32_0 = arith.constant 0 : i32
    %c0_i32_1 = arith.constant 0 : i32
    return %c0_i32, %c0_i32_0 : i32, i32
  }
  func.func @transform_16(%arg0: i32) -> (i32, i32) {
    %c0_i32 = arith.constant 0 : i32
    %c0_i32_0 = arith.constant 0 : i32
    %c0_i32_1 = arith.constant 0 : i32
    return %c0_i32, %c0_i32_0 : i32, i32
  }
  func.func @transform_17(%arg0: i32) -> (i32, i32) {
    %c0_i32 = arith.constant 0 : i32
    %c0_i32_0 = arith.constant 0 : i32
    %c0_i32_1 = arith.constant 0 : i32
    return %c0_i32, %c0_i32_0 : i32, i32
  }
  func.func @transform_18(%arg0: i32) -> (i32, i32) {
    %c0_i32 = arith.constant 0 : i32
    %c0_i32_0 = arith.constant 0 : i32
    %c0_i32_1 = arith.constant 0 : i32
    return %c0_i32, %c0_i32_0 : i32, i32
  }
  func.func @transform_19(%arg0: i32) -> (i32, i32) {
    %c0_i32 = arith.constant 0 : i32
    %c0_i32_0 = arith.constant 0 : i32
    %c0_i32_1 = arith.constant 0 : i32
    return %c0_i32, %c0_i32_0 : i32, i32
  }
  func.func @transform_20(%arg0: i32) -> (i32, i32) {
    %c0_i32 = arith.constant 0 : i32
    %c0_i32_0 = arith.constant 0 : i32
    %c0_i32_1 = arith.constant 0 : i32
    return %c0_i32, %c0_i32_0 : i32, i32
  }
  func.func @transform_21(%arg0: i32) -> (i32, i32) {
    %c0_i32 = arith.constant 0 : i32
    %c0_i32_0 = arith.constant 0 : i32
    return %arg0, %c0_i32 : i32, i32
  }
}

</mosaic_0001>

<llo_original>
// kernel: dqn_forward.1
$region0: #{dqn_forward.1}
  #allocation0 [shape = 'u32[]', space=smem, size = 0x4, offset = 0x4, fixed_abs, tag = 'smem constant byte address 0x4 - core index']
  #allocation1 [shape = 'u32[72,128]{1,0:T(1,128)}', space=vmem, size = 0x9000, scoped, tag = 'internal scratch']
  %s0 = inlined_call_operand.vmem [shape: bf16[8,256], index: 0, kind: input, shape index: {}]
  %s1 = inlined_call_operand.vmem [shape: bf16[8,256], index: 1, kind: input, shape index: {}]
  %s2 = inlined_call_operand.vmem [shape: bf16[8,128], index: 2, kind: input, shape index: {}]
  %s3 = inlined_call_operand.hbm [shape: bf16[256,1024], index: 3, kind: input, shape index: {}]
  %s4 = inlined_call_operand.vmem [shape: f32[1,1024], index: 4, kind: input, shape index: {}]
  %s5 = inlined_call_operand.hbm [shape: bf16[256,256], index: 5, kind: input, shape index: {}]
  %s6 = inlined_call_operand.hbm [shape: f32[1,1792], index: 6, kind: input, shape index: {}]
  %s7 = inlined_call_operand.hbm [shape: bf16[256,1024], index: 7, kind: input, shape index: {}]
  %s8 = inlined_call_operand.hbm [shape: f32[1,1024], index: 8, kind: input, shape index: {}]
  %s9 = inlined_call_operand.hbm [shape: bf16[256,256], index: 9, kind: input, shape index: {}]
  %s10 = inlined_call_operand.hbm [shape: f32[1,1792], index: 10, kind: input, shape index: {}]
  %s11 = inlined_call_operand.hbm [shape: bf16[1792,128], index: 11, kind: input, shape index: {}]
  %s12 = inlined_call_operand.hbm [shape: bf16[1792,128], index: 12, kind: input, shape index: {}]
  %s13 = inlined_call_operand.vmem [shape: bf16[128,128], index: 13, kind: input, shape index: {}]
  %s14 = inlined_call_operand.vmem [shape: f32[1,128], index: 14, kind: input, shape index: {}]
  %s15 = inlined_call_operand.vmem [shape: bf16[128,128], index: 15, kind: input, shape index: {}]
  %s16 = inlined_call_operand.vmem [shape: f32[1,128], index: 16, kind: input, shape index: {}]
  %s17 = inlined_call_operand.hbm [shape: bf16[128,128], index: 17, kind: input, shape index: {}]
  %s18 = inlined_call_operand.hbm [shape: f32[1,128], index: 18, kind: input, shape index: {}]
  %s19 = inlined_call_operand.hbm [shape: bf16[128,128], index: 19, kind: input, shape index: {}]
  %s20 = inlined_call_operand.hbm [shape: f32[1,128], index: 20, kind: input, shape index: {}]
  %s21 = inlined_call_operand.vmem [shape: f32[8,128], index: 21, kind: output, shape index: {}]
  %s22 = sld [smem:[#allocation0]]
  $region146: #{dqn_forward.1} parent=0
    _
  %s24 = ssub.s32 1, %s22
  %s25 = scalar_select 0, %s24, %s22
  $region1: #{dqn_forward.1} parent=0
    #allocation2 [shape = 'u8[524288]{0}', space=vmem, size = 0x80000, scoped, tag = 'input window, operand 3, single buffered']
    #allocation3 [shape = 's32[1]{0}', space=sflag, size = 0x4, scoped, tag = 'scoped memory for dqn_forward.1']
    #allocation4 [shape = 'u8[131072]{0}', space=vmem, size = 0x20000, scoped, tag = 'input window, operand 5, single buffered']
    #allocation5 [shape = 's32[1]{0}', space=sflag, size = 0x4, scoped, tag = 'scoped memory for dqn_forward.1']
    #allocation6 [shape = 'u8[7168]{0}', space=vmem, size = 0x1c00, scoped, tag = 'input window, operand 6, single buffered']
    #allocation7 [shape = 'u8[524288]{0}', space=vmem, size = 0x80000, scoped, tag = 'input window, operand 7, single buffered']
    #allocation8 [shape = 's32[1]{0}', space=sflag, size = 0x4, scoped, tag = 'scoped memory for dqn_forward.1']
    #allocation9 [shape = 'u8[4096]{0}', space=vmem, size = 0x1000, scoped, tag = 'input window, operand 8, single buffered']
    #allocation10 [shape = 'u8[131072]{0}', space=vmem, size = 0x20000, scoped, tag = 'input window, operand 9, single buffered']
    #allocation11 [shape = 's32[1]{0}', space=sflag, size = 0x4, scoped, tag = 'scoped memory for dqn_forward.1']
    #allocation12 [shape = 'u8[7168]{0}', space=vmem, size = 0x1c00, scoped, tag = 'input window, operand 10, single buffered']
    #allocation13 [shape = 'u8[458752]{0}', space=vmem, size = 0x70000, scoped, tag = 'input window, operand 11, single buffered']
    #allocation14 [shape = 's32[1]{0}', space=sflag, size = 0x4, scoped, tag = 'scoped memory for dqn_forward.1']
    #allocation15 [shape = 'u8[458752]{0}', space=vmem, size = 0x70000, scoped, tag = 'input window, operand 12, single buffered']
    #allocation16 [shape = 'u8[32768]{0}', space=vmem, size = 0x8000, scoped, tag = 'input window, operand 17, single buffered']
    #allocation17 [shape = 's32[1]{0}', space=sflag, size = 0x4, scoped, tag = 'scoped memory for dqn_forward.1']
    #allocation18 [shape = 'u8[512]{0}', space=vmem, size = 0x400, scoped, tag = 'input window, operand 18, single buffered']
    #allocation19 [shape = 'u8[32768]{0}', space=vmem, size = 0x8000, scoped, tag = 'input window, operand 19, single buffered']
    #allocation20 [shape = 's32[1]{0}', space=sflag, size = 0x4, scoped, tag = 'scoped memory for dqn_forward.1']
    #allocation21 [shape = 'u8[512]{0}', space=vmem, size = 0x400, scoped, tag = 'input window, operand 20, single buffered']
    %26 = vsyncpa [#allocation3], 0
    %27 = vsyncpa [#allocation5], 0
    %28 = vsyncpa [#allocation8], 0
    %29 = vsyncpa [#allocation11], 0
    %30 = vsyncpa [#allocation14], 0
    %31 = vsyncpa [#allocation17], 0
    %32 = vsyncpa [#allocation20], 0
    // Predicated region
    $region2: #{dqn_forward.1} parent=1 // pred_check
      _
    $region3: #{dqn_forward.1} parent=1 // pred_check_branch
      %34 = sbr.rel (0) target = $region5
    $region4: #{dqn_forward.1} parent=1 // pred_region
      _
    $region5: #{dqn_forward.1} parent=1 // pred_fallthru
      _
    // Predicated region
    $region6: #{dqn_forward.1} parent=1 // pred_check
      _
    $region7: #{dqn_forward.1} parent=1 // pred_check_branch
      %36 = sbr.rel (0) target = $region9
    $region8: #{dqn_forward.1} parent=1 // pred_region
      _
    $region9: #{dqn_forward.1} parent=1 // pred_fallthru
      _
    // Predicated region
    $region10: #{dqn_forward.1} parent=1 // pred_check
      _
    $region11: #{dqn_forward.1} parent=1 // pred_check_branch
      %38 = sbr.rel (0) target = $region13
    $region12: #{dqn_forward.1} parent=1 // pred_region
      _
    $region13: #{dqn_forward.1} parent=1 // pred_fallthru
      _
    // Predicated region
    $region14: #{dqn_forward.1} parent=1 // pred_check
      _
    $region15: #{dqn_forward.1} parent=1 // pred_check_branch
      %40 = sbr.rel (0) target = $region17
    $region16: #{dqn_forward.1} parent=1 // pred_region
      %42 = vsyncadd [#allocation3], 0
      %s43 = sshll.u32 %s3, 4
      %s44 = int_to_ptr.hbm [resolvable:$true] %s43
      %s45 = sshll.u32 [#allocation2], 4
      %s46 = int_to_ptr.vmem [resolvable:$true] %s45
      %51 = dma.hbm_to_vmem [thread:$0]  %s44, 16384, %s46, [#allocation3], 512, 512, 32
    $region17: #{dqn_forward.1} parent=1 // pred_fallthru
      _
    // Predicated region
    $region18: #{dqn_forward.1} parent=1 // pred_check
      _
    $region19: #{dqn_forward.1} parent=1 // pred_check_branch
      %53 = sbr.rel (0) target = $region21
    $region20: #{dqn_forward.1} parent=1 // pred_region
      _
    $region21: #{dqn_forward.1} parent=1 // pred_fallthru
      _
    // Predicated region
    $region22: #{dqn_forward.1} parent=1 // pred_check
      _
    $region23: #{dqn_forward.1} parent=1 // pred_check_branch
      %55 = sbr.rel (0) target = $region25
    $region24: #{dqn_forward.1} parent=1 // pred_region
      %57 = vsyncadd [#allocation5], 0
      %s58 = sshll.u32 %s5, 4
      %s59 = int_to_ptr.hbm [resolvable:$true] %s58
      %s60 = sshll.u32 [#allocation4], 4
      %s61 = int_to_ptr.vmem [resolvable:$true] %s60
      %66 = dma.hbm_to_vmem [thread:$0]  %s59, 4096, %s61, [#allocation5], 128, 128, 8
    $region25: #{dqn_forward.1} parent=1 // pred_fallthru
      _
    // Predicated region
    $region26: #{dqn_forward.1} parent=1 // pred_check
      _
    $region27: #{dqn_forward.1} parent=1 // pred_check_branch
      %68 = sbr.rel (0) target = $region29
    $region28: #{dqn_forward.1} parent=1 // pred_region
      %70 = vsyncadd [#allocation5], 0
      %s72 = sshll.u32 %s6, 4
      %s73 = int_to_ptr.hbm [resolvable:$true] %s72
      %s74 = sshll.u32 [#allocation6], 4
      %s75 = int_to_ptr.vmem [resolvable:$true] %s74
      %77 = dma.hbm_to_vmem [thread:$0]  %s73, 224, %s75, [#allocation5]
    $region29: #{dqn_forward.1} parent=1 // pred_fallthru
      _
    // Predicated region
    $region30: #{dqn_forward.1} parent=1 // pred_check
      _
    $region31: #{dqn_forward.1} parent=1 // pred_check_branch
      %79 = sbr.rel (0) target = $region33
    $region32: #{dqn_forward.1} parent=1 // pred_region
      %81 = vsyncadd [#allocation8], 0
      %s82 = sshll.u32 %s7, 4
      %s83 = int_to_ptr.hbm [resolvable:$true] %s82
      %s84 = sshll.u32 [#allocation7], 4
      %s85 = int_to_ptr.vmem [resolvable:$true] %s84
      %90 = dma.hbm_to_vmem [thread:$0]  %s83, 16384, %s85, [#allocation8], 512, 512, 32
    $region33: #{dqn_forward.1} parent=1 // pred_fallthru
      _
    // Predicated region
    $region34: #{dqn_forward.1} parent=1 // pred_check
      _
    $region35: #{dqn_forward.1} parent=1 // pred_check_branch
      %92 = sbr.rel (0) target = $region37
    $region36: #{dqn_forward.1} parent=1 // pred_region
      %94 = vsyncadd [#allocation8], 0
      %s96 = sshll.u32 %s8, 4
      %s97 = int_to_ptr.hbm [resolvable:$true] %s96
      %s98 = sshll.u32 [#allocation9], 4
      %s99 = int_to_ptr.vmem [resolvable:$true] %s98
      %101 = dma.hbm_to_vmem [thread:$0]  %s97, 128, %s99, [#allocation8]
    $region37: #{dqn_forward.1} parent=1 // pred_fallthru
      _
    // Predicated region
    $region38: #{dqn_forward.1} parent=1 // pred_check
      _
    $region39: #{dqn_forward.1} parent=1 // pred_check_branch
      %103 = sbr.rel (0) target = $region41
    $region40: #{dqn_forward.1} parent=1 // pred_region
      %105 = vsyncadd [#allocation11], 0
      %s106 = sshll.u32 %s9, 4
      %s107 = int_to_ptr.hbm [resolvable:$true] %s106
      %s108 = sshll.u32 [#allocation10], 4
      %s109 = int_to_ptr.vmem [resolvable:$true] %s108
      %114 = dma.hbm_to_vmem [thread:$0]  %s107, 4096, %s109, [#allocation11], 128, 128, 8
    $region41: #{dqn_forward.1} parent=1 // pred_fallthru
      _
    // Predicated region
    $region42: #{dqn_forward.1} parent=1 // pred_check
      _
    $region43: #{dqn_forward.1} parent=1 // pred_check_branch
      %116 = sbr.rel (0) target = $region45
    $region44: #{dqn_forward.1} parent=1 // pred_region
      %118 = vsyncadd [#allocation11], 0
      %s120 = sshll.u32 %s10, 4
      %s121 = int_to_ptr.hbm [resolvable:$true] %s120
      %s122 = sshll.u32 [#allocation12], 4
      %s123 = int_to_ptr.vmem [resolvable:$true] %s122
      %125 = dma.hbm_to_vmem [thread:$0]  %s121, 224, %s123, [#allocation11]
    $region45: #{dqn_forward.1} parent=1 // pred_fallthru
      _
    // Predicated region
    $region46: #{dqn_forward.1} parent=1 // pred_check
      _
    $region47: #{dqn_forward.1} parent=1 // pred_check_branch
      %127 = sbr.rel (0) target = $region49
    $region48: #{dqn_forward.1} parent=1 // pred_region
      %129 = vsyncadd [#allocation14], 0
      %s130 = sshll.u32 %s11, 4
      %s131 = int_to_ptr.hbm [resolvable:$true] %s130
      %s132 = sshll.u32 [#allocation13], 4
      %s133 = int_to_ptr.vmem [resolvable:$true] %s132
      %138 = dma.hbm_to_vmem [thread:$0]  %s131, 14336, %s133, [#allocation14], 64, 64, 4
    $region49: #{dqn_forward.1} parent=1 // pred_fallthru
      _
    // Predicated region
    $region50: #{dqn_forward.1} parent=1 // pred_check
      _
    $region51: #{dqn_forward.1} parent=1 // pred_check_branch
      %140 = sbr.rel (0) target = $region53
    $region52: #{dqn_forward.1} parent=1 // pred_region
      %142 = vsyncadd [#allocation14], 0
      %s143 = sshll.u32 %s12, 4
      %s144 = int_to_ptr.hbm [resolvable:$true] %s143
      %s145 = sshll.u32 [#allocation15], 4
      %s146 = int_to_ptr.vmem [resolvable:$true] %s145
      %151 = dma.hbm_to_vmem [thread:$0]  %s144, 14336, %s146, [#allocation14], 64, 64, 4
    $region53: #{dqn_forward.1} parent=1 // pred_fallthru
      _
    // Predicated region
    $region54: #{dqn_forward.1} parent=1 // pred_check
      _
    $region55: #{dqn_forward.1} parent=1 // pred_check_branch
      %153 = sbr.rel (0) target = $region57
    $region56: #{dqn_forward.1} parent=1 // pred_region
      _
    $region57: #{dqn_forward.1} parent=1 // pred_fallthru
      _
    // Predicated region
    $region58: #{dqn_forward.1} parent=1 // pred_check
      _
    $region59: #{dqn_forward.1} parent=1 // pred_check_branch
      %155 = sbr.rel (0) target = $region61
    $region60: #{dqn_forward.1} parent=1 // pred_region
      _
    $region61: #{dqn_forward.1} parent=1 // pred_fallthru
      _
    // Predicated region
    $region62: #{dqn_forward.1} parent=1 // pred_check
      _
    $region63: #{dqn_forward.1} parent=1 // pred_check_branch
      %157 = sbr.rel (0) target = $region65
    $region64: #{dqn_forward.1} parent=1 // pred_region
      _
    $region65: #{dqn_forward.1} parent=1 // pred_fallthru
      _
    // Predicated region
    $region66: #{dqn_forward.1} parent=1 // pred_check
      _
    $region67: #{dqn_forward.1} parent=1 // pred_check_branch
      %159 = sbr.rel (0) target = $region69
    $region68: #{dqn_forward.1} parent=1 // pred_region
      _
    $region69: #{dqn_forward.1} parent=1 // pred_fallthru
      _
    // Predicated region
    $region70: #{dqn_forward.1} parent=1 // pred_check
      _
    $region71: #{dqn_forward.1} parent=1 // pred_check_branch
      %161 = sbr.rel (0) target = $region73
    $region72: #{dqn_forward.1} parent=1 // pred_region
      %163 = vsyncadd [#allocation17], 0
      %s164 = sshll.u32 %s17, 4
      %s165 = int_to_ptr.hbm [resolvable:$true] %s164
      %s166 = sshll.u32 [#allocation16], 4
      %s167 = int_to_ptr.vmem [resolvable:$true] %s166
      %172 = dma.hbm_to_vmem [thread:$0]  %s165, 1024, %s167, [#allocation17], 64, 64, 4
    $region73: #{dqn_forward.1} parent=1 // pred_fallthru
      _
    // Predicated region
    $region74: #{dqn_forward.1} parent=1 // pred_check
      _
    $region75: #{dqn_forward.1} parent=1 // pred_check_branch
      %174 = sbr.rel (0) target = $region77
    $region76: #{dqn_forward.1} parent=1 // pred_region
      %176 = vsyncadd [#allocation17], 0
      %s178 = sshll.u32 %s18, 4
      %s179 = int_to_ptr.hbm [resolvable:$true] %s178
      %s180 = sshll.u32 [#allocation18], 4
      %s181 = int_to_ptr.vmem [resolvable:$true] %s180
      %183 = dma.hbm_to_vmem [thread:$0]  %s179, 16, %s181, [#allocation17]
    $region77: #{dqn_forward.1} parent=1 // pred_fallthru
      _
    // Predicated region
    $region78: #{dqn_forward.1} parent=1 // pred_check
      _
    $region79: #{dqn_forward.1} parent=1 // pred_check_branch
      %185 = sbr.rel (0) target = $region81
    $region80: #{dqn_forward.1} parent=1 // pred_region
      %187 = vsyncadd [#allocation20], 0
      %s188 = sshll.u32 %s19, 4
      %s189 = int_to_ptr.hbm [resolvable:$true] %s188
      %s190 = sshll.u32 [#allocation19], 4
      %s191 = int_to_ptr.vmem [resolvable:$true] %s190
      %196 = dma.hbm_to_vmem [thread:$0]  %s189, 1024, %s191, [#allocation20], 64, 64, 4
    $region81: #{dqn_forward.1} parent=1 // pred_fallthru
      _
    // Predicated region
    $region82: #{dqn_forward.1} parent=1 // pred_check
      _
    $region83: #{dqn_forward.1} parent=1 // pred_check_branch
      %198 = sbr.rel (0) target = $region85
    $region84: #{dqn_forward.1} parent=1 // pred_region
      %200 = vsyncadd [#allocation20], 0
      %s202 = sshll.u32 %s20, 4
      %s203 = int_to_ptr.hbm [resolvable:$true] %s202
      %s204 = sshll.u32 [#allocation21], 4
      %s205 = int_to_ptr.vmem [resolvable:$true] %s204
      %207 = dma.hbm_to_vmem [thread:$0]  %s203, 16, %s205, [#allocation20]
    $region85: #{dqn_forward.1} parent=1 // pred_fallthru
      _
    // Predicated region
    $region86: #{dqn_forward.1} parent=1 // pred_check
      _
    $region87: #{dqn_forward.1} parent=1 // pred_check_branch
      %209 = sbr.rel (0) target = $region89
    $region88: #{dqn_forward.1} parent=1 // pred_region
      %211 = dma.done [#allocation3], 16384
    $region89: #{dqn_forward.1} parent=1 // pred_fallthru
      _
    // Predicated region
    $region90: #{dqn_forward.1} parent=1 // pred_check
      _
    $region91: #{dqn_forward.1} parent=1 // pred_check_branch
      %213 = sbr.rel (0) target = $region93
    $region92: #{dqn_forward.1} parent=1 // pred_region
      %215 = dma.done [#allocation5], 4096
    $region93: #{dqn_forward.1} parent=1 // pred_fallthru
      _
    // Predicated region
    $region94: #{dqn_forward.1} parent=1 // pred_check
      _
    $region95: #{dqn_forward.1} parent=1 // pred_check_branch
      %217 = sbr.rel (0) target = $region97
    $region96: #{dqn_forward.1} parent=1 // pred_region
      %219 = dma.done [#allocation5], 224
    $region97: #{dqn_forward.1} parent=1 // pred_fallthru
      _
    // Predicated region
    $region98: #{dqn_forward.1} parent=1 // pred_check
      _
    $region99: #{dqn_forward.1} parent=1 // pred_check_branch
      %221 = sbr.rel (0) target = $region101
    $region100: #{dqn_forward.1} parent=1 // pred_region
      %223 = dma.done [#allocation8], 16384
    $region101: #{dqn_forward.1} parent=1 // pred_fallthru
      _
    // Predicated region
    $region102: #{dqn_forward.1} parent=1 // pred_check
      _
    $region103: #{dqn_forward.1} parent=1 // pred_check_branch
      %225 = sbr.rel (0) target = $region105
    $region104: #{dqn_forward.1} parent=1 // pred_region
      %227 = dma.done [#allocation8], 128
    $region105: #{dqn_forward.1} parent=1 // pred_fallthru
      _
    // Predicated region
    $region106: #{dqn_forward.1} parent=1 // pred_check
      _
    $region107: #{dqn_forward.1} parent=1 // pred_check_branch
      %229 = sbr.rel (0) target = $region109
    $region108: #{dqn_forward.1} parent=1 // pred_region
      %231 = dma.done [#allocation11], 4096
    $region109: #{dqn_forward.1} parent=1 // pred_fallthru
      _
    // Predicated region
    $region110: #{dqn_forward.1} parent=1 // pred_check
      _
    $region111: #{dqn_forward.1} parent=1 // pred_check_branch
      %233 = sbr.rel (0) target = $region113
    $region112: #{dqn_forward.1} parent=1 // pred_region
      %235 = dma.done [#allocation11], 224
    $region113: #{dqn_forward.1} parent=1 // pred_fallthru
      _
    // Predicated region
    $region114: #{dqn_forward.1} parent=1 // pred_check
      _
    $region115: #{dqn_forward.1} parent=1 // pred_check_branch
      %237 = sbr.rel (0) target = $region117
    $region116: #{dqn_forward.1} parent=1 // pred_region
      %239 = dma.done [#allocation14], 14336
    $region117: #{dqn_forward.1} parent=1 // pred_fallthru
      _
    // Predicated region
    $region118: #{dqn_forward.1} parent=1 // pred_check
      _
    $region119: #{dqn_forward.1} parent=1 // pred_check_branch
      %241 = sbr.rel (0) target = $region121
    $region120: #{dqn_forward.1} parent=1 // pred_region
      %243 = dma.done [#allocation14], 14336
    $region121: #{dqn_forward.1} parent=1 // pred_fallthru
      _
    // Predicated region
    $region122: #{dqn_forward.1} parent=1 // pred_check
      _
    $region123: #{dqn_forward.1} parent=1 // pred_check_branch
      %245 = sbr.rel (0) target = $region125
    $region124: #{dqn_forward.1} parent=1 // pred_region
      %247 = dma.done [#allocation17], 1024
    $region125: #{dqn_forward.1} parent=1 // pred_fallthru
      _
    // Predicated region
    $region126: #{dqn_forward.1} parent=1 // pred_check
      _
    $region127: #{dqn_forward.1} parent=1 // pred_check_branch
      %249 = sbr.rel (0) target = $region129
    $region128: #{dqn_forward.1} parent=1 // pred_region
      %251 = dma.done [#allocation17], 16
    $region129: #{dqn_forward.1} parent=1 // pred_fallthru
      _
    // Predicated region
    $region130: #{dqn_forward.1} parent=1 // pred_check
      _
    $region131: #{dqn_forward.1} parent=1 // pred_check_branch
      %253 = sbr.rel (0) target = $region133
    $region132: #{dqn_forward.1} parent=1 // pred_region
      %255 = dma.done [#allocation20], 1024
    $region133: #{dqn_forward.1} parent=1 // pred_fallthru
      _
    // Predicated region
    $region134: #{dqn_forward.1} parent=1 // pred_check
      _
    $region135: #{dqn_forward.1} parent=1 // pred_check_branch
      %257 = sbr.rel (0) target = $region137
    $region136: #{dqn_forward.1} parent=1 // pred_region
      %259 = dma.done [#allocation20], 16
    $region137: #{dqn_forward.1} parent=1 // pred_fallthru
      _
    %v260 = vld [vmem:[%s0] sm:$0xff]
    %v261 = vld [vmem:[#allocation2] sm:$0xff]
    %v262 = vld [vmem:[#allocation2 + $0x8] sm:$0xff]
    %v263 = vld [vmem:[#allocation2 + $0x10] sm:$0xff]
    %v264 = vld [vmem:[#allocation2 + $0x18] sm:$0xff]
    %v265 = vld [vmem:[#allocation2 + $0x20] sm:$0xff]
    %v266 = vld [vmem:[#allocation2 + $0x28] sm:$0xff]
    %v267 = vld [vmem:[#allocation2 + $0x30] sm:$0xff]
    %v268 = vld [vmem:[#allocation2 + $0x38] sm:$0xff]
    %v269 = vld [vmem:[#allocation2 + $0x40] sm:$0xff]
    %v270 = vld [vmem:[#allocation2 + $0x48] sm:$0xff]
    %v271 = vld [vmem:[#allocation2 + $0x50] sm:$0xff]
    %v272 = vld [vmem:[#allocation2 + $0x58] sm:$0xff]
    %v273 = vld [vmem:[#allocation2 + $0x60] sm:$0xff]
    %v274 = vld [vmem:[#allocation2 + $0x68] sm:$0xff]
    %v275 = vld [vmem:[#allocation2 + $0x70] sm:$0xff]
    %v276 = vld [vmem:[#allocation2 + $0x78] sm:$0xff]
    %v277 = vld [vmem:[#allocation2 + $0x80] sm:$0xff]
    %v278 = vld [vmem:[#allocation2 + $0x88] sm:$0xff]
    %v279 = vld [vmem:[#allocation2 + $0x90] sm:$0xff]
    %v280 = vld [vmem:[#allocation2 + $0x98] sm:$0xff]
    %v281 = vld [vmem:[#allocation2 + $0xa0] sm:$0xff]
    %v282 = vld [vmem:[#allocation2 + $0xa8] sm:$0xff]
    %v283 = vld [vmem:[#allocation2 + $0xb0] sm:$0xff]
    %v284 = vld [vmem:[#allocation2 + $0xb8] sm:$0xff]
    %v285 = vld [vmem:[#allocation2 + $0xc0] sm:$0xff]
    %v286 = vld [vmem:[#allocation2 + $0xc8] sm:$0xff]
    %v287 = vld [vmem:[#allocation2 + $0xd0] sm:$0xff]
    %v288 = vld [vmem:[#allocation2 + $0xd8] sm:$0xff]
    %v289 = vld [vmem:[#allocation2 + $0xe0] sm:$0xff]
    %v290 = vld [vmem:[#allocation2 + $0xe8] sm:$0xff]
    %v291 = vld [vmem:[#allocation2 + $0xf0] sm:$0xff]
    %v292 = vld [vmem:[#allocation2 + $0xf8] sm:$0xff]
    %v293 = vld [vmem:[#allocation2 + $0x100] sm:$0xff]
    %v294 = vld [vmem:[#allocation2 + $0x108] sm:$0xff]
    %v295 = vld [vmem:[#allocation2 + $0x110] sm:$0xff]
    %v296 = vld [vmem:[#allocation2 + $0x118] sm:$0xff]
    %v297 = vld [vmem:[#allocation2 + $0x120] sm:$0xff]
    %v298 = vld [vmem:[#allocation2 + $0x128] sm:$0xff]
    %v299 = vld [vmem:[#allocation2 + $0x130] sm:$0xff]
    %v300 = vld [vmem:[#allocation2 + $0x138] sm:$0xff]
    %v301 = vld [vmem:[#allocation2 + $0x140] sm:$0xff]
    %v302 = vld [vmem:[#allocation2 + $0x148] sm:$0xff]
    %v303 = vld [vmem:[#allocation2 + $0x150] sm:$0xff]
    %v304 = vld [vmem:[#allocation2 + $0x158] sm:$0xff]
    %v305 = vld [vmem:[#allocation2 + $0x160] sm:$0xff]
    %v306 = vld [vmem:[#allocation2 + $0x168] sm:$0xff]
    %v307 = vld [vmem:[#allocation2 + $0x170] sm:$0xff]
    %v308 = vld [vmem:[#allocation2 + $0x178] sm:$0xff]
    %v309 = vld [vmem:[#allocation2 + $0x180] sm:$0xff]
    %v310 = vld [vmem:[#allocation2 + $0x188] sm:$0xff]
    %v311 = vld [vmem:[#allocation2 + $0x190] sm:$0xff]
    %v312 = vld [vmem:[#allocation2 + $0x198] sm:$0xff]
    %v313 = vld [vmem:[#allocation2 + $0x1a0] sm:$0xff]
    %v314 = vld [vmem:[#allocation2 + $0x1a8] sm:$0xff]
    %v315 = vld [vmem:[#allocation2 + $0x1b0] sm:$0xff]
    %v316 = vld [vmem:[#allocation2 + $0x1b8] sm:$0xff]
    %v317 = vld [vmem:[#allocation2 + $0x1c0] sm:$0xff]
    %v318 = vld [vmem:[#allocation2 + $0x1c8] sm:$0xff]
    %v319 = vld [vmem:[#allocation2 + $0x1d0] sm:$0xff]
    %v320 = vld [vmem:[#allocation2 + $0x1d8] sm:$0xff]
    %v321 = vld [vmem:[#allocation2 + $0x1e0] sm:$0xff]
    %v322 = vld [vmem:[#allocation2 + $0x1e8] sm:$0xff]
    %v323 = vld [vmem:[#allocation2 + $0x1f0] sm:$0xff]
    %v324 = vld [vmem:[#allocation2 + $0x1f8] sm:$0xff]
    %v325 = vld [vmem:[#allocation2 + $0x200] sm:$0xff]
    %v326 = vld [vmem:[#allocation2 + $0x208] sm:$0xff]
    %v327 = vld [vmem:[#allocation2 + $0x210] sm:$0xff]
    %v328 = vld [vmem:[#allocation2 + $0x218] sm:$0xff]
    %v329 = vld [vmem:[#allocation2 + $0x220] sm:$0xff]
    %v330 = vld [vmem:[#allocation2 + $0x228] sm:$0xff]
    %v331 = vld [vmem:[#allocation2 + $0x230] sm:$0xff]
    %v332 = vld [vmem:[#allocation2 + $0x238] sm:$0xff]
    %v333 = vld [vmem:[#allocation2 + $0x240] sm:$0xff]
    %v334 = vld [vmem:[#allocation2 + $0x248] sm:$0xff]
    %v335 = vld [vmem:[#allocation2 + $0x250] sm:$0xff]
    %v336 = vld [vmem:[#allocation2 + $0x258] sm:$0xff]
    %v337 = vld [vmem:[#allocation2 + $0x260] sm:$0xff]
    %v338 = vld [vmem:[#allocation2 + $0x268] sm:$0xff]
    %v339 = vld [vmem:[#allocation2 + $0x270] sm:$0xff]
    %v340 = vld [vmem:[#allocation2 + $0x278] sm:$0xff]
    %v341 = vld [vmem:[#allocation2 + $0x280] sm:$0xff]
    %v342 = vld [vmem:[#allocation2 + $0x288] sm:$0xff]
    %v343 = vld [vmem:[#allocation2 + $0x290] sm:$0xff]
    %v344 = vld [vmem:[#allocation2 + $0x298] sm:$0xff]
    %v345 = vld [vmem:[#allocation2 + $0x2a0] sm:$0xff]
    %v346 = vld [vmem:[#allocation2 + $0x2a8] sm:$0xff]
    %v347 = vld [vmem:[#allocation2 + $0x2b0] sm:$0xff]
    %v348 = vld [vmem:[#allocation2 + $0x2b8] sm:$0xff]
    %v349 = vld [vmem:[#allocation2 + $0x2c0] sm:$0xff]
    %v350 = vld [vmem:[#allocation2 + $0x2c8] sm:$0xff]
    %v351 = vld [vmem:[#allocation2 + $0x2d0] sm:$0xff]
    %v352 = vld [vmem:[#allocation2 + $0x2d8] sm:$0xff]
    %v353 = vld [vmem:[#allocation2 + $0x2e0] sm:$0xff]
    %v354 = vld [vmem:[#allocation2 + $0x2e8] sm:$0xff]
    %v355 = vld [vmem:[#allocation2 + $0x2f0] sm:$0xff]
    %v356 = vld [vmem:[#allocation2 + $0x2f8] sm:$0xff]
    %v357 = vld [vmem:[#allocation2 + $0x300] sm:$0xff]
    %v358 = vld [vmem:[#allocation2 + $0x308] sm:$0xff]
    %v359 = vld [vmem:[#allocation2 + $0x310] sm:$0xff]
    %v360 = vld [vmem:[#allocation2 + $0x318] sm:$0xff]
    %v361 = vld [vmem:[#allocation2 + $0x320] sm:$0xff]
    %v362 = vld [vmem:[#allocation2 + $0x328] sm:$0xff]
    %v363 = vld [vmem:[#allocation2 + $0x330] sm:$0xff]
    %v364 = vld [vmem:[#allocation2 + $0x338] sm:$0xff]
    %v365 = vld [vmem:[#allocation2 + $0x340] sm:$0xff]
    %v366 = vld [vmem:[#allocation2 + $0x348] sm:$0xff]
    %v367 = vld [vmem:[#allocation2 + $0x350] sm:$0xff]
    %v368 = vld [vmem:[#allocation2 + $0x358] sm:$0xff]
    %v369 = vld [vmem:[#allocation2 + $0x360] sm:$0xff]
    %v370 = vld [vmem:[#allocation2 + $0x368] sm:$0xff]
    %v371 = vld [vmem:[#allocation2 + $0x370] sm:$0xff]
    %v372 = vld [vmem:[#allocation2 + $0x378] sm:$0xff]
    %v373 = vld [vmem:[#allocation2 + $0x380] sm:$0xff]
    %v374 = vld [vmem:[#allocation2 + $0x388] sm:$0xff]
    %v375 = vld [vmem:[#allocation2 + $0x390] sm:$0xff]
    %v376 = vld [vmem:[#allocation2 + $0x398] sm:$0xff]
    %v377 = vld [vmem:[#allocation2 + $0x3a0] sm:$0xff]
    %v378 = vld [vmem:[#allocation2 + $0x3a8] sm:$0xff]
    %v379 = vld [vmem:[#allocation2 + $0x3b0] sm:$0xff]
    %v380 = vld [vmem:[#allocation2 + $0x3b8] sm:$0xff]
    %v381 = vld [vmem:[#allocation2 + $0x3c0] sm:$0xff]
    %v382 = vld [vmem:[#allocation2 + $0x3c8] sm:$0xff]
    %v383 = vld [vmem:[#allocation2 + $0x3d0] sm:$0xff]
    %v384 = vld [vmem:[#allocation2 + $0x3d8] sm:$0xff]
    %v385 = vld [vmem:[#allocation2 + $0x3e0] sm:$0xff]
    %v386 = vld [vmem:[#allocation2 + $0x3e8] sm:$0xff]
    %v387 = vld [vmem:[#allocation2 + $0x3f0] sm:$0xff]
    %v388 = vld [vmem:[#allocation2 + $0x3f8] sm:$0xff]
    %v389 = vld [vmem:[%s4] sm:$0xff]
    %v390 = vld [vmem:[#allocation4] sm:$0xff]
    %v391 = vld [vmem:[#allocation4 + $0x8] sm:$0xff]
    %v392 = vld [vmem:[#allocation4 + $0x10] sm:$0xff]
    %v393 = vld [vmem:[#allocation4 + $0x18] sm:$0xff]
    %v394 = vld [vmem:[#allocation4 + $0x20] sm:$0xff]
    %v395 = vld [vmem:[#allocation4 + $0x28] sm:$0xff]
    %v396 = vld [vmem:[#allocation4 + $0x30] sm:$0xff]
    %v397 = vld [vmem:[#allocation4 + $0x38] sm:$0xff]
    %v398 = vld [vmem:[#allocation4 + $0x40] sm:$0xff]
    %v399 = vld [vmem:[#allocation4 + $0x48] sm:$0xff]
    %v400 = vld [vmem:[#allocation4 + $0x50] sm:$0xff]
    %v401 = vld [vmem:[#allocation4 + $0x58] sm:$0xff]
    %v402 = vld [vmem:[#allocation4 + $0x60] sm:$0xff]
    %v403 = vld [vmem:[#allocation4 + $0x68] sm:$0xff]
    %v404 = vld [vmem:[#allocation4 + $0x70] sm:$0xff]
    %v405 = vld [vmem:[#allocation4 + $0x78] sm:$0xff]
    %v406 = vld [vmem:[#allocation4 + $0x80] sm:$0xff]
    %v407 = vld [vmem:[#allocation4 + $0x88] sm:$0xff]
    %v408 = vld [vmem:[#allocation4 + $0x90] sm:$0xff]
    %v409 = vld [vmem:[#allocation4 + $0x98] sm:$0xff]
    %v410 = vld [vmem:[#allocation4 + $0xa0] sm:$0xff]
    %v411 = vld [vmem:[#allocation4 + $0xa8] sm:$0xff]
    %v412 = vld [vmem:[#allocation4 + $0xb0] sm:$0xff]
    %v413 = vld [vmem:[#allocation4 + $0xb8] sm:$0xff]
    %v414 = vld [vmem:[#allocation4 + $0xc0] sm:$0xff]
    %v415 = vld [vmem:[#allocation4 + $0xc8] sm:$0xff]
    %v416 = vld [vmem:[#allocation4 + $0xd0] sm:$0xff]
    %v417 = vld [vmem:[#allocation4 + $0xd8] sm:$0xff]
    %v418 = vld [vmem:[#allocation4 + $0xe0] sm:$0xff]
    %v419 = vld [vmem:[#allocation4 + $0xe8] sm:$0xff]
    %v420 = vld [vmem:[#allocation4 + $0xf0] sm:$0xff]
    %v421 = vld [vmem:[#allocation4 + $0xf8] sm:$0xff]
    %v422 = vld [vmem:[#allocation6] sm:$0xff]
    %v423 = vld [vmem:[#allocation6 + $0x8] sm:$0x3f]
    %v425 = vperm.slane %v389, 0
    %v426 = vperm.slane %v389, 1
    %v427 = vperm.slane %v389, 2
    %v428 = vperm.slane %v389, 3
    %v429 = vperm.slane %v389, 4
    %v430 = vperm.slane %v389, 5
    %v431 = vperm.slane %v389, 6
    %v432 = vperm.slane %v389, 7
    %v442 = vunpack.c.l.b16 %v260
    %v443 = vunpack.c.h.b16 %v260
    %v444 = vpack.c.b16 %v442, %v442
    %v445 = vpack.c.b16 %v443, %v443
    %v576 = vunpack.c.l.b16 %v261
    %v577 = vunpack.c.h.b16 %v261
    %v578 = vunpack.c.l.b16 %v262
    %v579 = vunpack.c.h.b16 %v262
    %v580 = vunpack.c.l.b16 %v263
    %v581 = vunpack.c.h.b16 %v263
    %v582 = vunpack.c.l.b16 %v264
    %v583 = vunpack.c.h.b16 %v264
    %v584 = vunpack.c.l.b16 %v265
    %v585 = vunpack.c.h.b16 %v265
    %v586 = vunpack.c.l.b16 %v266
    %v587 = vunpack.c.h.b16 %v266
    %v588 = vunpack.c.l.b16 %v267
    %v589 = vunpack.c.h.b16 %v267
    %v590 = vunpack.c.l.b16 %v268
    %v591 = vunpack.c.h.b16 %v268
    %v592 = vunpack.c.l.b16 %v269
    %v593 = vunpack.c.h.b16 %v269
    %v594 = vunpack.c.l.b16 %v270
    %v595 = vunpack.c.h.b16 %v270
    %v596 = vunpack.c.l.b16 %v271
    %v597 = vunpack.c.h.b16 %v271
    %v598 = vunpack.c.l.b16 %v272
    %v599 = vunpack.c.h.b16 %v272
    %v600 = vunpack.c.l.b16 %v273
    %v601 = vunpack.c.h.b16 %v273
    %v602 = vunpack.c.l.b16 %v274
    %v603 = vunpack.c.h.b16 %v274
    %v604 = vunpack.c.l.b16 %v275
    %v605 = vunpack.c.h.b16 %v275
    %v606 = vunpack.c.l.b16 %v276
    %v607 = vunpack.c.h.b16 %v276
    %v608 = vunpack.c.l.b16 %v277
    %v609 = vunpack.c.h.b16 %v277
    %v610 = vunpack.c.l.b16 %v278
    %v611 = vunpack.c.h.b16 %v278
    %v612 = vunpack.c.l.b16 %v279
    %v613 = vunpack.c.h.b16 %v279
    %v614 = vunpack.c.l.b16 %v280
    %v615 = vunpack.c.h.b16 %v280
    %v616 = vunpack.c.l.b16 %v281
    %v617 = vunpack.c.h.b16 %v281
    %v618 = vunpack.c.l.b16 %v282
    %v619 = vunpack.c.h.b16 %v282
    %v620 = vunpack.c.l.b16 %v283
    %v621 = vunpack.c.h.b16 %v283
    %v622 = vunpack.c.l.b16 %v284
    %v623 = vunpack.c.h.b16 %v284
    %v624 = vunpack.c.l.b16 %v285
    %v625 = vunpack.c.h.b16 %v285
    %v626 = vunpack.c.l.b16 %v286
    %v627 = vunpack.c.h.b16 %v286
    %v628 = vunpack.c.l.b16 %v287
    %v629 = vunpack.c.h.b16 %v287
    %v630 = vunpack.c.l.b16 %v288
    %v631 = vunpack.c.h.b16 %v288
    %v632 = vunpack.c.l.b16 %v289
    %v633 = vunpack.c.h.b16 %v289
    %v634 = vunpack.c.l.b16 %v290
    %v635 = vunpack.c.h.b16 %v290
    %v636 = vunpack.c.l.b16 %v291
    %v637 = vunpack.c.h.b16 %v291
    %v638 = vunpack.c.l.b16 %v292
    %v639 = vunpack.c.h.b16 %v292
    %v640 = vunpack.c.l.b16 %v293
    %v641 = vunpack.c.h.b16 %v293
    %v642 = vunpack.c.l.b16 %v294
    %v643 = vunpack.c.h.b16 %v294
    %v644 = vunpack.c.l.b16 %v295
    %v645 = vunpack.c.h.b16 %v295
    %v646 = vunpack.c.l.b16 %v296
    %v647 = vunpack.c.h.b16 %v296
    %v648 = vunpack.c.l.b16 %v297
    %v649 = vunpack.c.h.b16 %v297
    %v650 = vunpack.c.l.b16 %v298
    %v651 = vunpack.c.h.b16 %v298
    %v652 = vunpack.c.l.b16 %v299
    %v653 = vunpack.c.h.b16 %v299
    %v654 = vunpack.c.l.b16 %v300
    %v655 = vunpack.c.h.b16 %v300
    %v656 = vunpack.c.l.b16 %v301
    %v657 = vunpack.c.h.b16 %v301
    %v658 = vunpack.c.l.b16 %v302
    %v659 = vunpack.c.h.b16 %v302
    %v660 = vunpack.c.l.b16 %v303
    %v661 = vunpack.c.h.b16 %v303
    %v662 = vunpack.c.l.b16 %v304
    %v663 = vunpack.c.h.b16 %v304
    %v664 = vunpack.c.l.b16 %v305
    %v665 = vunpack.c.h.b16 %v305
    %v666 = vunpack.c.l.b16 %v306
    %v667 = vunpack.c.h.b16 %v306
    %v668 = vunpack.c.l.b16 %v307
    %v669 = vunpack.c.h.b16 %v307
    %v670 = vunpack.c.l.b16 %v308
    %v671 = vunpack.c.h.b16 %v308
    %v672 = vunpack.c.l.b16 %v309
    %v673 = vunpack.c.h.b16 %v309
    %v674 = vunpack.c.l.b16 %v310
    %v675 = vunpack.c.h.b16 %v310
    %v676 = vunpack.c.l.b16 %v311
    %v677 = vunpack.c.h.b16 %v311
    %v678 = vunpack.c.l.b16 %v312
    %v679 = vunpack.c.h.b16 %v312
    %v680 = vunpack.c.l.b16 %v313
    %v681 = vunpack.c.h.b16 %v313
    %v682 = vunpack.c.l.b16 %v314
    %v683 = vunpack.c.h.b16 %v314
    %v684 = vunpack.c.l.b16 %v315
    %v685 = vunpack.c.h.b16 %v315
    %v686 = vunpack.c.l.b16 %v316
    %v687 = vunpack.c.h.b16 %v316
    %v688 = vunpack.c.l.b16 %v317
    %v689 = vunpack.c.h.b16 %v317
    %v690 = vunpack.c.l.b16 %v318
    %v691 = vunpack.c.h.b16 %v318
    %v692 = vunpack.c.l.b16 %v319
    %v693 = vunpack.c.h.b16 %v319
    %v694 = vunpack.c.l.b16 %v320
    %v695 = vunpack.c.h.b16 %v320
    %v696 = vunpack.c.l.b16 %v321
    %v697 = vunpack.c.h.b16 %v321
    %v698 = vunpack.c.l.b16 %v322
    %v699 = vunpack.c.h.b16 %v322
    %v700 = vunpack.c.l.b16 %v323
    %v701 = vunpack.c.h.b16 %v323
    %v702 = vunpack.c.l.b16 %v324
    %v703 = vunpack.c.h.b16 %v324
    %v704 = vunpack.c.l.b16 %v325
    %v705 = vunpack.c.h.b16 %v325
    %v706 = vunpack.c.l.b16 %v326
    %v707 = vunpack.c.h.b16 %v326
    %v708 = vunpack.c.l.b16 %v327
    %v709 = vunpack.c.h.b16 %v327
    %v710 = vunpack.c.l.b16 %v328
    %v711 = vunpack.c.h.b16 %v328
    %v712 = vunpack.c.l.b16 %v329
    %v713 = vunpack.c.h.b16 %v329
    %v714 = vunpack.c.l.b16 %v330
    %v715 = vunpack.c.h.b16 %v330
    %v716 = vunpack.c.l.b16 %v331
    %v717 = vunpack.c.h.b16 %v331
    %v718 = vunpack.c.l.b16 %v332
    %v719 = vunpack.c.h.b16 %v332
    %v720 = vunpack.c.l.b16 %v333
    %v721 = vunpack.c.h.b16 %v333
    %v722 = vunpack.c.l.b16 %v334
    %v723 = vunpack.c.h.b16 %v334
    %v724 = vunpack.c.l.b16 %v335
    %v725 = vunpack.c.h.b16 %v335
    %v726 = vunpack.c.l.b16 %v336
    %v727 = vunpack.c.h.b16 %v336
    %v728 = vunpack.c.l.b16 %v337
    %v729 = vunpack.c.h.b16 %v337
    %v730 = vunpack.c.l.b16 %v338
    %v731 = vunpack.c.h.b16 %v338
    %v732 = vunpack.c.l.b16 %v339
    %v733 = vunpack.c.h.b16 %v339
    %v734 = vunpack.c.l.b16 %v340
    %v735 = vunpack.c.h.b16 %v340
    %v736 = vunpack.c.l.b16 %v341
    %v737 = vunpack.c.h.b16 %v341
    %v738 = vunpack.c.l.b16 %v342
    %v739 = vunpack.c.h.b16 %v342
    %v740 = vunpack.c.l.b16 %v343
    %v741 = vunpack.c.h.b16 %v343
    %v742 = vunpack.c.l.b16 %v344
    %v743 = vunpack.c.h.b16 %v344
    %v744 = vunpack.c.l.b16 %v345
    %v745 = vunpack.c.h.b16 %v345
    %v746 = vunpack.c.l.b16 %v346
    %v747 = vunpack.c.h.b16 %v346
    %v748 = vunpack.c.l.b16 %v347
    %v749 = vunpack.c.h.b16 %v347
    %v750 = vunpack.c.l.b16 %v348
    %v751 = vunpack.c.h.b16 %v348
    %v752 = vunpack.c.l.b16 %v349
    %v753 = vunpack.c.h.b16 %v349
    %v754 = vunpack.c.l.b16 %v350
    %v755 = vunpack.c.h.b16 %v350
    %v756 = vunpack.c.l.b16 %v351
    %v757 = vunpack.c.h.b16 %v351
    %v758 = vunpack.c.l.b16 %v352
    %v759 = vunpack.c.h.b16 %v352
    %v760 = vunpack.c.l.b16 %v353
    %v761 = vunpack.c.h.b16 %v353
    %v762 = vunpack.c.l.b16 %v354
    %v763 = vunpack.c.h.b16 %v354
    %v764 = vunpack.c.l.b16 %v355
    %v765 = vunpack.c.h.b16 %v355
    %v766 = vunpack.c.l.b16 %v356
    %v767 = vunpack.c.h.b16 %v356
    %v768 = vunpack.c.l.b16 %v357
    %v769 = vunpack.c.h.b16 %v357
    %v770 = vunpack.c.l.b16 %v358
    %v771 = vunpack.c.h.b16 %v358
    %v772 = vunpack.c.l.b16 %v359
    %v773 = vunpack.c.h.b16 %v359
    %v774 = vunpack.c.l.b16 %v360
    %v775 = vunpack.c.h.b16 %v360
    %v776 = vunpack.c.l.b16 %v361
    %v777 = vunpack.c.h.b16 %v361
    %v778 = vunpack.c.l.b16 %v362
    %v779 = vunpack.c.h.b16 %v362
    %v780 = vunpack.c.l.b16 %v363
    %v781 = vunpack.c.h.b16 %v363
    %v782 = vunpack.c.l.b16 %v364
    %v783 = vunpack.c.h.b16 %v364
    %v784 = vunpack.c.l.b16 %v365
    %v785 = vunpack.c.h.b16 %v365
    %v786 = vunpack.c.l.b16 %v366
    %v787 = vunpack.c.h.b16 %v366
    %v788 = vunpack.c.l.b16 %v367
    %v789 = vunpack.c.h.b16 %v367
    %v790 = vunpack.c.l.b16 %v368
    %v791 = vunpack.c.h.b16 %v368
    %v792 = vunpack.c.l.b16 %v369
    %v793 = vunpack.c.h.b16 %v369
    %v794 = vunpack.c.l.b16 %v370
    %v795 = vunpack.c.h.b16 %v370
    %v796 = vunpack.c.l.b16 %v371
    %v797 = vunpack.c.h.b16 %v371
    %v798 = vunpack.c.l.b16 %v372
    %v799 = vunpack.c.h.b16 %v372
    %v800 = vunpack.c.l.b16 %v373
    %v801 = vunpack.c.h.b16 %v373
    %v802 = vunpack.c.l.b16 %v374
    %v803 = vunpack.c.h.b16 %v374
    %v804 = vunpack.c.l.b16 %v375
    %v805 = vunpack.c.h.b16 %v375
    %v806 = vunpack.c.l.b16 %v376
    %v807 = vunpack.c.h.b16 %v376
    %v808 = vunpack.c.l.b16 %v377
    %v809 = vunpack.c.h.b16 %v377
    %v810 = vunpack.c.l.b16 %v378
    %v811 = vunpack.c.h.b16 %v378
    %v812 = vunpack.c.l.b16 %v379
    %v813 = vunpack.c.h.b16 %v379
    %v814 = vunpack.c.l.b16 %v380
    %v815 = vunpack.c.h.b16 %v380
    %v816 = vunpack.c.l.b16 %v381
    %v817 = vunpack.c.h.b16 %v381
    %v818 = vunpack.c.l.b16 %v382
    %v819 = vunpack.c.h.b16 %v382
    %v820 = vunpack.c.l.b16 %v383
    %v821 = vunpack.c.h.b16 %v383
    %v822 = vunpack.c.l.b16 %v384
    %v823 = vunpack.c.h.b16 %v384
    %v824 = vunpack.c.l.b16 %v385
    %v825 = vunpack.c.h.b16 %v385
    %v826 = vunpack.c.l.b16 %v386
    %v827 = vunpack.c.h.b16 %v386
    %v828 = vunpack.c.l.b16 %v387
    %v829 = vunpack.c.h.b16 %v387
    %v830 = vunpack.c.l.b16 %v388
    %v831 = vunpack.c.h.b16 %v388
    %v832 = vpack.c.b16 %v584, %v576
    %v833 = vpack.c.b16 %v585, %v577
    %v834 = vpack.c.b16 %v586, %v578
    %v835 = vpack.c.b16 %v587, %v579
    %v836 = vpack.c.b16 %v588, %v580
    %v837 = vpack.c.b16 %v589, %v581
    %v838 = vpack.c.b16 %v590, %v582
    %v839 = vpack.c.b16 %v591, %v583
    %v840 = vpack.c.b16 %v600, %v592
    %v841 = vpack.c.b16 %v601, %v593
    %v842 = vpack.c.b16 %v602, %v594
    %v843 = vpack.c.b16 %v603, %v595
    %v844 = vpack.c.b16 %v604, %v596
    %v845 = vpack.c.b16 %v605, %v597
    %v846 = vpack.c.b16 %v606, %v598
    %v847 = vpack.c.b16 %v607, %v599
    %v848 = vpack.c.b16 %v616, %v608
    %v849 = vpack.c.b16 %v617, %v609
    %v850 = vpack.c.b16 %v618, %v610
    %v851 = vpack.c.b16 %v619, %v611
    %v852 = vpack.c.b16 %v620, %v612
    %v853 = vpack.c.b16 %v621, %v613
    %v854 = vpack.c.b16 %v622, %v614
    %v855 = vpack.c.b16 %v623, %v615
    %v856 = vpack.c.b16 %v632, %v624
    %v857 = vpack.c.b16 %v633, %v625
    %v858 = vpack.c.b16 %v634, %v626
    %v859 = vpack.c.b16 %v635, %v627
    %v860 = vpack.c.b16 %v636, %v628
    %v861 = vpack.c.b16 %v637, %v629
    %v862 = vpack.c.b16 %v638, %v630
    %v863 = vpack.c.b16 %v639, %v631
    %v864 = vpack.c.b16 %v648, %v640
    %v865 = vpack.c.b16 %v649, %v641
    %v866 = vpack.c.b16 %v650, %v642
    %v867 = vpack.c.b16 %v651, %v643
    %v868 = vpack.c.b16 %v652, %v644
    %v869 = vpack.c.b16 %v653, %v645
    %v870 = vpack.c.b16 %v654, %v646
    %v871 = vpack.c.b16 %v655, %v647
    %v872 = vpack.c.b16 %v664, %v656
    %v873 = vpack.c.b16 %v665, %v657
    %v874 = vpack.c.b16 %v666, %v658
    %v875 = vpack.c.b16 %v667, %v659
    %v876 = vpack.c.b16 %v668, %v660
    %v877 = vpack.c.b16 %v669, %v661
    %v878 = vpack.c.b16 %v670, %v662
    %v879 = vpack.c.b16 %v671, %v663
    %v880 = vpack.c.b16 %v680, %v672
    %v881 = vpack.c.b16 %v681, %v673
    %v882 = vpack.c.b16 %v682, %v674
    %v883 = vpack.c.b16 %v683, %v675
    %v884 = vpack.c.b16 %v684, %v676
    %v885 = vpack.c.b16 %v685, %v677
    %v886 = vpack.c.b16 %v686, %v678
    %v887 = vpack.c.b16 %v687, %v679
    %v888 = vpack.c.b16 %v696, %v688
    %v889 = vpack.c.b16 %v697, %v689
    %v890 = vpack.c.b16 %v698, %v690
    %v891 = vpack.c.b16 %v699, %v691
    %v892 = vpack.c.b16 %v700, %v692
    %v893 = vpack.c.b16 %v701, %v693
    %v894 = vpack.c.b16 %v702, %v694
    %v895 = vpack.c.b16 %v703, %v695
    %v896 = vpack.c.b16 %v712, %v704
    %v897 = vpack.c.b16 %v713, %v705
    %v898 = vpack.c.b16 %v714, %v706
    %v899 = vpack.c.b16 %v715, %v707
    %v900 = vpack.c.b16 %v716, %v708
    %v901 = vpack.c.b16 %v717, %v709
    %v902 = vpack.c.b16 %v718, %v710
    %v903 = vpack.c.b16 %v719, %v711
    %v904 = vpack.c.b16 %v728, %v720
    %v905 = vpack.c.b16 %v729, %v721
    %v906 = vpack.c.b16 %v730, %v722
    %v907 = vpack.c.b16 %v731, %v723
    %v908 = vpack.c.b16 %v732, %v724
    %v909 = vpack.c.b16 %v733, %v725
    %v910 = vpack.c.b16 %v734, %v726
    %v911 = vpack.c.b16 %v735, %v727
    %v912 = vpack.c.b16 %v744, %v736
    %v913 = vpack.c.b16 %v745, %v737
    %v914 = vpack.c.b16 %v746, %v738
    %v915 = vpack.c.b16 %v747, %v739
    %v916 = vpack.c.b16 %v748, %v740
    %v917 = vpack.c.b16 %v749, %v741
    %v918 = vpack.c.b16 %v750, %v742
    %v919 = vpack.c.b16 %v751, %v743
    %v920 = vpack.c.b16 %v760, %v752
    %v921 = vpack.c.b16 %v761, %v753
    %v922 = vpack.c.b16 %v762, %v754
    %v923 = vpack.c.b16 %v763, %v755
    %v924 = vpack.c.b16 %v764, %v756
    %v925 = vpack.c.b16 %v765, %v757
    %v926 = vpack.c.b16 %v766, %v758
    %v927 = vpack.c.b16 %v767, %v759
    %v928 = vpack.c.b16 %v776, %v768
    %v929 = vpack.c.b16 %v777, %v769
    %v930 = vpack.c.b16 %v778, %v770
    %v931 = vpack.c.b16 %v779, %v771
    %v932 = vpack.c.b16 %v780, %v772
    %v933 = vpack.c.b16 %v781, %v773
    %v934 = vpack.c.b16 %v782, %v774
    %v935 = vpack.c.b16 %v783, %v775
    %v936 = vpack.c.b16 %v792, %v784
    %v937 = vpack.c.b16 %v793, %v785
    %v938 = vpack.c.b16 %v794, %v786
    %v939 = vpack.c.b16 %v795, %v787
    %v940 = vpack.c.b16 %v796, %v788
    %v941 = vpack.c.b16 %v797, %v789
    %v942 = vpack.c.b16 %v798, %v790
    %v943 = vpack.c.b16 %v799, %v791
    %v944 = vpack.c.b16 %v808, %v800
    %v945 = vpack.c.b16 %v809, %v801
    %v946 = vpack.c.b16 %v810, %v802
    %v947 = vpack.c.b16 %v811, %v803
    %v948 = vpack.c.b16 %v812, %v804
    %v949 = vpack.c.b16 %v813, %v805
    %v950 = vpack.c.b16 %v814, %v806
    %v951 = vpack.c.b16 %v815, %v807
    %v952 = vpack.c.b16 %v824, %v816
    %v953 = vpack.c.b16 %v825, %v817
    %v954 = vpack.c.b16 %v826, %v818
    %v955 = vpack.c.b16 %v827, %v819
    %v956 = vpack.c.b16 %v828, %v820
    %v957 = vpack.c.b16 %v829, %v821
    %v958 = vpack.c.b16 %v830, %v822
    %v959 = vpack.c.b16 %v831, %v823
    %1088 = vmatpush.bf16.msra.mxu0 %v888
    %1089 = vmatpush.bf16.msra.mxu0 %v880
    %1090 = vmatpush.bf16.msra.mxu0 %v872
    %1091 = vmatpush.bf16.msra.mxu0 %v864
    %1092 = vmatpush.bf16.msra.mxu0 %v856
    %1093 = vmatpush.bf16.msra.mxu0 %v848
    %1094 = vmatpush.bf16.msra.mxu0 %v840
    %1095 = vmatpush.bf16.msra.mxu0 %v832
    %1096 = vmatmul.bf16.gmra.mxu0 %v444
    %v1097 = vpop.f32.mrf.mxu0
    %v1098 = vadd.f32 %v425, %v1097
    %v1099 = vpop.f32.mrf.mxu0
    %1100 = vdwg.mxu0
    %1101 = vmatpush.bf16.msra.mxu0 %v952
    %1102 = vmatpush.bf16.msra.mxu0 %v944
    %1103 = vmatpush.bf16.msra.mxu0 %v936
    %1104 = vmatpush.bf16.msra.mxu0 %v928
    %1105 = vmatpush.bf16.msra.mxu0 %v920
    %1106 = vmatpush.bf16.msra.mxu0 %v912
    %1107 = vmatpush.bf16.msra.mxu0 %v904
    %1108 = vmatpush.bf16.msra.mxu0 %v896
    %1109 = vmatmul.bf16.gmra.mxu0 %v445
    %v1110 = vpop.f32.mrf.mxu0
    %v1111 = vadd.f32 %v1098, %v1110
    %v1112 = vpop.f32.mrf.mxu0
    %1113 = vdwg.mxu0
    %1114 = vmatpush.bf16.msra.mxu0 %v889
    %1115 = vmatpush.bf16.msra.mxu0 %v881
    %1116 = vmatpush.bf16.msra.mxu0 %v873
    %1117 = vmatpush.bf16.msra.mxu0 %v865
    %1118 = vmatpush.bf16.msra.mxu0 %v857
    %1119 = vmatpush.bf16.msra.mxu0 %v849
    %1120 = vmatpush.bf16.msra.mxu0 %v841
    %1121 = vmatpush.bf16.msra.mxu0 %v833
    %1122 = vmatmul.bf16.gmra.mxu0 %v444
    %v1123 = vpop.f32.mrf.mxu0
    %v1124 = vadd.f32 %v426, %v1123
    %v1125 = vpop.f32.mrf.mxu0
    %1126 = vdwg.mxu0
    %1127 = vmatpush.bf16.msra.mxu0 %v953
    %1128 = vmatpush.bf16.msra.mxu0 %v945
    %1129 = vmatpush.bf16.msra.mxu0 %v937
    %1130 = vmatpush.bf16.msra.mxu0 %v929
    %1131 = vmatpush.bf16.msra.mxu0 %v921
    %1132 = vmatpush.bf16.msra.mxu0 %v913
    %1133 = vmatpush.bf16.msra.mxu0 %v905
    %1134 = vmatpush.bf16.msra.mxu0 %v897
    %1135 = vmatmul.bf16.gmra.mxu0 %v445
    %v1136 = vpop.f32.mrf.mxu0
    %v1137 = vadd.f32 %v1124, %v1136
    %v1138 = vpop.f32.mrf.mxu0
    %1139 = vdwg.mxu0
    %1140 = vmatpush.bf16.msra.mxu0 %v890
    %1141 = vmatpush.bf16.msra.mxu0 %v882
    %1142 = vmatpush.bf16.msra.mxu0 %v874
    %1143 = vmatpush.bf16.msra.mxu0 %v866
    %1144 = vmatpush.bf16.msra.mxu0 %v858
    %1145 = vmatpush.bf16.msra.mxu0 %v850
    %1146 = vmatpush.bf16.msra.mxu0 %v842
    %1147 = vmatpush.bf16.msra.mxu0 %v834
    %1148 = vmatmul.bf16.gmra.mxu0 %v444
    %v1149 = vpop.f32.mrf.mxu0
    %v1150 = vadd.f32 %v427, %v1149
    %v1151 = vpop.f32.mrf.mxu0
    %1152 = vdwg.mxu0
    %1153 = vmatpush.bf16.msra.mxu0 %v954
    %1154 = vmatpush.bf16.msra.mxu0 %v946
    %1155 = vmatpush.bf16.msra.mxu0 %v938
    %1156 = vmatpush.bf16.msra.mxu0 %v930
    %1157 = vmatpush.bf16.msra.mxu0 %v922
    %1158 = vmatpush.bf16.msra.mxu0 %v914
    %1159 = vmatpush.bf16.msra.mxu0 %v906
    %1160 = vmatpush.bf16.msra.mxu0 %v898
    %1161 = vmatmul.bf16.gmra.mxu0 %v445
    %v1162 = vpop.f32.mrf.mxu0
    %v1163 = vadd.f32 %v1150, %v1162
    %v1164 = vpop.f32.mrf.mxu0
    %1165 = vdwg.mxu0
    %1166 = vmatpush.bf16.msra.mxu0 %v891
    %1167 = vmatpush.bf16.msra.mxu0 %v883
    %1168 = vmatpush.bf16.msra.mxu0 %v875
    %1169 = vmatpush.bf16.msra.mxu0 %v867
    %1170 = vmatpush.bf16.msra.mxu0 %v859
    %1171 = vmatpush.bf16.msra.mxu0 %v851
    %1172 = vmatpush.bf16.msra.mxu0 %v843
    %1173 = vmatpush.bf16.msra.mxu0 %v835
    %1174 = vmatmul.bf16.gmra.mxu0 %v444
    %v1175 = vpop.f32.mrf.mxu0
    %v1176 = vadd.f32 %v428, %v1175
    %v1177 = vpop.f32.mrf.mxu0
    %1178 = vdwg.mxu0
    %1179 = vmatpush.bf16.msra.mxu0 %v955
    %1180 = vmatpush.bf16.msra.mxu0 %v947
    %1181 = vmatpush.bf16.msra.mxu0 %v939
    %1182 = vmatpush.bf16.msra.mxu0 %v931
    %1183 = vmatpush.bf16.msra.mxu0 %v923
    %1184 = vmatpush.bf16.msra.mxu0 %v915
    %1185 = vmatpush.bf16.msra.mxu0 %v907
    %1186 = vmatpush.bf16.msra.mxu0 %v899
    %1187 = vmatmul.bf16.gmra.mxu0 %v445
    %v1188 = vpop.f32.mrf.mxu0
    %v1189 = vadd.f32 %v1176, %v1188
    %v1190 = vpop.f32.mrf.mxu0
    %1191 = vdwg.mxu0
    %1192 = vmatpush.bf16.msra.mxu0 %v892
    %1193 = vmatpush.bf16.msra.mxu0 %v884
    %1194 = vmatpush.bf16.msra.mxu0 %v876
    %1195 = vmatpush.bf16.msra.mxu0 %v868
    %1196 = vmatpush.bf16.msra.mxu0 %v860
    %1197 = vmatpush.bf16.msra.mxu0 %v852
    %1198 = vmatpush.bf16.msra.mxu0 %v844
    %1199 = vmatpush.bf16.msra.mxu0 %v836
    %1200 = vmatmul.bf16.gmra.mxu0 %v444
    %v1201 = vpop.f32.mrf.mxu0
    %v1202 = vadd.f32 %v429, %v1201
    %v1203 = vpop.f32.mrf.mxu0
    %1204 = vdwg.mxu0
    %1205 = vmatpush.bf16.msra.mxu0 %v956
    %1206 = vmatpush.bf16.msra.mxu0 %v948
    %1207 = vmatpush.bf16.msra.mxu0 %v940
    %1208 = vmatpush.bf16.msra.mxu0 %v932
    %1209 = vmatpush.bf16.msra.mxu0 %v924
    %1210 = vmatpush.bf16.msra.mxu0 %v916
    %1211 = vmatpush.bf16.msra.mxu0 %v908
    %1212 = vmatpush.bf16.msra.mxu0 %v900
    %1213 = vmatmul.bf16.gmra.mxu0 %v445
    %v1214 = vpop.f32.mrf.mxu0
    %v1215 = vadd.f32 %v1202, %v1214
    %v1216 = vpop.f32.mrf.mxu0
    %1217 = vdwg.mxu0
    %1218 = vmatpush.bf16.msra.mxu0 %v893
    %1219 = vmatpush.bf16.msra.mxu0 %v885
    %1220 = vmatpush.bf16.msra.mxu0 %v877
    %1221 = vmatpush.bf16.msra.mxu0 %v869
    %1222 = vmatpush.bf16.msra.mxu0 %v861
    %1223 = vmatpush.bf16.msra.mxu0 %v853
    %1224 = vmatpush.bf16.msra.mxu0 %v845
    %1225 = vmatpush.bf16.msra.mxu0 %v837
    %1226 = vmatmul.bf16.gmra.mxu0 %v444
    %v1227 = vpop.f32.mrf.mxu0
    %v1228 = vadd.f32 %v430, %v1227
    %v1229 = vpop.f32.mrf.mxu0
    %1230 = vdwg.mxu0
    %1231 = vmatpush.bf16.msra.mxu0 %v957
    %1232 = vmatpush.bf16.msra.mxu0 %v949
    %1233 = vmatpush.bf16.msra.mxu0 %v941
    %1234 = vmatpush.bf16.msra.mxu0 %v933
    %1235 = vmatpush.bf16.msra.mxu0 %v925
    %1236 = vmatpush.bf16.msra.mxu0 %v917
    %1237 = vmatpush.bf16.msra.mxu0 %v909
    %1238 = vmatpush.bf16.msra.mxu0 %v901
    %1239 = vmatmul.bf16.gmra.mxu0 %v445
    %v1240 = vpop.f32.mrf.mxu0
    %v1241 = vadd.f32 %v1228, %v1240
    %v1242 = vpop.f32.mrf.mxu0
    %1243 = vdwg.mxu0
    %1244 = vmatpush.bf16.msra.mxu0 %v894
    %1245 = vmatpush.bf16.msra.mxu0 %v886
    %1246 = vmatpush.bf16.msra.mxu0 %v878
    %1247 = vmatpush.bf16.msra.mxu0 %v870
    %1248 = vmatpush.bf16.msra.mxu0 %v862
    %1249 = vmatpush.bf16.msra.mxu0 %v854
    %1250 = vmatpush.bf16.msra.mxu0 %v846
    %1251 = vmatpush.bf16.msra.mxu0 %v838
    %1252 = vmatmul.bf16.gmra.mxu0 %v444
    %v1253 = vpop.f32.mrf.mxu0
    %v1254 = vadd.f32 %v431, %v1253
    %v1255 = vpop.f32.mrf.mxu0
    %1256 = vdwg.mxu0
    %1257 = vmatpush.bf16.msra.mxu0 %v958
    %1258 = vmatpush.bf16.msra.mxu0 %v950
    %1259 = vmatpush.bf16.msra.mxu0 %v942
    %1260 = vmatpush.bf16.msra.mxu0 %v934
    %1261 = vmatpush.bf16.msra.mxu0 %v926
    %1262 = vmatpush.bf16.msra.mxu0 %v918
    %1263 = vmatpush.bf16.msra.mxu0 %v910
    %1264 = vmatpush.bf16.msra.mxu0 %v902
    %1265 = vmatmul.bf16.gmra.mxu0 %v445
    %v1266 = vpop.f32.mrf.mxu0
    %v1267 = vadd.f32 %v1254, %v1266
    %v1268 = vpop.f32.mrf.mxu0
    %1269 = vdwg.mxu0
    %1270 = vmatpush.bf16.msra.mxu0 %v895
    %1271 = vmatpush.bf16.msra.mxu0 %v887
    %1272 = vmatpush.bf16.msra.mxu0 %v879
    %1273 = vmatpush.bf16.msra.mxu0 %v871
    %1274 = vmatpush.bf16.msra.mxu0 %v863
    %1275 = vmatpush.bf16.msra.mxu0 %v855
    %1276 = vmatpush.bf16.msra.mxu0 %v847
    %1277 = vmatpush.bf16.msra.mxu0 %v839
    %1278 = vmatmul.bf16.gmra.mxu0 %v444
    %v1279 = vpop.f32.mrf.mxu0
    %v1280 = vadd.f32 %v432, %v1279
    %v1281 = vpop.f32.mrf.mxu0
    %1282 = vdwg.mxu0
    %1283 = vmatpush.bf16.msra.mxu0 %v959
    %1284 = vmatpush.bf16.msra.mxu0 %v951
    %1285 = vmatpush.bf16.msra.mxu0 %v943
    %1286 = vmatpush.bf16.msra.mxu0 %v935
    %1287 = vmatpush.bf16.msra.mxu0 %v927
    %1288 = vmatpush.bf16.msra.mxu0 %v919
    %1289 = vmatpush.bf16.msra.mxu0 %v911
    %1290 = vmatpush.bf16.msra.mxu0 %v903
    %1291 = vmatmul.bf16.gmra.mxu0 %v445
    %v1292 = vpop.f32.mrf.mxu0
    %v1293 = vadd.f32 %v1280, %v1292
    %v1294 = vpop.f32.mrf.mxu0
    %1295 = vdwg.mxu0
    %v1296 = vmax.f32 %v1111, 0.0
    %v1297 = vmax.f32 %v1137, 0.0
    %v1298 = vmax.f32 %v1163, 0.0
    %v1299 = vmax.f32 %v1189, 0.0
    %v1300 = vmax.f32 %v1215, 0.0
    %v1301 = vmax.f32 %v1241, 0.0
    %v1302 = vmax.f32 %v1267, 0.0
    %v1303 = vmax.f32 %v1293, 0.0
    %v1304 = vpack.c.bf16 %v1297, %v1296
    %v1305 = vpack.c.bf16 %v1299, %v1298
    %v1306 = vpack.c.bf16 %v1301, %v1300
    %v1307 = vpack.c.bf16 %v1303, %v1302
    %v1309 = vunpack.c.l.b16 %v1304
    %v1310 = vunpack.c.h.b16 %v1304
    %v1311 = vpack.c.b16 %v1309, %v1309
    %v1312 = vpack.c.b16 %v1310, %v1310
    %v1347 = vunpack.c.l.b16 %v390
    %v1348 = vunpack.c.h.b16 %v390
    %v1349 = vunpack.c.l.b16 %v391
    %v1350 = vunpack.c.h.b16 %v391
    %v1351 = vunpack.c.l.b16 %v392
    %v1352 = vunpack.c.h.b16 %v392
    %v1353 = vunpack.c.l.b16 %v393
    %v1354 = vunpack.c.h.b16 %v393
    %v1355 = vunpack.c.l.b16 %v394
    %v1356 = vunpack.c.h.b16 %v394
    %v1357 = vunpack.c.l.b16 %v395
    %v1358 = vunpack.c.h.b16 %v395
    %v1359 = vunpack.c.l.b16 %v396
    %v1360 = vunpack.c.h.b16 %v396
    %v1361 = vunpack.c.l.b16 %v397
    %v1362 = vunpack.c.h.b16 %v397
    %v1363 = vunpack.c.l.b16 %v398
    %v1364 = vunpack.c.h.b16 %v398
    %v1365 = vunpack.c.l.b16 %v399
    %v1366 = vunpack.c.h.b16 %v399
    %v1367 = vunpack.c.l.b16 %v400
    %v1368 = vunpack.c.h.b16 %v400
    %v1369 = vunpack.c.l.b16 %v401
    %v1370 = vunpack.c.h.b16 %v401
    %v1371 = vunpack.c.l.b16 %v402
    %v1372 = vunpack.c.h.b16 %v402
    %v1373 = vunpack.c.l.b16 %v403
    %v1374 = vunpack.c.h.b16 %v403
    %v1375 = vunpack.c.l.b16 %v404
    %v1376 = vunpack.c.h.b16 %v404
    %v1377 = vunpack.c.l.b16 %v405
    %v1378 = vunpack.c.h.b16 %v405
    %v1379 = vunpack.c.l.b16 %v406
    %v1380 = vunpack.c.h.b16 %v406
    %v1381 = vunpack.c.l.b16 %v407
    %v1382 = vunpack.c.h.b16 %v407
    %v1383 = vunpack.c.l.b16 %v408
    %v1384 = vunpack.c.h.b16 %v408
    %v1385 = vunpack.c.l.b16 %v409
    %v1386 = vunpack.c.h.b16 %v409
    %v1387 = vunpack.c.l.b16 %v410
    %v1388 = vunpack.c.h.b16 %v410
    %v1389 = vunpack.c.l.b16 %v411
    %v1390 = vunpack.c.h.b16 %v411
    %v1391 = vunpack.c.l.b16 %v412
    %v1392 = vunpack.c.h.b16 %v412
    %v1393 = vunpack.c.l.b16 %v413
    %v1394 = vunpack.c.h.b16 %v413
    %v1395 = vunpack.c.l.b16 %v414
    %v1396 = vunpack.c.h.b16 %v414
    %v1397 = vunpack.c.l.b16 %v415
    %v1398 = vunpack.c.h.b16 %v415
    %v1399 = vunpack.c.l.b16 %v416
    %v1400 = vunpack.c.h.b16 %v416
    %v1401 = vunpack.c.l.b16 %v417
    %v1402 = vunpack.c.h.b16 %v417
    %v1403 = vunpack.c.l.b16 %v418
    %v1404 = vunpack.c.h.b16 %v418
    %v1405 = vunpack.c.l.b16 %v419
    %v1406 = vunpack.c.h.b16 %v419
    %v1407 = vunpack.c.l.b16 %v420
    %v1408 = vunpack.c.h.b16 %v420
    %v1409 = vunpack.c.l.b16 %v421
    %v1410 = vunpack.c.h.b16 %v421
    %v1411 = vpack.c.b16 %v1349, %v1347
    %v1412 = vpack.c.b16 %v1350, %v1348
    %v1413 = vpack.c.b16 %v1353, %v1351
    %v1414 = vpack.c.b16 %v1354, %v1352
    %v1415 = vpack.c.b16 %v1357, %v1355
    %v1416 = vpack.c.b16 %v1358, %v1356
    %v1417 = vpack.c.b16 %v1361, %v1359
    %v1418 = vpack.c.b16 %v1362, %v1360
    %v1419 = vpack.c.b16 %v1365, %v1363
    %v1420 = vpack.c.b16 %v1366, %v1364
    %v1421 = vpack.c.b16 %v1369, %v1367
    %v1422 = vpack.c.b16 %v1370, %v1368
    %v1423 = vpack.c.b16 %v1373, %v1371
    %v1424 = vpack.c.b16 %v1374, %v1372
    %v1425 = vpack.c.b16 %v1377, %v1375
    %v1426 = vpack.c.b16 %v1378, %v1376
    %v1427 = vpack.c.b16 %v1381, %v1379
    %v1428 = vpack.c.b16 %v1382, %v1380
    %v1429 = vpack.c.b16 %v1385, %v1383
    %v1430 = vpack.c.b16 %v1386, %v1384
    %v1431 = vpack.c.b16 %v1389, %v1387
    %v1432 = vpack.c.b16 %v1390, %v1388
    %v1433 = vpack.c.b16 %v1393, %v1391
    %v1434 = vpack.c.b16 %v1394, %v1392
    %v1435 = vpack.c.b16 %v1397, %v1395
    %v1436 = vpack.c.b16 %v1398, %v1396
    %v1437 = vpack.c.b16 %v1401, %v1399
    %v1438 = vpack.c.b16 %v1402, %v1400
    %v1439 = vpack.c.b16 %v1405, %v1403
    %v1440 = vpack.c.b16 %v1406, %v1404
    %v1441 = vpack.c.b16 %v1409, %v1407
    %v1442 = vpack.c.b16 %v1410, %v1408
    %1475 = vmatpush.bf16.msra.mxu0 %v1425
    %1476 = vmatpush.bf16.msra.mxu0 %v1423
    %1477 = vmatpush.bf16.msra.mxu0 %v1421
    %1478 = vmatpush.bf16.msra.mxu0 %v1419
    %1479 = vmatpush.bf16.msra.mxu0 %v1417
    %1480 = vmatpush.bf16.msra.mxu0 %v1415
    %1481 = vmatpush.bf16.msra.mxu0 %v1413
    %1482 = vmatpush.bf16.msra.mxu0 %v1411
    %1483 = vmatmul.bf16.gmra.mxu0 %v1311
    %v1484 = vpop.f32.mrf.mxu0
    %v1485 = vadd.f32 0.0, %v1484
    %v1486 = vpop.f32.mrf.mxu0
    %1487 = vdwg.mxu0
    %1488 = vmatpush.bf16.msra.mxu0 %v1441
    %1489 = vmatpush.bf16.msra.mxu0 %v1439
    %1490 = vmatpush.bf16.msra.mxu0 %v1437
    %1491 = vmatpush.bf16.msra.mxu0 %v1435
    %1492 = vmatpush.bf16.msra.mxu0 %v1433
    %1493 = vmatpush.bf16.msra.mxu0 %v1431
    %1494 = vmatpush.bf16.msra.mxu0 %v1429
    %1495 = vmatpush.bf16.msra.mxu0 %v1427
    %1496 = vmatmul.bf16.gmra.mxu0 %v1312
    %v1497 = vpop.f32.mrf.mxu0
    %v1498 = vadd.f32 %v1485, %v1497
    %v1499 = vpop.f32.mrf.mxu0
    %1500 = vdwg.mxu0
    %1501 = vmatpush.bf16.msra.mxu0 %v1426
    %1502 = vmatpush.bf16.msra.mxu0 %v1424
    %1503 = vmatpush.bf16.msra.mxu0 %v1422
    %1504 = vmatpush.bf16.msra.mxu0 %v1420
    %1505 = vmatpush.bf16.msra.mxu0 %v1418
    %1506 = vmatpush.bf16.msra.mxu0 %v1416
    %1507 = vmatpush.bf16.msra.mxu0 %v1414
    %1508 = vmatpush.bf16.msra.mxu0 %v1412
    %1509 = vmatmul.bf16.gmra.mxu0 %v1311
    %v1510 = vpop.f32.mrf.mxu0
    %v1511 = vadd.f32 0.0, %v1510
    %v1512 = vpop.f32.mrf.mxu0
    %1513 = vdwg.mxu0
    %1514 = vmatpush.bf16.msra.mxu0 %v1442
    %1515 = vmatpush.bf16.msra.mxu0 %v1440
    %1516 = vmatpush.bf16.msra.mxu0 %v1438
    %1517 = vmatpush.bf16.msra.mxu0 %v1436
    %1518 = vmatpush.bf16.msra.mxu0 %v1434
    %1519 = vmatpush.bf16.msra.mxu0 %v1432
    %1520 = vmatpush.bf16.msra.mxu0 %v1430
    %1521 = vmatpush.bf16.msra.mxu0 %v1428
    %1522 = vmatmul.bf16.gmra.mxu0 %v1312
    %v1523 = vpop.f32.mrf.mxu0
    %v1524 = vadd.f32 %v1511, %v1523
    %v1525 = vpop.f32.mrf.mxu0
    %1526 = vdwg.mxu0
    %v1528 = vunpack.c.l.b16 %v1305
    %v1529 = vpack.c.b16 %v1528, %v1528
    %1531 = vmatpush.bf16.msra.mxu0 %v1425
    %1532 = vmatpush.bf16.msra.mxu0 %v1423
    %1533 = vmatpush.bf16.msra.mxu0 %v1421
    %1534 = vmatpush.bf16.msra.mxu0 %v1419
    %1535 = vmatpush.bf16.msra.mxu0 %v1417
    %1536 = vmatpush.bf16.msra.mxu0 %v1415
    %1537 = vmatpush.bf16.msra.mxu0 %v1413
    %1538 = vmatpush.bf16.msra.mxu0 %v1411
    %1539 = vmatmul.bf16.gmra.mxu0 %v1312
    %v1540 = vpop.f32.mrf.mxu0
    %v1541 = vadd.f32 0.0, %v1540
    %v1542 = vpop.f32.mrf.mxu0
    %1543 = vdwg.mxu0
    %1544 = vmatpush.bf16.msra.mxu0 %v1441
    %1545 = vmatpush.bf16.msra.mxu0 %v1439
    %1546 = vmatpush.bf16.msra.mxu0 %v1437
    %1547 = vmatpush.bf16.msra.mxu0 %v1435
    %1548 = vmatpush.bf16.msra.mxu0 %v1433
    %1549 = vmatpush.bf16.msra.mxu0 %v1431
    %1550 = vmatpush.bf16.msra.mxu0 %v1429
    %1551 = vmatpush.bf16.msra.mxu0 %v1427
    %1552 = vmatmul.bf16.gmra.mxu0 %v1529
    %v1553 = vpop.f32.mrf.mxu0
    %v1554 = vadd.f32 %v1541, %v1553
    %v1555 = vpop.f32.mrf.mxu0
    %1556 = vdwg.mxu0
    %1557 = vmatpush.bf16.msra.mxu0 %v1426
    %1558 = vmatpush.bf16.msra.mxu0 %v1424
    %1559 = vmatpush.bf16.msra.mxu0 %v1422
    %1560 = vmatpush.bf16.msra.mxu0 %v1420
    %1561 = vmatpush.bf16.msra.mxu0 %v1418
    %1562 = vmatpush.bf16.msra.mxu0 %v1416
    %1563 = vmatpush.bf16.msra.mxu0 %v1414
    %1564 = vmatpush.bf16.msra.mxu0 %v1412
    %1565 = vmatmul.bf16.gmra.mxu0 %v1312
    %v1566 = vpop.f32.mrf.mxu0
    %v1567 = vadd.f32 0.0, %v1566
    %v1568 = vpop.f32.mrf.mxu0
    %1569 = vdwg.mxu0
    %1570 = vmatpush.bf16.msra.mxu0 %v1442
    %1571 = vmatpush.bf16.msra.mxu0 %v1440
    %1572 = vmatpush.bf16.msra.mxu0 %v1438
    %1573 = vmatpush.bf16.msra.mxu0 %v1436
    %1574 = vmatpush.bf16.msra.mxu0 %v1434
    %1575 = vmatpush.bf16.msra.mxu0 %v1432
    %1576 = vmatpush.bf16.msra.mxu0 %v1430
    %1577 = vmatpush.bf16.msra.mxu0 %v1428
    %1578 = vmatmul.bf16.gmra.mxu0 %v1529
    %v1579 = vpop.f32.mrf.mxu0
    %v1580 = vadd.f32 %v1567, %v1579
    %v1581 = vpop.f32.mrf.mxu0
    %1582 = vdwg.mxu0
    %v1583 = vunpack.c.h.b16 %v1305
    %v1584 = vpack.c.b16 %v1583, %v1583
    %1586 = vmatpush.bf16.msra.mxu0 %v1425
    %1587 = vmatpush.bf16.msra.mxu0 %v1423
    %1588 = vmatpush.bf16.msra.mxu0 %v1421
    %1589 = vmatpush.bf16.msra.mxu0 %v1419
    %1590 = vmatpush.bf16.msra.mxu0 %v1417
    %1591 = vmatpush.bf16.msra.mxu0 %v1415
    %1592 = vmatpush.bf16.msra.mxu0 %v1413
    %1593 = vmatpush.bf16.msra.mxu0 %v1411
    %1594 = vmatmul.bf16.gmra.mxu0 %v1529
    %v1595 = vpop.f32.mrf.mxu0
    %v1596 = vadd.f32 0.0, %v1595
    %v1597 = vpop.f32.mrf.mxu0
    %1598 = vdwg.mxu0
    %1599 = vmatpush.bf16.msra.mxu0 %v1441
    %1600 = vmatpush.bf16.msra.mxu0 %v1439
    %1601 = vmatpush.bf16.msra.mxu0 %v1437
    %1602 = vmatpush.bf16.msra.mxu0 %v1435
    %1603 = vmatpush.bf16.msra.mxu0 %v1433
    %1604 = vmatpush.bf16.msra.mxu0 %v1431
    %1605 = vmatpush.bf16.msra.mxu0 %v1429
    %1606 = vmatpush.bf16.msra.mxu0 %v1427
    %1607 = vmatmul.bf16.gmra.mxu0 %v1584
    %v1608 = vpop.f32.mrf.mxu0
    %v1609 = vadd.f32 %v1596, %v1608
    %v1610 = vpop.f32.mrf.mxu0
    %1611 = vdwg.mxu0
    %1612 = vmatpush.bf16.msra.mxu0 %v1426
    %1613 = vmatpush.bf16.msra.mxu0 %v1424
    %1614 = vmatpush.bf16.msra.mxu0 %v1422
    %1615 = vmatpush.bf16.msra.mxu0 %v1420
    %1616 = vmatpush.bf16.msra.mxu0 %v1418
    %1617 = vmatpush.bf16.msra.mxu0 %v1416
    %1618 = vmatpush.bf16.msra.mxu0 %v1414
    %1619 = vmatpush.bf16.msra.mxu0 %v1412
    %1620 = vmatmul.bf16.gmra.mxu0 %v1529
    %v1621 = vpop.f32.mrf.mxu0
    %v1622 = vadd.f32 0.0, %v1621
    %v1623 = vpop.f32.mrf.mxu0
    %1624 = vdwg.mxu0
    %1625 = vmatpush.bf16.msra.mxu0 %v1442
    %1626 = vmatpush.bf16.msra.mxu0 %v1440
    %1627 = vmatpush.bf16.msra.mxu0 %v1438
    %1628 = vmatpush.bf16.msra.mxu0 %v1436
    %1629 = vmatpush.bf16.msra.mxu0 %v1434
    %1630 = vmatpush.bf16.msra.mxu0 %v1432
    %1631 = vmatpush.bf16.msra.mxu0 %v1430
    %1632 = vmatpush.bf16.msra.mxu0 %v1428
    %1633 = vmatmul.bf16.gmra.mxu0 %v1584
    %v1634 = vpop.f32.mrf.mxu0
    %v1635 = vadd.f32 %v1622, %v1634
    %v1636 = vpop.f32.mrf.mxu0
    %1637 = vdwg.mxu0
    %v1639 = vunpack.c.l.b16 %v1306
    %v1640 = vpack.c.b16 %v1639, %v1639
    %1642 = vmatpush.bf16.msra.mxu0 %v1425
    %1643 = vmatpush.bf16.msra.mxu0 %v1423
    %1644 = vmatpush.bf16.msra.mxu0 %v1421
    %1645 = vmatpush.bf16.msra.mxu0 %v1419
    %1646 = vmatpush.bf16.msra.mxu0 %v1417
    %1647 = vmatpush.bf16.msra.mxu0 %v1415
    %1648 = vmatpush.bf16.msra.mxu0 %v1413
    %1649 = vmatpush.bf16.msra.mxu0 %v1411
    %1650 = vmatmul.bf16.gmra.mxu0 %v1584
    %v1651 = vpop.f32.mrf.mxu0
    %v1652 = vadd.f32 0.0, %v1651
    %v1653 = vpop.f32.mrf.mxu0
    %1654 = vdwg.mxu0
    %1655 = vmatpush.bf16.msra.mxu0 %v1441
    %1656 = vmatpush.bf16.msra.mxu0 %v1439
    %1657 = vmatpush.bf16.msra.mxu0 %v1437
    %1658 = vmatpush.bf16.msra.mxu0 %v1435
    %1659 = vmatpush.bf16.msra.mxu0 %v1433
    %1660 = vmatpush.bf16.msra.mxu0 %v1431
    %1661 = vmatpush.bf16.msra.mxu0 %v1429
    %1662 = vmatpush.bf16.msra.mxu0 %v1427
    %1663 = vmatmul.bf16.gmra.mxu0 %v1640
    %v1664 = vpop.f32.mrf.mxu0
    %v1665 = vadd.f32 %v1652, %v1664
    %v1666 = vpop.f32.mrf.mxu0
    %1667 = vdwg.mxu0
    %1668 = vmatpush.bf16.msra.mxu0 %v1426
    %1669 = vmatpush.bf16.msra.mxu0 %v1424
    %1670 = vmatpush.bf16.msra.mxu0 %v1422
    %1671 = vmatpush.bf16.msra.mxu0 %v1420
    %1672 = vmatpush.bf16.msra.mxu0 %v1418
    %1673 = vmatpush.bf16.msra.mxu0 %v1416
    %1674 = vmatpush.bf16.msra.mxu0 %v1414
    %1675 = vmatpush.bf16.msra.mxu0 %v1412
    %1676 = vmatmul.bf16.gmra.mxu0 %v1584
    %v1677 = vpop.f32.mrf.mxu0
    %v1678 = vadd.f32 0.0, %v1677
    %v1679 = vpop.f32.mrf.mxu0
    %1680 = vdwg.mxu0
    %1681 = vmatpush.bf16.msra.mxu0 %v1442
    %1682 = vmatpush.bf16.msra.mxu0 %v1440
    %1683 = vmatpush.bf16.msra.mxu0 %v1438
    %1684 = vmatpush.bf16.msra.mxu0 %v1436
    %1685 = vmatpush.bf16.msra.mxu0 %v1434
    %1686 = vmatpush.bf16.msra.mxu0 %v1432
    %1687 = vmatpush.bf16.msra.mxu0 %v1430
    %1688 = vmatpush.bf16.msra.mxu0 %v1428
    %1689 = vmatmul.bf16.gmra.mxu0 %v1640
    %v1690 = vpop.f32.mrf.mxu0
    %v1691 = vadd.f32 %v1678, %v1690
    %v1692 = vpop.f32.mrf.mxu0
    %1693 = vdwg.mxu0
    %v1694 = vunpack.c.h.b16 %v1306
    %v1695 = vpack.c.b16 %v1694, %v1694
    %1697 = vmatpush.bf16.msra.mxu0 %v1425
    %1698 = vmatpush.bf16.msra.mxu0 %v1423
    %1699 = vmatpush.bf16.msra.mxu0 %v1421
    %1700 = vmatpush.bf16.msra.mxu0 %v1419
    %1701 = vmatpush.bf16.msra.mxu0 %v1417
    %1702 = vmatpush.bf16.msra.mxu0 %v1415
    %1703 = vmatpush.bf16.msra.mxu0 %v1413
    %1704 = vmatpush.bf16.msra.mxu0 %v1411
    %1705 = vmatmul.bf16.gmra.mxu0 %v1640
    %v1706 = vpop.f32.mrf.mxu0
    %v1707 = vadd.f32 0.0, %v1706
    %v1708 = vpop.f32.mrf.mxu0
    %1709 = vdwg.mxu0
    %1710 = vmatpush.bf16.msra.mxu0 %v1441
    %1711 = vmatpush.bf16.msra.mxu0 %v1439
    %1712 = vmatpush.bf16.msra.mxu0 %v1437
    %1713 = vmatpush.bf16.msra.mxu0 %v1435
    %1714 = vmatpush.bf16.msra.mxu0 %v1433
    %1715 = vmatpush.bf16.msra.mxu0 %v1431
    %1716 = vmatpush.bf16.msra.mxu0 %v1429
    %1717 = vmatpush.bf16.msra.mxu0 %v1427
    %1718 = vmatmul.bf16.gmra.mxu0 %v1695
    %v1719 = vpop.f32.mrf.mxu0
    %v1720 = vadd.f32 %v1707, %v1719
    %v1721 = vpop.f32.mrf.mxu0
    %1722 = vdwg.mxu0
    %1723 = vmatpush.bf16.msra.mxu0 %v1426
    %1724 = vmatpush.bf16.msra.mxu0 %v1424
    %1725 = vmatpush.bf16.msra.mxu0 %v1422
    %1726 = vmatpush.bf16.msra.mxu0 %v1420
    %1727 = vmatpush.bf16.msra.mxu0 %v1418
    %1728 = vmatpush.bf16.msra.mxu0 %v1416
    %1729 = vmatpush.bf16.msra.mxu0 %v1414
    %1730 = vmatpush.bf16.msra.mxu0 %v1412
    %1731 = vmatmul.bf16.gmra.mxu0 %v1640
    %v1732 = vpop.f32.mrf.mxu0
    %v1733 = vadd.f32 0.0, %v1732
    %v1734 = vpop.f32.mrf.mxu0
    %1735 = vdwg.mxu0
    %1736 = vmatpush.bf16.msra.mxu0 %v1442
    %1737 = vmatpush.bf16.msra.mxu0 %v1440
    %1738 = vmatpush.bf16.msra.mxu0 %v1438
    %1739 = vmatpush.bf16.msra.mxu0 %v1436
    %1740 = vmatpush.bf16.msra.mxu0 %v1434
    %1741 = vmatpush.bf16.msra.mxu0 %v1432
    %1742 = vmatpush.bf16.msra.mxu0 %v1430
    %1743 = vmatpush.bf16.msra.mxu0 %v1428
    %1744 = vmatmul.bf16.gmra.mxu0 %v1695
    %v1745 = vpop.f32.mrf.mxu0
    %v1746 = vadd.f32 %v1733, %v1745
    %v1747 = vpop.f32.mrf.mxu0
    %1748 = vdwg.mxu0
    %v1750 = vunpack.c.l.b16 %v1307
    %v1751 = vpack.c.b16 %v1750, %v1750
    %1753 = vmatpush.bf16.msra.mxu0 %v1425
    %1754 = vmatpush.bf16.msra.mxu0 %v1423
    %1755 = vmatpush.bf16.msra.mxu0 %v1421
    %1756 = vmatpush.bf16.msra.mxu0 %v1419
    %1757 = vmatpush.bf16.msra.mxu0 %v1417
    %1758 = vmatpush.bf16.msra.mxu0 %v1415
    %1759 = vmatpush.bf16.msra.mxu0 %v1413
    %1760 = vmatpush.bf16.msra.mxu0 %v1411
    %1761 = vmatmul.bf16.gmra.mxu0 %v1695
    %v1762 = vpop.f32.mrf.mxu0
    %v1763 = vadd.f32 0.0, %v1762
    %v1764 = vpop.f32.mrf.mxu0
    %1765 = vdwg.mxu0
    %1766 = vmatpush.bf16.msra.mxu0 %v1441
    %1767 = vmatpush.bf16.msra.mxu0 %v1439
    %1768 = vmatpush.bf16.msra.mxu0 %v1437
    %1769 = vmatpush.bf16.msra.mxu0 %v1435
    %1770 = vmatpush.bf16.msra.mxu0 %v1433
    %1771 = vmatpush.bf16.msra.mxu0 %v1431
    %1772 = vmatpush.bf16.msra.mxu0 %v1429
    %1773 = vmatpush.bf16.msra.mxu0 %v1427
    %1774 = vmatmul.bf16.gmra.mxu0 %v1751
    %v1775 = vpop.f32.mrf.mxu0
    %v1776 = vadd.f32 %v1763, %v1775
    %v1777 = vpop.f32.mrf.mxu0
    %1778 = vdwg.mxu0
    %1779 = vmatpush.bf16.msra.mxu0 %v1426
    %1780 = vmatpush.bf16.msra.mxu0 %v1424
    %1781 = vmatpush.bf16.msra.mxu0 %v1422
    %1782 = vmatpush.bf16.msra.mxu0 %v1420
    %1783 = vmatpush.bf16.msra.mxu0 %v1418
    %1784 = vmatpush.bf16.msra.mxu0 %v1416
    %1785 = vmatpush.bf16.msra.mxu0 %v1414
    %1786 = vmatpush.bf16.msra.mxu0 %v1412
    %1787 = vmatmul.bf16.gmra.mxu0 %v1695
    %v1788 = vpop.f32.mrf.mxu0
    %v1789 = vadd.f32 0.0, %v1788
    %v1790 = vpop.f32.mrf.mxu0
    %1791 = vdwg.mxu0
    %1792 = vmatpush.bf16.msra.mxu0 %v1442
    %1793 = vmatpush.bf16.msra.mxu0 %v1440
    %1794 = vmatpush.bf16.msra.mxu0 %v1438
    %1795 = vmatpush.bf16.msra.mxu0 %v1436
    %1796 = vmatpush.bf16.msra.mxu0 %v1434
    %1797 = vmatpush.bf16.msra.mxu0 %v1432
    %1798 = vmatpush.bf16.msra.mxu0 %v1430
    %1799 = vmatpush.bf16.msra.mxu0 %v1428
    %1800 = vmatmul.bf16.gmra.mxu0 %v1751
    %v1801 = vpop.f32.mrf.mxu0
    %v1802 = vadd.f32 %v1789, %v1801
    %v1803 = vpop.f32.mrf.mxu0
    %1804 = vdwg.mxu0
    %v1805 = vunpack.c.h.b16 %v1307
    %v1806 = vpack.c.b16 %v1805, %v1805
    %1808 = vmatpush.bf16.msra.mxu0 %v1425
    %1809 = vmatpush.bf16.msra.mxu0 %v1423
    %1810 = vmatpush.bf16.msra.mxu0 %v1421
    %1811 = vmatpush.bf16.msra.mxu0 %v1419
    %1812 = vmatpush.bf16.msra.mxu0 %v1417
    %1813 = vmatpush.bf16.msra.mxu0 %v1415
    %1814 = vmatpush.bf16.msra.mxu0 %v1413
    %1815 = vmatpush.bf16.msra.mxu0 %v1411
    %1816 = vmatmul.bf16.gmra.mxu0 %v1751
    %v1817 = vpop.f32.mrf.mxu0
    %v1818 = vadd.f32 0.0, %v1817
    %v1819 = vpop.f32.mrf.mxu0
    %1820 = vdwg.mxu0
    %1821 = vmatpush.bf16.msra.mxu0 %v1441
    %1822 = vmatpush.bf16.msra.mxu0 %v1439
    %1823 = vmatpush.bf16.msra.mxu0 %v1437
    %1824 = vmatpush.bf16.msra.mxu0 %v1435
    %1825 = vmatpush.bf16.msra.mxu0 %v1433
    %1826 = vmatpush.bf16.msra.mxu0 %v1431
    %1827 = vmatpush.bf16.msra.mxu0 %v1429
    %1828 = vmatpush.bf16.msra.mxu0 %v1427
    %1829 = vmatmul.bf16.gmra.mxu0 %v1806
    %v1830 = vpop.f32.mrf.mxu0
    %v1831 = vadd.f32 %v1818, %v1830
    %v1832 = vpop.f32.mrf.mxu0
    %1833 = vdwg.mxu0
    %1834 = vmatpush.bf16.msra.mxu0 %v1426
    %1835 = vmatpush.bf16.msra.mxu0 %v1424
    %1836 = vmatpush.bf16.msra.mxu0 %v1422
    %1837 = vmatpush.bf16.msra.mxu0 %v1420
    %1838 = vmatpush.bf16.msra.mxu0 %v1418
    %1839 = vmatpush.bf16.msra.mxu0 %v1416
    %1840 = vmatpush.bf16.msra.mxu0 %v1414
    %1841 = vmatpush.bf16.msra.mxu0 %v1412
    %1842 = vmatmul.bf16.gmra.mxu0 %v1751
    %v1843 = vpop.f32.mrf.mxu0
    %v1844 = vadd.f32 0.0, %v1843
    %v1845 = vpop.f32.mrf.mxu0
    %1846 = vdwg.mxu0
    %1847 = vmatpush.bf16.msra.mxu0 %v1442
    %1848 = vmatpush.bf16.msra.mxu0 %v1440
    %1849 = vmatpush.bf16.msra.mxu0 %v1438
    %1850 = vmatpush.bf16.msra.mxu0 %v1436
    %1851 = vmatpush.bf16.msra.mxu0 %v1434
    %1852 = vmatpush.bf16.msra.mxu0 %v1432
    %1853 = vmatpush.bf16.msra.mxu0 %v1430
    %1854 = vmatpush.bf16.msra.mxu0 %v1428
    %1855 = vmatmul.bf16.gmra.mxu0 %v1806
    %v1856 = vpop.f32.mrf.mxu0
    %v1857 = vadd.f32 %v1844, %v1856
    %v1858 = vpop.f32.mrf.mxu0
    %1859 = vdwg.mxu0
    %v1862 = vperm.slane %v422, 0
    %v1863 = vperm.slane %v422, 1
    %v1864 = vperm.slane %v422, 2
    %v1865 = vperm.slane %v422, 3
    %v1866 = vperm.slane %v422, 4
    %v1867 = vperm.slane %v422, 5
    %v1868 = vperm.slane %v422, 6
    %v1869 = vperm.slane %v422, 7
    %v1870 = vperm.slane %v423, 0
    %v1871 = vperm.slane %v423, 1
    %v1872 = vperm.slane %v423, 2
    %v1873 = vperm.slane %v423, 3
    %v1874 = vperm.slane %v423, 4
    %v1875 = vperm.slane %v423, 5
    %v1890 = vadd.f32 %v1498, %v1862
    %v1891 = vadd.f32 %v1524, %v1863
    %v1892 = vadd.f32 %v1554, %v1864
    %v1893 = vadd.f32 %v1580, %v1865
    %v1894 = vadd.f32 %v1609, %v1866
    %v1895 = vadd.f32 %v1635, %v1867
    %v1896 = vadd.f32 %v1665, %v1868
    %v1897 = vadd.f32 %v1691, %v1869
    %v1898 = vadd.f32 %v1720, %v1870
    %v1899 = vadd.f32 %v1746, %v1871
    %v1900 = vadd.f32 %v1776, %v1872
    %v1901 = vadd.f32 %v1802, %v1873
    %v1902 = vadd.f32 %v1831, %v1874
    %v1903 = vadd.f32 %v1857, %v1875
    %v1904 = vmax.f32 %v1890, 0.0
    %v1905 = vmax.f32 %v1891, 0.0
    %v1906 = vmax.f32 %v1892, 0.0
    %v1907 = vmax.f32 %v1893, 0.0
    %v1908 = vmax.f32 %v1894, 0.0
    %v1909 = vmax.f32 %v1895, 0.0
    %v1910 = vmax.f32 %v1896, 0.0
    %v1911 = vmax.f32 %v1897, 0.0
    %v1912 = vmax.f32 %v1898, 0.0
    %v1913 = vmax.f32 %v1899, 0.0
    %v1914 = vmax.f32 %v1900, 0.0
    %v1915 = vmax.f32 %v1901, 0.0
    %v1916 = vmax.f32 %v1902, 0.0
    %v1917 = vmax.f32 %v1903, 0.0
    %v1918 = vpack.c.bf16 %v1904, %v1904
    %v1919 = vpack.c.bf16 %v1905, %v1905
    %v1920 = vpack.c.bf16 %v1906, %v1906
    %v1921 = vpack.c.bf16 %v1907, %v1907
    %v1922 = vpack.c.bf16 %v1908, %v1908
    %v1923 = vpack.c.bf16 %v1909, %v1909
    %v1924 = vpack.c.bf16 %v1910, %v1910
    %v1925 = vpack.c.bf16 %v1911, %v1911
    %v1926 = vpack.c.bf16 %v1912, %v1912
    %v1927 = vpack.c.bf16 %v1913, %v1913
    %v1928 = vpack.c.bf16 %v1914, %v1914
    %v1929 = vpack.c.bf16 %v1915, %v1915
    %v1930 = vpack.c.bf16 %v1916, %v1916
    %v1931 = vpack.c.bf16 %v1917, %v1917
    %v1932 = vld [vmem:[%s1] sm:$0xff]
    %v1933 = vld [vmem:[#allocation7] sm:$0xff]
    %v1934 = vld [vmem:[#allocation7 + $0x8] sm:$0xff]
    %v1935 = vld [vmem:[#allocation7 + $0x10] sm:$0xff]
    %v1936 = vld [vmem:[#allocation7 + $0x18] sm:$0xff]
    %v1937 = vld [vmem:[#allocation7 + $0x20] sm:$0xff]
    %v1938 = vld [vmem:[#allocation7 + $0x28] sm:$0xff]
    %v1939 = vld [vmem:[#allocation7 + $0x30] sm:$0xff]
    %v1940 = vld [vmem:[#allocation7 + $0x38] sm:$0xff]
    %v1941 = vld [vmem:[#allocation7 + $0x40] sm:$0xff]
    %v1942 = vld [vmem:[#allocation7 + $0x48] sm:$0xff]
    %v1943 = vld [vmem:[#allocation7 + $0x50] sm:$0xff]
    %v1944 = vld [vmem:[#allocation7 + $0x58] sm:$0xff]
    %v1945 = vld [vmem:[#allocation7 + $0x60] sm:$0xff]
    %v1946 = vld [vmem:[#allocation7 + $0x68] sm:$0xff]
    %v1947 = vld [vmem:[#allocation7 + $0x70] sm:$0xff]
    %v1948 = vld [vmem:[#allocation7 + $0x78] sm:$0xff]
    %v1949 = vld [vmem:[#allocation7 + $0x80] sm:$0xff]
    %v1950 = vld [vmem:[#allocation7 + $0x88] sm:$0xff]
    %v1951 = vld [vmem:[#allocation7 + $0x90] sm:$0xff]
    %v1952 = vld [vmem:[#allocation7 + $0x98] sm:$0xff]
    %v1953 = vld [vmem:[#allocation7 + $0xa0] sm:$0xff]
    %v1954 = vld [vmem:[#allocation7 + $0xa8] sm:$0xff]
    %v1955 = vld [vmem:[#allocation7 + $0xb0] sm:$0xff]
    %v1956 = vld [vmem:[#allocation7 + $0xb8] sm:$0xff]
    %v1957 = vld [vmem:[#allocation7 + $0xc0] sm:$0xff]
    %v1958 = vld [vmem:[#allocation7 + $0xc8] sm:$0xff]
    %v1959 = vld [vmem:[#allocation7 + $0xd0] sm:$0xff]
    %v1960 = vld [vmem:[#allocation7 + $0xd8] sm:$0xff]
    %v1961 = vld [vmem:[#allocation7 + $0xe0] sm:$0xff]
    %v1962 = vld [vmem:[#allocation7 + $0xe8] sm:$0xff]
    %v1963 = vld [vmem:[#allocation7 + $0xf0] sm:$0xff]
    %v1964 = vld [vmem:[#allocation7 + $0xf8] sm:$0xff]
    %v1965 = vld [vmem:[#allocation7 + $0x100] sm:$0xff]
    %v1966 = vld [vmem:[#allocation7 + $0x108] sm:$0xff]
    %v1967 = vld [vmem:[#allocation7 + $0x110] sm:$0xff]
    %v1968 = vld [vmem:[#allocation7 + $0x118] sm:$0xff]
    %v1969 = vld [vmem:[#allocation7 + $0x120] sm:$0xff]
    %v1970 = vld [vmem:[#allocation7 + $0x128] sm:$0xff]
    %v1971 = vld [vmem:[#allocation7 + $0x130] sm:$0xff]
    %v1972 = vld [vmem:[#allocation7 + $0x138] sm:$0xff]
    %v1973 = vld [vmem:[#allocation7 + $0x140] sm:$0xff]
    %v1974 = vld [vmem:[#allocation7 + $0x148] sm:$0xff]
    %v1975 = vld [vmem:[#allocation7 + $0x150] sm:$0xff]
    %v1976 = vld [vmem:[#allocation7 + $0x158] sm:$0xff]
    %v1977 = vld [vmem:[#allocation7 + $0x160] sm:$0xff]
    %v1978 = vld [vmem:[#allocation7 + $0x168] sm:$0xff]
    %v1979 = vld [vmem:[#allocation7 + $0x170] sm:$0xff]
    %v1980 = vld [vmem:[#allocation7 + $0x178] sm:$0xff]
    %v1981 = vld [vmem:[#allocation7 + $0x180] sm:$0xff]
    %v1982 = vld [vmem:[#allocation7 + $0x188] sm:$0xff]
    %v1983 = vld [vmem:[#allocation7 + $0x190] sm:$0xff]
    %v1984 = vld [vmem:[#allocation7 + $0x198] sm:$0xff]
    %v1985 = vld [vmem:[#allocation7 + $0x1a0] sm:$0xff]
    %v1986 = vld [vmem:[#allocation7 + $0x1a8] sm:$0xff]
    %v1987 = vld [vmem:[#allocation7 + $0x1b0] sm:$0xff]
    %v1988 = vld [vmem:[#allocation7 + $0x1b8] sm:$0xff]
    %v1989 = vld [vmem:[#allocation7 + $0x1c0] sm:$0xff]
    %v1990 = vld [vmem:[#allocation7 + $0x1c8] sm:$0xff]
    %v1991 = vld [vmem:[#allocation7 + $0x1d0] sm:$0xff]
    %v1992 = vld [vmem:[#allocation7 + $0x1d8] sm:$0xff]
    %v1993 = vld [vmem:[#allocation7 + $0x1e0] sm:$0xff]
    %v1994 = vld [vmem:[#allocation7 + $0x1e8] sm:$0xff]
    %v1995 = vld [vmem:[#allocation7 + $0x1f0] sm:$0xff]
    %v1996 = vld [vmem:[#allocation7 + $0x1f8] sm:$0xff]
    %v1997 = vld [vmem:[#allocation7 + $0x200] sm:$0xff]
    %v1998 = vld [vmem:[#allocation7 + $0x208] sm:$0xff]
    %v1999 = vld [vmem:[#allocation7 + $0x210] sm:$0xff]
    %v2000 = vld [vmem:[#allocation7 + $0x218] sm:$0xff]
    %v2001 = vld [vmem:[#allocation7 + $0x220] sm:$0xff]
    %v2002 = vld [vmem:[#allocation7 + $0x228] sm:$0xff]
    %v2003 = vld [vmem:[#allocation7 + $0x230] sm:$0xff]
    %v2004 = vld [vmem:[#allocation7 + $0x238] sm:$0xff]
    %v2005 = vld [vmem:[#allocation7 + $0x240] sm:$0xff]
    %v2006 = vld [vmem:[#allocation7 + $0x248] sm:$0xff]
    %v2007 = vld [vmem:[#allocation7 + $0x250] sm:$0xff]
    %v2008 = vld [vmem:[#allocation7 + $0x258] sm:$0xff]
    %v2009 = vld [vmem:[#allocation7 + $0x260] sm:$0xff]
    %v2010 = vld [vmem:[#allocation7 + $0x268] sm:$0xff]
    %v2011 = vld [vmem:[#allocation7 + $0x270] sm:$0xff]
    %v2012 = vld [vmem:[#allocation7 + $0x278] sm:$0xff]
    %v2013 = vld [vmem:[#allocation7 + $0x280] sm:$0xff]
    %v2014 = vld [vmem:[#allocation7 + $0x288] sm:$0xff]
    %v2015 = vld [vmem:[#allocation7 + $0x290] sm:$0xff]
    %v2016 = vld [vmem:[#allocation7 + $0x298] sm:$0xff]
    %v2017 = vld [vmem:[#allocation7 + $0x2a0] sm:$0xff]
    %v2018 = vld [vmem:[#allocation7 + $0x2a8] sm:$0xff]
    %v2019 = vld [vmem:[#allocation7 + $0x2b0] sm:$0xff]
    %v2020 = vld [vmem:[#allocation7 + $0x2b8] sm:$0xff]
    %v2021 = vld [vmem:[#allocation7 + $0x2c0] sm:$0xff]
    %v2022 = vld [vmem:[#allocation7 + $0x2c8] sm:$0xff]
    %v2023 = vld [vmem:[#allocation7 + $0x2d0] sm:$0xff]
    %v2024 = vld [vmem:[#allocation7 + $0x2d8] sm:$0xff]
    %v2025 = vld [vmem:[#allocation7 + $0x2e0] sm:$0xff]
    %v2026 = vld [vmem:[#allocation7 + $0x2e8] sm:$0xff]
    %v2027 = vld [vmem:[#allocation7 + $0x2f0] sm:$0xff]
    %v2028 = vld [vmem:[#allocation7 + $0x2f8] sm:$0xff]
    %v2029 = vld [vmem:[#allocation7 + $0x300] sm:$0xff]
    %v2030 = vld [vmem:[#allocation7 + $0x308] sm:$0xff]
    %v2031 = vld [vmem:[#allocation7 + $0x310] sm:$0xff]
    %v2032 = vld [vmem:[#allocation7 + $0x318] sm:$0xff]
    %v2033 = vld [vmem:[#allocation7 + $0x320] sm:$0xff]
    %v2034 = vld [vmem:[#allocation7 + $0x328] sm:$0xff]
    %v2035 = vld [vmem:[#allocation7 + $0x330] sm:$0xff]
    %v2036 = vld [vmem:[#allocation7 + $0x338] sm:$0xff]
    %v2037 = vld [vmem:[#allocation7 + $0x340] sm:$0xff]
    %v2038 = vld [vmem:[#allocation7 + $0x348] sm:$0xff]
    %v2039 = vld [vmem:[#allocation7 + $0x350] sm:$0xff]
    %v2040 = vld [vmem:[#allocation7 + $0x358] sm:$0xff]
    %v2041 = vld [vmem:[#allocation7 + $0x360] sm:$0xff]
    %v2042 = vld [vmem:[#allocation7 + $0x368] sm:$0xff]
    %v2043 = vld [vmem:[#allocation7 + $0x370] sm:$0xff]
    %v2044 = vld [vmem:[#allocation7 + $0x378] sm:$0xff]
    %v2045 = vld [vmem:[#allocation7 + $0x380] sm:$0xff]
    %v2046 = vld [vmem:[#allocation7 + $0x388] sm:$0xff]
    %v2047 = vld [vmem:[#allocation7 + $0x390] sm:$0xff]
    %v2048 = vld [vmem:[#allocation7 + $0x398] sm:$0xff]
    %v2049 = vld [vmem:[#allocation7 + $0x3a0] sm:$0xff]
    %v2050 = vld [vmem:[#allocation7 + $0x3a8] sm:$0xff]
    %v2051 = vld [vmem:[#allocation7 + $0x3b0] sm:$0xff]
    %v2052 = vld [vmem:[#allocation7 + $0x3b8] sm:$0xff]
    %v2053 = vld [vmem:[#allocation7 + $0x3c0] sm:$0xff]
    %v2054 = vld [vmem:[#allocation7 + $0x3c8] sm:$0xff]
    %v2055 = vld [vmem:[#allocation7 + $0x3d0] sm:$0xff]
    %v2056 = vld [vmem:[#allocation7 + $0x3d8] sm:$0xff]
    %v2057 = vld [vmem:[#allocation7 + $0x3e0] sm:$0xff]
    %v2058 = vld [vmem:[#allocation7 + $0x3e8] sm:$0xff]
    %v2059 = vld [vmem:[#allocation7 + $0x3f0] sm:$0xff]
    %v2060 = vld [vmem:[#allocation7 + $0x3f8] sm:$0xff]
    %v2061 = vld [vmem:[#allocation9] sm:$0xff]
    %v2062 = vld [vmem:[#allocation10] sm:$0xff]
    %v2063 = vld [vmem:[#allocation10 + $0x8] sm:$0xff]
    %v2064 = vld [vmem:[#allocation10 + $0x10] sm:$0xff]
    %v2065 = vld [vmem:[#allocation10 + $0x18] sm:$0xff]
    %v2066 = vld [vmem:[#allocation10 + $0x20] sm:$0xff]
    %v2067 = vld [vmem:[#allocation10 + $0x28] sm:$0xff]
    %v2068 = vld [vmem:[#allocation10 + $0x30] sm:$0xff]
    %v2069 = vld [vmem:[#allocation10 + $0x38] sm:$0xff]
    %v2070 = vld [vmem:[#allocation10 + $0x40] sm:$0xff]
    %v2071 = vld [vmem:[#allocation10 + $0x48] sm:$0xff]
    %v2072 = vld [vmem:[#allocation10 + $0x50] sm:$0xff]
    %v2073 = vld [vmem:[#allocation10 + $0x58] sm:$0xff]
    %v2074 = vld [vmem:[#allocation10 + $0x60] sm:$0xff]
    %v2075 = vld [vmem:[#allocation10 + $0x68] sm:$0xff]
    %v2076 = vld [vmem:[#allocation10 + $0x70] sm:$0xff]
    %v2077 = vld [vmem:[#allocation10 + $0x78] sm:$0xff]
    %v2078 = vld [vmem:[#allocation10 + $0x80] sm:$0xff]
    %v2079 = vld [vmem:[#allocation10 + $0x88] sm:$0xff]
    %v2080 = vld [vmem:[#allocation10 + $0x90] sm:$0xff]
    %v2081 = vld [vmem:[#allocation10 + $0x98] sm:$0xff]
    %v2082 = vld [vmem:[#allocation10 + $0xa0] sm:$0xff]
    %v2083 = vld [vmem:[#allocation10 + $0xa8] sm:$0xff]
    %v2084 = vld [vmem:[#allocation10 + $0xb0] sm:$0xff]
    %v2085 = vld [vmem:[#allocation10 + $0xb8] sm:$0xff]
    %v2086 = vld [vmem:[#allocation10 + $0xc0] sm:$0xff]
    %v2087 = vld [vmem:[#allocation10 + $0xc8] sm:$0xff]
    %v2088 = vld [vmem:[#allocation10 + $0xd0] sm:$0xff]
    %v2089 = vld [vmem:[#allocation10 + $0xd8] sm:$0xff]
    %v2090 = vld [vmem:[#allocation10 + $0xe0] sm:$0xff]
    %v2091 = vld [vmem:[#allocation10 + $0xe8] sm:$0xff]
    %v2092 = vld [vmem:[#allocation10 + $0xf0] sm:$0xff]
    %v2093 = vld [vmem:[#allocation10 + $0xf8] sm:$0xff]
    %v2094 = vld [vmem:[#allocation12] sm:$0xff]
    %v2095 = vld [vmem:[#allocation12 + $0x8] sm:$0x3f]
    %v2097 = vperm.slane %v2061, 0
    %v2098 = vperm.slane %v2061, 1
    %v2099 = vperm.slane %v2061, 2
    %v2100 = vperm.slane %v2061, 3
    %v2101 = vperm.slane %v2061, 4
    %v2102 = vperm.slane %v2061, 5
    %v2103 = vperm.slane %v2061, 6
    %v2104 = vperm.slane %v2061, 7
    %v2114 = vunpack.c.l.b16 %v1932
    %v2115 = vunpack.c.h.b16 %v1932
    %v2116 = vpack.c.b16 %v2114, %v2114
    %v2117 = vpack.c.b16 %v2115, %v2115
    %v2248 = vunpack.c.l.b16 %v1933
    %v2249 = vunpack.c.h.b16 %v1933
    %v2250 = vunpack.c.l.b16 %v1934
    %v2251 = vunpack.c.h.b16 %v1934
    %v2252 = vunpack.c.l.b16 %v1935
    %v2253 = vunpack.c.h.b16 %v1935
    %v2254 = vunpack.c.l.b16 %v1936
    %v2255 = vunpack.c.h.b16 %v1936
    %v2256 = vunpack.c.l.b16 %v1937
    %v2257 = vunpack.c.h.b16 %v1937
    %v2258 = vunpack.c.l.b16 %v1938
    %v2259 = vunpack.c.h.b16 %v1938
    %v2260 = vunpack.c.l.b16 %v1939
    %v2261 = vunpack.c.h.b16 %v1939
    %v2262 = vunpack.c.l.b16 %v1940
    %v2263 = vunpack.c.h.b16 %v1940
    %v2264 = vunpack.c.l.b16 %v1941
    %v2265 = vunpack.c.h.b16 %v1941
    %v2266 = vunpack.c.l.b16 %v1942
    %v2267 = vunpack.c.h.b16 %v1942
    %v2268 = vunpack.c.l.b16 %v1943
    %v2269 = vunpack.c.h.b16 %v1943
    %v2270 = vunpack.c.l.b16 %v1944
    %v2271 = vunpack.c.h.b16 %v1944
    %v2272 = vunpack.c.l.b16 %v1945
    %v2273 = vunpack.c.h.b16 %v1945
    %v2274 = vunpack.c.l.b16 %v1946
    %v2275 = vunpack.c.h.b16 %v1946
    %v2276 = vunpack.c.l.b16 %v1947
    %v2277 = vunpack.c.h.b16 %v1947
    %v2278 = vunpack.c.l.b16 %v1948
    %v2279 = vunpack.c.h.b16 %v1948
    %v2280 = vunpack.c.l.b16 %v1949
    %v2281 = vunpack.c.h.b16 %v1949
    %v2282 = vunpack.c.l.b16 %v1950
    %v2283 = vunpack.c.h.b16 %v1950
    %v2284 = vunpack.c.l.b16 %v1951
    %v2285 = vunpack.c.h.b16 %v1951
    %v2286 = vunpack.c.l.b16 %v1952
    %v2287 = vunpack.c.h.b16 %v1952
    %v2288 = vunpack.c.l.b16 %v1953
    %v2289 = vunpack.c.h.b16 %v1953
    %v2290 = vunpack.c.l.b16 %v1954
    %v2291 = vunpack.c.h.b16 %v1954
    %v2292 = vunpack.c.l.b16 %v1955
    %v2293 = vunpack.c.h.b16 %v1955
    %v2294 = vunpack.c.l.b16 %v1956
    %v2295 = vunpack.c.h.b16 %v1956
    %v2296 = vunpack.c.l.b16 %v1957
    %v2297 = vunpack.c.h.b16 %v1957
    %v2298 = vunpack.c.l.b16 %v1958
    %v2299 = vunpack.c.h.b16 %v1958
    %v2300 = vunpack.c.l.b16 %v1959
    %v2301 = vunpack.c.h.b16 %v1959
    %v2302 = vunpack.c.l.b16 %v1960
    %v2303 = vunpack.c.h.b16 %v1960
    %v2304 = vunpack.c.l.b16 %v1961
    %v2305 = vunpack.c.h.b16 %v1961
    %v2306 = vunpack.c.l.b16 %v1962
    %v2307 = vunpack.c.h.b16 %v1962
    %v2308 = vunpack.c.l.b16 %v1963
    %v2309 = vunpack.c.h.b16 %v1963
    %v2310 = vunpack.c.l.b16 %v1964
    %v2311 = vunpack.c.h.b16 %v1964
    %v2312 = vunpack.c.l.b16 %v1965
    %v2313 = vunpack.c.h.b16 %v1965
    %v2314 = vunpack.c.l.b16 %v1966
    %v2315 = vunpack.c.h.b16 %v1966
    %v2316 = vunpack.c.l.b16 %v1967
    %v2317 = vunpack.c.h.b16 %v1967
    %v2318 = vunpack.c.l.b16 %v1968
    %v2319 = vunpack.c.h.b16 %v1968
    %v2320 = vunpack.c.l.b16 %v1969
    %v2321 = vunpack.c.h.b16 %v1969
    %v2322 = vunpack.c.l.b16 %v1970
    %v2323 = vunpack.c.h.b16 %v1970
    %v2324 = vunpack.c.l.b16 %v1971
    %v2325 = vunpack.c.h.b16 %v1971
    %v2326 = vunpack.c.l.b16 %v1972
    %v2327 = vunpack.c.h.b16 %v1972
    %v2328 = vunpack.c.l.b16 %v1973
    %v2329 = vunpack.c.h.b16 %v1973
    %v2330 = vunpack.c.l.b16 %v1974
    %v2331 = vunpack.c.h.b16 %v1974
    %v2332 = vunpack.c.l.b16 %v1975
    %v2333 = vunpack.c.h.b16 %v1975
    %v2334 = vunpack.c.l.b16 %v1976
    %v2335 = vunpack.c.h.b16 %v1976
    %v2336 = vunpack.c.l.b16 %v1977
    %v2337 = vunpack.c.h.b16 %v1977
    %v2338 = vunpack.c.l.b16 %v1978
    %v2339 = vunpack.c.h.b16 %v1978
    %v2340 = vunpack.c.l.b16 %v1979
    %v2341 = vunpack.c.h.b16 %v1979
    %v2342 = vunpack.c.l.b16 %v1980
    %v2343 = vunpack.c.h.b16 %v1980
    %v2344 = vunpack.c.l.b16 %v1981
    %v2345 = vunpack.c.h.b16 %v1981
    %v2346 = vunpack.c.l.b16 %v1982
    %v2347 = vunpack.c.h.b16 %v1982
    %v2348 = vunpack.c.l.b16 %v1983
    %v2349 = vunpack.c.h.b16 %v1983
    %v2350 = vunpack.c.l.b16 %v1984
    %v2351 = vunpack.c.h.b16 %v1984
    %v2352 = vunpack.c.l.b16 %v1985
    %v2353 = vunpack.c.h.b16 %v1985
    %v2354 = vunpack.c.l.b16 %v1986
    %v2355 = vunpack.c.h.b16 %v1986
    %v2356 = vunpack.c.l.b16 %v1987
    %v2357 = vunpack.c.h.b16 %v1987
    %v2358 = vunpack.c.l.b16 %v1988
    %v2359 = vunpack.c.h.b16 %v1988
    %v2360 = vunpack.c.l.b16 %v1989
    %v2361 = vunpack.c.h.b16 %v1989
    %v2362 = vunpack.c.l.b16 %v1990
    %v2363 = vunpack.c.h.b16 %v1990
    %v2364 = vunpack.c.l.b16 %v1991
    %v2365 = vunpack.c.h.b16 %v1991
    %v2366 = vunpack.c.l.b16 %v1992
    %v2367 = vunpack.c.h.b16 %v1992
    %v2368 = vunpack.c.l.b16 %v1993
    %v2369 = vunpack.c.h.b16 %v1993
    %v2370 = vunpack.c.l.b16 %v1994
    %v2371 = vunpack.c.h.b16 %v1994
    %v2372 = vunpack.c.l.b16 %v1995
    %v2373 = vunpack.c.h.b16 %v1995
    %v2374 = vunpack.c.l.b16 %v1996
    %v2375 = vunpack.c.h.b16 %v1996
    %v2376 = vunpack.c.l.b16 %v1997
    %v2377 = vunpack.c.h.b16 %v1997
    %v2378 = vunpack.c.l.b16 %v1998
    %v2379 = vunpack.c.h.b16 %v1998
    %v2380 = vunpack.c.l.b16 %v1999
    %v2381 = vunpack.c.h.b16 %v1999
    %v2382 = vunpack.c.l.b16 %v2000
    %v2383 = vunpack.c.h.b16 %v2000
    %v2384 = vunpack.c.l.b16 %v2001
    %v2385 = vunpack.c.h.b16 %v2001
    %v2386 = vunpack.c.l.b16 %v2002
    %v2387 = vunpack.c.h.b16 %v2002
    %v2388 = vunpack.c.l.b16 %v2003
    %v2389 = vunpack.c.h.b16 %v2003
    %v2390 = vunpack.c.l.b16 %v2004
    %v2391 = vunpack.c.h.b16 %v2004
    %v2392 = vunpack.c.l.b16 %v2005
    %v2393 = vunpack.c.h.b16 %v2005
    %v2394 = vunpack.c.l.b16 %v2006
    %v2395 = vunpack.c.h.b16 %v2006
    %v2396 = vunpack.c.l.b16 %v2007
    %v2397 = vunpack.c.h.b16 %v2007
    %v2398 = vunpack.c.l.b16 %v2008
    %v2399 = vunpack.c.h.b16 %v2008
    %v2400 = vunpack.c.l.b16 %v2009
    %v2401 = vunpack.c.h.b16 %v2009
    %v2402 = vunpack.c.l.b16 %v2010
    %v2403 = vunpack.c.h.b16 %v2010
    %v2404 = vunpack.c.l.b16 %v2011
    %v2405 = vunpack.c.h.b16 %v2011
    %v2406 = vunpack.c.l.b16 %v2012
    %v2407 = vunpack.c.h.b16 %v2012
    %v2408 = vunpack.c.l.b16 %v2013
    %v2409 = vunpack.c.h.b16 %v2013
    %v2410 = vunpack.c.l.b16 %v2014
    %v2411 = vunpack.c.h.b16 %v2014
    %v2412 = vunpack.c.l.b16 %v2015
    %v2413 = vunpack.c.h.b16 %v2015
    %v2414 = vunpack.c.l.b16 %v2016
    %v2415 = vunpack.c.h.b16 %v2016
    %v2416 = vunpack.c.l.b16 %v2017
    %v2417 = vunpack.c.h.b16 %v2017
    %v2418 = vunpack.c.l.b16 %v2018
    %v2419 = vunpack.c.h.b16 %v2018
    %v2420 = vunpack.c.l.b16 %v2019
    %v2421 = vunpack.c.h.b16 %v2019
    %v2422 = vunpack.c.l.b16 %v2020
    %v2423 = vunpack.c.h.b16 %v2020
    %v2424 = vunpack.c.l.b16 %v2021
    %v2425 = vunpack.c.h.b16 %v2021
    %v2426 = vunpack.c.l.b16 %v2022
    %v2427 = vunpack.c.h.b16 %v2022
    %v2428 = vunpack.c.l.b16 %v2023
    %v2429 = vunpack.c.h.b16 %v2023
    %v2430 = vunpack.c.l.b16 %v2024
    %v2431 = vunpack.c.h.b16 %v2024
    %v2432 = vunpack.c.l.b16 %v2025
    %v2433 = vunpack.c.h.b16 %v2025
    %v2434 = vunpack.c.l.b16 %v2026
    %v2435 = vunpack.c.h.b16 %v2026
    %v2436 = vunpack.c.l.b16 %v2027
    %v2437 = vunpack.c.h.b16 %v2027
    %v2438 = vunpack.c.l.b16 %v2028
    %v2439 = vunpack.c.h.b16 %v2028
    %v2440 = vunpack.c.l.b16 %v2029
    %v2441 = vunpack.c.h.b16 %v2029
    %v2442 = vunpack.c.l.b16 %v2030
    %v2443 = vunpack.c.h.b16 %v2030
    %v2444 = vunpack.c.l.b16 %v2031
    %v2445 = vunpack.c.h.b16 %v2031
    %v2446 = vunpack.c.l.b16 %v2032
    %v2447 = vunpack.c.h.b16 %v2032
    %v2448 = vunpack.c.l.b16 %v2033
    %v2449 = vunpack.c.h.b16 %v2033
    %v2450 = vunpack.c.l.b16 %v2034
    %v2451 = vunpack.c.h.b16 %v2034
    %v2452 = vunpack.c.l.b16 %v2035
    %v2453 = vunpack.c.h.b16 %v2035
    %v2454 = vunpack.c.l.b16 %v2036
    %v2455 = vunpack.c.h.b16 %v2036
    %v2456 = vunpack.c.l.b16 %v2037
    %v2457 = vunpack.c.h.b16 %v2037
    %v2458 = vunpack.c.l.b16 %v2038
    %v2459 = vunpack.c.h.b16 %v2038
    %v2460 = vunpack.c.l.b16 %v2039
    %v2461 = vunpack.c.h.b16 %v2039
    %v2462 = vunpack.c.l.b16 %v2040
    %v2463 = vunpack.c.h.b16 %v2040
    %v2464 = vunpack.c.l.b16 %v2041
    %v2465 = vunpack.c.h.b16 %v2041
    %v2466 = vunpack.c.l.b16 %v2042
    %v2467 = vunpack.c.h.b16 %v2042
    %v2468 = vunpack.c.l.b16 %v2043
    %v2469 = vunpack.c.h.b16 %v2043
    %v2470 = vunpack.c.l.b16 %v2044
    %v2471 = vunpack.c.h.b16 %v2044
    %v2472 = vunpack.c.l.b16 %v2045
    %v2473 = vunpack.c.h.b16 %v2045
    %v2474 = vunpack.c.l.b16 %v2046
    %v2475 = vunpack.c.h.b16 %v2046
    %v2476 = vunpack.c.l.b16 %v2047
    %v2477 = vunpack.c.h.b16 %v2047
    %v2478 = vunpack.c.l.b16 %v2048
    %v2479 = vunpack.c.h.b16 %v2048
    %v2480 = vunpack.c.l.b16 %v2049
    %v2481 = vunpack.c.h.b16 %v2049
    %v2482 = vunpack.c.l.b16 %v2050
    %v2483 = vunpack.c.h.b16 %v2050
    %v2484 = vunpack.c.l.b16 %v2051
    %v2485 = vunpack.c.h.b16 %v2051
    %v2486 = vunpack.c.l.b16 %v2052
    %v2487 = vunpack.c.h.b16 %v2052
    %v2488 = vunpack.c.l.b16 %v2053
    %v2489 = vunpack.c.h.b16 %v2053
    %v2490 = vunpack.c.l.b16 %v2054
    %v2491 = vunpack.c.h.b16 %v2054
    %v2492 = vunpack.c.l.b16 %v2055
    %v2493 = vunpack.c.h.b16 %v2055
    %v2494 = vunpack.c.l.b16 %v2056
    %v2495 = vunpack.c.h.b16 %v2056
    %v2496 = vunpack.c.l.b16 %v2057
    %v2497 = vunpack.c.h.b16 %v2057
    %v2498 = vunpack.c.l.b16 %v2058
    %v2499 = vunpack.c.h.b16 %v2058
    %v2500 = vunpack.c.l.b16 %v2059
    %v2501 = vunpack.c.h.b16 %v2059
    %v2502 = vunpack.c.l.b16 %v2060
    %v2503 = vunpack.c.h.b16 %v2060
    %v2504 = vpack.c.b16 %v2256, %v2248
    %v2505 = vpack.c.b16 %v2257, %v2249
    %v2506 = vpack.c.b16 %v2258, %v2250
    %v2507 = vpack.c.b16 %v2259, %v2251
    %v2508 = vpack.c.b16 %v2260, %v2252
    %v2509 = vpack.c.b16 %v2261, %v2253
    %v2510 = vpack.c.b16 %v2262, %v2254
    %v2511 = vpack.c.b16 %v2263, %v2255
    %v2512 = vpack.c.b16 %v2272, %v2264
    %v2513 = vpack.c.b16 %v2273, %v2265
    %v2514 = vpack.c.b16 %v2274, %v2266
    %v2515 = vpack.c.b16 %v2275, %v2267
    %v2516 = vpack.c.b16 %v2276, %v2268
    %v2517 = vpack.c.b16 %v2277, %v2269
    %v2518 = vpack.c.b16 %v2278, %v2270
    %v2519 = vpack.c.b16 %v2279, %v2271
    %v2520 = vpack.c.b16 %v2288, %v2280
    %v2521 = vpack.c.b16 %v2289, %v2281
    %v2522 = vpack.c.b16 %v2290, %v2282
    %v2523 = vpack.c.b16 %v2291, %v2283
    %v2524 = vpack.c.b16 %v2292, %v2284
    %v2525 = vpack.c.b16 %v2293, %v2285
    %v2526 = vpack.c.b16 %v2294, %v2286
    %v2527 = vpack.c.b16 %v2295, %v2287
    %v2528 = vpack.c.b16 %v2304, %v2296
    %v2529 = vpack.c.b16 %v2305, %v2297
    %v2530 = vpack.c.b16 %v2306, %v2298
    %v2531 = vpack.c.b16 %v2307, %v2299
    %v2532 = vpack.c.b16 %v2308, %v2300
    %v2533 = vpack.c.b16 %v2309, %v2301
    %v2534 = vpack.c.b16 %v2310, %v2302
    %v2535 = vpack.c.b16 %v2311, %v2303
    %v2536 = vpack.c.b16 %v2320, %v2312
    %v2537 = vpack.c.b16 %v2321, %v2313
    %v2538 = vpack.c.b16 %v2322, %v2314
    %v2539 = vpack.c.b16 %v2323, %v2315
    %v2540 = vpack.c.b16 %v2324, %v2316
    %v2541 = vpack.c.b16 %v2325, %v2317
    %v2542 = vpack.c.b16 %v2326, %v2318
    %v2543 = vpack.c.b16 %v2327, %v2319
    %v2544 = vpack.c.b16 %v2336, %v2328
    %v2545 = vpack.c.b16 %v2337, %v2329
    %v2546 = vpack.c.b16 %v2338, %v2330
    %v2547 = vpack.c.b16 %v2339, %v2331
    %v2548 = vpack.c.b16 %v2340, %v2332
    %v2549 = vpack.c.b16 %v2341, %v2333
    %v2550 = vpack.c.b16 %v2342, %v2334
    %v2551 = vpack.c.b16 %v2343, %v2335
    %v2552 = vpack.c.b16 %v2352, %v2344
    %v2553 = vpack.c.b16 %v2353, %v2345
    %v2554 = vpack.c.b16 %v2354, %v2346
    %v2555 = vpack.c.b16 %v2355, %v2347
    %v2556 = vpack.c.b16 %v2356, %v2348
    %v2557 = vpack.c.b16 %v2357, %v2349
    %v2558 = vpack.c.b16 %v2358, %v2350
    %v2559 = vpack.c.b16 %v2359, %v2351
    %v2560 = vpack.c.b16 %v2368, %v2360
    %v2561 = vpack.c.b16 %v2369, %v2361
    %v2562 = vpack.c.b16 %v2370, %v2362
    %v2563 = vpack.c.b16 %v2371, %v2363
    %v2564 = vpack.c.b16 %v2372, %v2364
    %v2565 = vpack.c.b16 %v2373, %v2365
    %v2566 = vpack.c.b16 %v2374, %v2366
    %v2567 = vpack.c.b16 %v2375, %v2367
    %v2568 = vpack.c.b16 %v2384, %v2376
    %v2569 = vpack.c.b16 %v2385, %v2377
    %v2570 = vpack.c.b16 %v2386, %v2378
    %v2571 = vpack.c.b16 %v2387, %v2379
    %v2572 = vpack.c.b16 %v2388, %v2380
    %v2573 = vpack.c.b16 %v2389, %v2381
    %v2574 = vpack.c.b16 %v2390, %v2382
    %v2575 = vpack.c.b16 %v2391, %v2383
    %v2576 = vpack.c.b16 %v2400, %v2392
    %v2577 = vpack.c.b16 %v2401, %v2393
    %v2578 = vpack.c.b16 %v2402, %v2394
    %v2579 = vpack.c.b16 %v2403, %v2395
    %v2580 = vpack.c.b16 %v2404, %v2396
    %v2581 = vpack.c.b16 %v2405, %v2397
    %v2582 = vpack.c.b16 %v2406, %v2398
    %v2583 = vpack.c.b16 %v2407, %v2399
    %v2584 = vpack.c.b16 %v2416, %v2408
    %v2585 = vpack.c.b16 %v2417, %v2409
    %v2586 = vpack.c.b16 %v2418, %v2410
    %v2587 = vpack.c.b16 %v2419, %v2411
    %v2588 = vpack.c.b16 %v2420, %v2412
    %v2589 = vpack.c.b16 %v2421, %v2413
    %v2590 = vpack.c.b16 %v2422, %v2414
    %v2591 = vpack.c.b16 %v2423, %v2415
    %v2592 = vpack.c.b16 %v2432, %v2424
    %v2593 = vpack.c.b16 %v2433, %v2425
    %v2594 = vpack.c.b16 %v2434, %v2426
    %v2595 = vpack.c.b16 %v2435, %v2427
    %v2596 = vpack.c.b16 %v2436, %v2428
    %v2597 = vpack.c.b16 %v2437, %v2429
    %v2598 = vpack.c.b16 %v2438, %v2430
    %v2599 = vpack.c.b16 %v2439, %v2431
    %v2600 = vpack.c.b16 %v2448, %v2440
    %v2601 = vpack.c.b16 %v2449, %v2441
    %v2602 = vpack.c.b16 %v2450, %v2442
    %v2603 = vpack.c.b16 %v2451, %v2443
    %v2604 = vpack.c.b16 %v2452, %v2444
    %v2605 = vpack.c.b16 %v2453, %v2445
    %v2606 = vpack.c.b16 %v2454, %v2446
    %v2607 = vpack.c.b16 %v2455, %v2447
    %v2608 = vpack.c.b16 %v2464, %v2456
    %v2609 = vpack.c.b16 %v2465, %v2457
    %v2610 = vpack.c.b16 %v2466, %v2458
    %v2611 = vpack.c.b16 %v2467, %v2459
    %v2612 = vpack.c.b16 %v2468, %v2460
    %v2613 = vpack.c.b16 %v2469, %v2461
    %v2614 = vpack.c.b16 %v2470, %v2462
    %v2615 = vpack.c.b16 %v2471, %v2463
    %v2616 = vpack.c.b16 %v2480, %v2472
    %v2617 = vpack.c.b16 %v2481, %v2473
    %v2618 = vpack.c.b16 %v2482, %v2474
    %v2619 = vpack.c.b16 %v2483, %v2475
    %v2620 = vpack.c.b16 %v2484, %v2476
    %v2621 = vpack.c.b16 %v2485, %v2477
    %v2622 = vpack.c.b16 %v2486, %v2478
    %v2623 = vpack.c.b16 %v2487, %v2479
    %v2624 = vpack.c.b16 %v2496, %v2488
    %v2625 = vpack.c.b16 %v2497, %v2489
    %v2626 = vpack.c.b16 %v2498, %v2490
    %v2627 = vpack.c.b16 %v2499, %v2491
    %v2628 = vpack.c.b16 %v2500, %v2492
    %v2629 = vpack.c.b16 %v2501, %v2493
    %v2630 = vpack.c.b16 %v2502, %v2494
    %v2631 = vpack.c.b16 %v2503, %v2495
    %2760 = vmatpush.bf16.msra.mxu0 %v2560
    %2761 = vmatpush.bf16.msra.mxu0 %v2552
    %2762 = vmatpush.bf16.msra.mxu0 %v2544
    %2763 = vmatpush.bf16.msra.mxu0 %v2536
    %2764 = vmatpush.bf16.msra.mxu0 %v2528
    %2765 = vmatpush.bf16.msra.mxu0 %v2520
    %2766 = vmatpush.bf16.msra.mxu0 %v2512
    %2767 = vmatpush.bf16.msra.mxu0 %v2504
    %2768 = vmatmul.bf16.gmra.mxu0 %v2116
    %v2769 = vpop.f32.mrf.mxu0
    %v2770 = vadd.f32 %v2097, %v2769
    %v2771 = vpop.f32.mrf.mxu0
    %2772 = vdwg.mxu0
    %2773 = vmatpush.bf16.msra.mxu0 %v2624
    %2774 = vmatpush.bf16.msra.mxu0 %v2616
    %2775 = vmatpush.bf16.msra.mxu0 %v2608
    %2776 = vmatpush.bf16.msra.mxu0 %v2600
    %2777 = vmatpush.bf16.msra.mxu0 %v2592
    %2778 = vmatpush.bf16.msra.mxu0 %v2584
    %2779 = vmatpush.bf16.msra.mxu0 %v2576
    %2780 = vmatpush.bf16.msra.mxu0 %v2568
    %2781 = vmatmul.bf16.gmra.mxu0 %v2117
    %v2782 = vpop.f32.mrf.mxu0
    %v2783 = vadd.f32 %v2770, %v2782
    %v2784 = vpop.f32.mrf.mxu0
    %2785 = vdwg.mxu0
    %2786 = vmatpush.bf16.msra.mxu0 %v2561
    %2787 = vmatpush.bf16.msra.mxu0 %v2553
    %2788 = vmatpush.bf16.msra.mxu0 %v2545
    %2789 = vmatpush.bf16.msra.mxu0 %v2537
    %2790 = vmatpush.bf16.msra.mxu0 %v2529
    %2791 = vmatpush.bf16.msra.mxu0 %v2521
    %2792 = vmatpush.bf16.msra.mxu0 %v2513
    %2793 = vmatpush.bf16.msra.mxu0 %v2505
    %2794 = vmatmul.bf16.gmra.mxu0 %v2116
    %v2795 = vpop.f32.mrf.mxu0
    %v2796 = vadd.f32 %v2098, %v2795
    %v2797 = vpop.f32.mrf.mxu0
    %2798 = vdwg.mxu0
    %2799 = vmatpush.bf16.msra.mxu0 %v2625
    %2800 = vmatpush.bf16.msra.mxu0 %v2617
    %2801 = vmatpush.bf16.msra.mxu0 %v2609
    %2802 = vmatpush.bf16.msra.mxu0 %v2601
    %2803 = vmatpush.bf16.msra.mxu0 %v2593
    %2804 = vmatpush.bf16.msra.mxu0 %v2585
    %2805 = vmatpush.bf16.msra.mxu0 %v2577
    %2806 = vmatpush.bf16.msra.mxu0 %v2569
    %2807 = vmatmul.bf16.gmra.mxu0 %v2117
    %v2808 = vpop.f32.mrf.mxu0
    %v2809 = vadd.f32 %v2796, %v2808
    %v2810 = vpop.f32.mrf.mxu0
    %2811 = vdwg.mxu0
    %2812 = vmatpush.bf16.msra.mxu0 %v2562
    %2813 = vmatpush.bf16.msra.mxu0 %v2554
    %2814 = vmatpush.bf16.msra.mxu0 %v2546
    %2815 = vmatpush.bf16.msra.mxu0 %v2538
    %2816 = vmatpush.bf16.msra.mxu0 %v2530
    %2817 = vmatpush.bf16.msra.mxu0 %v2522
    %2818 = vmatpush.bf16.msra.mxu0 %v2514
    %2819 = vmatpush.bf16.msra.mxu0 %v2506
    %2820 = vmatmul.bf16.gmra.mxu0 %v2116
    %v2821 = vpop.f32.mrf.mxu0
    %v2822 = vadd.f32 %v2099, %v2821
    %v2823 = vpop.f32.mrf.mxu0
    %2824 = vdwg.mxu0
    %2825 = vmatpush.bf16.msra.mxu0 %v2626
    %2826 = vmatpush.bf16.msra.mxu0 %v2618
    %2827 = vmatpush.bf16.msra.mxu0 %v2610
    %2828 = vmatpush.bf16.msra.mxu0 %v2602
    %2829 = vmatpush.bf16.msra.mxu0 %v2594
    %2830 = vmatpush.bf16.msra.mxu0 %v2586
    %2831 = vmatpush.bf16.msra.mxu0 %v2578
    %2832 = vmatpush.bf16.msra.mxu0 %v2570
    %2833 = vmatmul.bf16.gmra.mxu0 %v2117
    %v2834 = vpop.f32.mrf.mxu0
    %v2835 = vadd.f32 %v2822, %v2834
    %v2836 = vpop.f32.mrf.mxu0
    %2837 = vdwg.mxu0
    %2838 = vmatpush.bf16.msra.mxu0 %v2563
    %2839 = vmatpush.bf16.msra.mxu0 %v2555
    %2840 = vmatpush.bf16.msra.mxu0 %v2547
    %2841 = vmatpush.bf16.msra.mxu0 %v2539
    %2842 = vmatpush.bf16.msra.mxu0 %v2531
    %2843 = vmatpush.bf16.msra.mxu0 %v2523
    %2844 = vmatpush.bf16.msra.mxu0 %v2515
    %2845 = vmatpush.bf16.msra.mxu0 %v2507
    %2846 = vmatmul.bf16.gmra.mxu0 %v2116
    %v2847 = vpop.f32.mrf.mxu0
    %v2848 = vadd.f32 %v2100, %v2847
    %v2849 = vpop.f32.mrf.mxu0
    %2850 = vdwg.mxu0
    %2851 = vmatpush.bf16.msra.mxu0 %v2627
    %2852 = vmatpush.bf16.msra.mxu0 %v2619
    %2853 = vmatpush.bf16.msra.mxu0 %v2611
    %2854 = vmatpush.bf16.msra.mxu0 %v2603
    %2855 = vmatpush.bf16.msra.mxu0 %v2595
    %2856 = vmatpush.bf16.msra.mxu0 %v2587
    %2857 = vmatpush.bf16.msra.mxu0 %v2579
    %2858 = vmatpush.bf16.msra.mxu0 %v2571
    %2859 = vmatmul.bf16.gmra.mxu0 %v2117
    %v2860 = vpop.f32.mrf.mxu0
    %v2861 = vadd.f32 %v2848, %v2860
    %v2862 = vpop.f32.mrf.mxu0
    %2863 = vdwg.mxu0
    %2864 = vmatpush.bf16.msra.mxu0 %v2564
    %2865 = vmatpush.bf16.msra.mxu0 %v2556
    %2866 = vmatpush.bf16.msra.mxu0 %v2548
    %2867 = vmatpush.bf16.msra.mxu0 %v2540
    %2868 = vmatpush.bf16.msra.mxu0 %v2532
    %2869 = vmatpush.bf16.msra.mxu0 %v2524
    %2870 = vmatpush.bf16.msra.mxu0 %v2516
    %2871 = vmatpush.bf16.msra.mxu0 %v2508
    %2872 = vmatmul.bf16.gmra.mxu0 %v2116
    %v2873 = vpop.f32.mrf.mxu0
    %v2874 = vadd.f32 %v2101, %v2873
    %v2875 = vpop.f32.mrf.mxu0
    %2876 = vdwg.mxu0
    %2877 = vmatpush.bf16.msra.mxu0 %v2628
    %2878 = vmatpush.bf16.msra.mxu0 %v2620
    %2879 = vmatpush.bf16.msra.mxu0 %v2612
    %2880 = vmatpush.bf16.msra.mxu0 %v2604
    %2881 = vmatpush.bf16.msra.mxu0 %v2596
    %2882 = vmatpush.bf16.msra.mxu0 %v2588
    %2883 = vmatpush.bf16.msra.mxu0 %v2580
    %2884 = vmatpush.bf16.msra.mxu0 %v2572
    %2885 = vmatmul.bf16.gmra.mxu0 %v2117
    %v2886 = vpop.f32.mrf.mxu0
    %v2887 = vadd.f32 %v2874, %v2886
    %v2888 = vpop.f32.mrf.mxu0
    %2889 = vdwg.mxu0
    %2890 = vmatpush.bf16.msra.mxu0 %v2565
    %2891 = vmatpush.bf16.msra.mxu0 %v2557
    %2892 = vmatpush.bf16.msra.mxu0 %v2549
    %2893 = vmatpush.bf16.msra.mxu0 %v2541
    %2894 = vmatpush.bf16.msra.mxu0 %v2533
    %2895 = vmatpush.bf16.msra.mxu0 %v2525
    %2896 = vmatpush.bf16.msra.mxu0 %v2517
    %2897 = vmatpush.bf16.msra.mxu0 %v2509
    %2898 = vmatmul.bf16.gmra.mxu0 %v2116
    %v2899 = vpop.f32.mrf.mxu0
    %v2900 = vadd.f32 %v2102, %v2899
    %v2901 = vpop.f32.mrf.mxu0
    %2902 = vdwg.mxu0
    %2903 = vmatpush.bf16.msra.mxu0 %v2629
    %2904 = vmatpush.bf16.msra.mxu0 %v2621
    %2905 = vmatpush.bf16.msra.mxu0 %v2613
    %2906 = vmatpush.bf16.msra.mxu0 %v2605
    %2907 = vmatpush.bf16.msra.mxu0 %v2597
    %2908 = vmatpush.bf16.msra.mxu0 %v2589
    %2909 = vmatpush.bf16.msra.mxu0 %v2581
    %2910 = vmatpush.bf16.msra.mxu0 %v2573
    %2911 = vmatmul.bf16.gmra.mxu0 %v2117
    %v2912 = vpop.f32.mrf.mxu0
    %v2913 = vadd.f32 %v2900, %v2912
    %v2914 = vpop.f32.mrf.mxu0
    %2915 = vdwg.mxu0
    %2916 = vmatpush.bf16.msra.mxu0 %v2566
    %2917 = vmatpush.bf16.msra.mxu0 %v2558
    %2918 = vmatpush.bf16.msra.mxu0 %v2550
    %2919 = vmatpush.bf16.msra.mxu0 %v2542
    %2920 = vmatpush.bf16.msra.mxu0 %v2534
    %2921 = vmatpush.bf16.msra.mxu0 %v2526
    %2922 = vmatpush.bf16.msra.mxu0 %v2518
    %2923 = vmatpush.bf16.msra.mxu0 %v2510
    %2924 = vmatmul.bf16.gmra.mxu0 %v2116
    %v2925 = vpop.f32.mrf.mxu0
    %v2926 = vadd.f32 %v2103, %v2925
    %v2927 = vpop.f32.mrf.mxu0
    %2928 = vdwg.mxu0
    %2929 = vmatpush.bf16.msra.mxu0 %v2630
    %2930 = vmatpush.bf16.msra.mxu0 %v2622
    %2931 = vmatpush.bf16.msra.mxu0 %v2614
    %2932 = vmatpush.bf16.msra.mxu0 %v2606
    %2933 = vmatpush.bf16.msra.mxu0 %v2598
    %2934 = vmatpush.bf16.msra.mxu0 %v2590
    %2935 = vmatpush.bf16.msra.mxu0 %v2582
    %2936 = vmatpush.bf16.msra.mxu0 %v2574
    %2937 = vmatmul.bf16.gmra.mxu0 %v2117
    %v2938 = vpop.f32.mrf.mxu0
    %v2939 = vadd.f32 %v2926, %v2938
    %v2940 = vpop.f32.mrf.mxu0
    %2941 = vdwg.mxu0
    %2942 = vmatpush.bf16.msra.mxu0 %v2567
    %2943 = vmatpush.bf16.msra.mxu0 %v2559
    %2944 = vmatpush.bf16.msra.mxu0 %v2551
    %2945 = vmatpush.bf16.msra.mxu0 %v2543
    %2946 = vmatpush.bf16.msra.mxu0 %v2535
    %2947 = vmatpush.bf16.msra.mxu0 %v2527
    %2948 = vmatpush.bf16.msra.mxu0 %v2519
    %2949 = vmatpush.bf16.msra.mxu0 %v2511
    %2950 = vmatmul.bf16.gmra.mxu0 %v2116
    %v2951 = vpop.f32.mrf.mxu0
    %v2952 = vadd.f32 %v2104, %v2951
    %v2953 = vpop.f32.mrf.mxu0
    %2954 = vdwg.mxu0
    %2955 = vmatpush.bf16.msra.mxu0 %v2631
    %2956 = vmatpush.bf16.msra.mxu0 %v2623
    %2957 = vmatpush.bf16.msra.mxu0 %v2615
    %2958 = vmatpush.bf16.msra.mxu0 %v2607
    %2959 = vmatpush.bf16.msra.mxu0 %v2599
    %2960 = vmatpush.bf16.msra.mxu0 %v2591
    %2961 = vmatpush.bf16.msra.mxu0 %v2583
    %2962 = vmatpush.bf16.msra.mxu0 %v2575
    %2963 = vmatmul.bf16.gmra.mxu0 %v2117
    %v2964 = vpop.f32.mrf.mxu0
    %v2965 = vadd.f32 %v2952, %v2964
    %v2966 = vpop.f32.mrf.mxu0
    %2967 = vdwg.mxu0
    %v2968 = vmax.f32 %v2783, 0.0
    %v2969 = vmax.f32 %v2809, 0.0
    %v2970 = vmax.f32 %v2835, 0.0
    %v2971 = vmax.f32 %v2861, 0.0
    %v2972 = vmax.f32 %v2887, 0.0
    %v2973 = vmax.f32 %v2913, 0.0
    %v2974 = vmax.f32 %v2939, 0.0
    %v2975 = vmax.f32 %v2965, 0.0
    %v2976 = vpack.c.bf16 %v2969, %v2968
    %v2977 = vpack.c.bf16 %v2971, %v2970
    %v2978 = vpack.c.bf16 %v2973, %v2972
    %v2979 = vpack.c.bf16 %v2975, %v2974
    %v2981 = vunpack.c.l.b16 %v2976
    %v2982 = vunpack.c.h.b16 %v2976
    %v2983 = vpack.c.b16 %v2981, %v2981
    %v2984 = vpack.c.b16 %v2982, %v2982
    %v3019 = vunpack.c.l.b16 %v2062
    %v3020 = vunpack.c.h.b16 %v2062
    %v3021 = vunpack.c.l.b16 %v2063
    %v3022 = vunpack.c.h.b16 %v2063
    %v3023 = vunpack.c.l.b16 %v2064
    %v3024 = vunpack.c.h.b16 %v2064
    %v3025 = vunpack.c.l.b16 %v2065
    %v3026 = vunpack.c.h.b16 %v2065
    %v3027 = vunpack.c.l.b16 %v2066
    %v3028 = vunpack.c.h.b16 %v2066
    %v3029 = vunpack.c.l.b16 %v2067
    %v3030 = vunpack.c.h.b16 %v2067
    %v3031 = vunpack.c.l.b16 %v2068
    %v3032 = vunpack.c.h.b16 %v2068
    %v3033 = vunpack.c.l.b16 %v2069
    %v3034 = vunpack.c.h.b16 %v2069
    %v3035 = vunpack.c.l.b16 %v2070
    %v3036 = vunpack.c.h.b16 %v2070
    %v3037 = vunpack.c.l.b16 %v2071
    %v3038 = vunpack.c.h.b16 %v2071
    %v3039 = vunpack.c.l.b16 %v2072
    %v3040 = vunpack.c.h.b16 %v2072
    %v3041 = vunpack.c.l.b16 %v2073
    %v3042 = vunpack.c.h.b16 %v2073
    %v3043 = vunpack.c.l.b16 %v2074
    %v3044 = vunpack.c.h.b16 %v2074
    %v3045 = vunpack.c.l.b16 %v2075
    %v3046 = vunpack.c.h.b16 %v2075
    %v3047 = vunpack.c.l.b16 %v2076
    %v3048 = vunpack.c.h.b16 %v2076
    %v3049 = vunpack.c.l.b16 %v2077
    %v3050 = vunpack.c.h.b16 %v2077
    %v3051 = vunpack.c.l.b16 %v2078
    %v3052 = vunpack.c.h.b16 %v2078
    %v3053 = vunpack.c.l.b16 %v2079
    %v3054 = vunpack.c.h.b16 %v2079
    %v3055 = vunpack.c.l.b16 %v2080
    %v3056 = vunpack.c.h.b16 %v2080
    %v3057 = vunpack.c.l.b16 %v2081
    %v3058 = vunpack.c.h.b16 %v2081
    %v3059 = vunpack.c.l.b16 %v2082
    %v3060 = vunpack.c.h.b16 %v2082
    %v3061 = vunpack.c.l.b16 %v2083
    %v3062 = vunpack.c.h.b16 %v2083
    %v3063 = vunpack.c.l.b16 %v2084
    %v3064 = vunpack.c.h.b16 %v2084
    %v3065 = vunpack.c.l.b16 %v2085
    %v3066 = vunpack.c.h.b16 %v2085
    %v3067 = vunpack.c.l.b16 %v2086
    %v3068 = vunpack.c.h.b16 %v2086
    %v3069 = vunpack.c.l.b16 %v2087
    %v3070 = vunpack.c.h.b16 %v2087
    %v3071 = vunpack.c.l.b16 %v2088
    %v3072 = vunpack.c.h.b16 %v2088
    %v3073 = vunpack.c.l.b16 %v2089
    %v3074 = vunpack.c.h.b16 %v2089
    %v3075 = vunpack.c.l.b16 %v2090
    %v3076 = vunpack.c.h.b16 %v2090
    %v3077 = vunpack.c.l.b16 %v2091
    %v3078 = vunpack.c.h.b16 %v2091
    %v3079 = vunpack.c.l.b16 %v2092
    %v3080 = vunpack.c.h.b16 %v2092
    %v3081 = vunpack.c.l.b16 %v2093
    %v3082 = vunpack.c.h.b16 %v2093
    %v3083 = vpack.c.b16 %v3021, %v3019
    %v3084 = vpack.c.b16 %v3022, %v3020
    %v3085 = vpack.c.b16 %v3025, %v3023
    %v3086 = vpack.c.b16 %v3026, %v3024
    %v3087 = vpack.c.b16 %v3029, %v3027
    %v3088 = vpack.c.b16 %v3030, %v3028
    %v3089 = vpack.c.b16 %v3033, %v3031
    %v3090 = vpack.c.b16 %v3034, %v3032
    %v3091 = vpack.c.b16 %v3037, %v3035
    %v3092 = vpack.c.b16 %v3038, %v3036
    %v3093 = vpack.c.b16 %v3041, %v3039
    %v3094 = vpack.c.b16 %v3042, %v3040
    %v3095 = vpack.c.b16 %v3045, %v3043
    %v3096 = vpack.c.b16 %v3046, %v3044
    %v3097 = vpack.c.b16 %v3049, %v3047
    %v3098 = vpack.c.b16 %v3050, %v3048
    %v3099 = vpack.c.b16 %v3053, %v3051
    %v3100 = vpack.c.b16 %v3054, %v3052
    %v3101 = vpack.c.b16 %v3057, %v3055
    %v3102 = vpack.c.b16 %v3058, %v3056
    %v3103 = vpack.c.b16 %v3061, %v3059
    %v3104 = vpack.c.b16 %v3062, %v3060
    %v3105 = vpack.c.b16 %v3065, %v3063
    %v3106 = vpack.c.b16 %v3066, %v3064
    %v3107 = vpack.c.b16 %v3069, %v3067
    %v3108 = vpack.c.b16 %v3070, %v3068
    %v3109 = vpack.c.b16 %v3073, %v3071
    %v3110 = vpack.c.b16 %v3074, %v3072
    %v3111 = vpack.c.b16 %v3077, %v3075
    %v3112 = vpack.c.b16 %v3078, %v3076
    %v3113 = vpack.c.b16 %v3081, %v3079
    %v3114 = vpack.c.b16 %v3082, %v3080
    %3147 = vmatpush.bf16.msra.mxu0 %v3097
    %3148 = vmatpush.bf16.msra.mxu0 %v3095
    %3149 = vmatpush.bf16.msra.mxu0 %v3093
    %3150 = vmatpush.bf16.msra.mxu0 %v3091
    %3151 = vmatpush.bf16.msra.mxu0 %v3089
    %3152 = vmatpush.bf16.msra.mxu0 %v3087
    %3153 = vmatpush.bf16.msra.mxu0 %v3085
    %3154 = vmatpush.bf16.msra.mxu0 %v3083
    %3155 = vmatmul.bf16.gmra.mxu0 %v2983
    %v3156 = vpop.f32.mrf.mxu0
    %v3157 = vadd.f32 0.0, %v3156
    %v3158 = vpop.f32.mrf.mxu0
    %3159 = vdwg.mxu0
    %3160 = vmatpush.bf16.msra.mxu0 %v3113
    %3161 = vmatpush.bf16.msra.mxu0 %v3111
    %3162 = vmatpush.bf16.msra.mxu0 %v3109
    %3163 = vmatpush.bf16.msra.mxu0 %v3107
    %3164 = vmatpush.bf16.msra.mxu0 %v3105
    %3165 = vmatpush.bf16.msra.mxu0 %v3103
    %3166 = vmatpush.bf16.msra.mxu0 %v3101
    %3167 = vmatpush.bf16.msra.mxu0 %v3099
    %3168 = vmatmul.bf16.gmra.mxu0 %v2984
    %v3169 = vpop.f32.mrf.mxu0
    %v3170 = vadd.f32 %v3157, %v3169
    %v3171 = vpop.f32.mrf.mxu0
    %3172 = vdwg.mxu0
    %3173 = vmatpush.bf16.msra.mxu0 %v3098
    %3174 = vmatpush.bf16.msra.mxu0 %v3096
    %3175 = vmatpush.bf16.msra.mxu0 %v3094
    %3176 = vmatpush.bf16.msra.mxu0 %v3092
    %3177 = vmatpush.bf16.msra.mxu0 %v3090
    %3178 = vmatpush.bf16.msra.mxu0 %v3088
    %3179 = vmatpush.bf16.msra.mxu0 %v3086
    %3180 = vmatpush.bf16.msra.mxu0 %v3084
    %3181 = vmatmul.bf16.gmra.mxu0 %v2983
    %v3182 = vpop.f32.mrf.mxu0
    %v3183 = vadd.f32 0.0, %v3182
    %v3184 = vpop.f32.mrf.mxu0
    %3185 = vdwg.mxu0
    %3186 = vmatpush.bf16.msra.mxu0 %v3114
    %3187 = vmatpush.bf16.msra.mxu0 %v3112
    %3188 = vmatpush.bf16.msra.mxu0 %v3110
    %3189 = vmatpush.bf16.msra.mxu0 %v3108
    %3190 = vmatpush.bf16.msra.mxu0 %v3106
    %3191 = vmatpush.bf16.msra.mxu0 %v3104
    %3192 = vmatpush.bf16.msra.mxu0 %v3102
    %3193 = vmatpush.bf16.msra.mxu0 %v3100
    %3194 = vmatmul.bf16.gmra.mxu0 %v2984
    %v3195 = vpop.f32.mrf.mxu0
    %v3196 = vadd.f32 %v3183, %v3195
    %v3197 = vpop.f32.mrf.mxu0
    %3198 = vdwg.mxu0
    %v3200 = vunpack.c.l.b16 %v2977
    %v3201 = vpack.c.b16 %v3200, %v3200
    %3203 = vmatpush.bf16.msra.mxu0 %v3097
    %3204 = vmatpush.bf16.msra.mxu0 %v3095
    %3205 = vmatpush.bf16.msra.mxu0 %v3093
    %3206 = vmatpush.bf16.msra.mxu0 %v3091
    %3207 = vmatpush.bf16.msra.mxu0 %v3089
    %3208 = vmatpush.bf16.msra.mxu0 %v3087
    %3209 = vmatpush.bf16.msra.mxu0 %v3085
    %3210 = vmatpush.bf16.msra.mxu0 %v3083
    %3211 = vmatmul.bf16.gmra.mxu0 %v2984
    %v3212 = vpop.f32.mrf.mxu0
    %v3213 = vadd.f32 0.0, %v3212
    %v3214 = vpop.f32.mrf.mxu0
    %3215 = vdwg.mxu0
    %3216 = vmatpush.bf16.msra.mxu0 %v3113
    %3217 = vmatpush.bf16.msra.mxu0 %v3111
    %3218 = vmatpush.bf16.msra.mxu0 %v3109
    %3219 = vmatpush.bf16.msra.mxu0 %v3107
    %3220 = vmatpush.bf16.msra.mxu0 %v3105
    %3221 = vmatpush.bf16.msra.mxu0 %v3103
    %3222 = vmatpush.bf16.msra.mxu0 %v3101
    %3223 = vmatpush.bf16.msra.mxu0 %v3099
    %3224 = vmatmul.bf16.gmra.mxu0 %v3201
    %v3225 = vpop.f32.mrf.mxu0
    %v3226 = vadd.f32 %v3213, %v3225
    %v3227 = vpop.f32.mrf.mxu0
    %3228 = vdwg.mxu0
    %3229 = vmatpush.bf16.msra.mxu0 %v3098
    %3230 = vmatpush.bf16.msra.mxu0 %v3096
    %3231 = vmatpush.bf16.msra.mxu0 %v3094
    %3232 = vmatpush.bf16.msra.mxu0 %v3092
    %3233 = vmatpush.bf16.msra.mxu0 %v3090
    %3234 = vmatpush.bf16.msra.mxu0 %v3088
    %3235 = vmatpush.bf16.msra.mxu0 %v3086
    %3236 = vmatpush.bf16.msra.mxu0 %v3084
    %3237 = vmatmul.bf16.gmra.mxu0 %v2984
    %v3238 = vpop.f32.mrf.mxu0
    %v3239 = vadd.f32 0.0, %v3238
    %v3240 = vpop.f32.mrf.mxu0
    %3241 = vdwg.mxu0
    %3242 = vmatpush.bf16.msra.mxu0 %v3114
    %3243 = vmatpush.bf16.msra.mxu0 %v3112
    %3244 = vmatpush.bf16.msra.mxu0 %v3110
    %3245 = vmatpush.bf16.msra.mxu0 %v3108
    %3246 = vmatpush.bf16.msra.mxu0 %v3106
    %3247 = vmatpush.bf16.msra.mxu0 %v3104
    %3248 = vmatpush.bf16.msra.mxu0 %v3102
    %3249 = vmatpush.bf16.msra.mxu0 %v3100
    %3250 = vmatmul.bf16.gmra.mxu0 %v3201
    %v3251 = vpop.f32.mrf.mxu0
    %v3252 = vadd.f32 %v3239, %v3251
    %v3253 = vpop.f32.mrf.mxu0
    %3254 = vdwg.mxu0
    %v3255 = vunpack.c.h.b16 %v2977
    %v3256 = vpack.c.b16 %v3255, %v3255
    %3258 = vmatpush.bf16.msra.mxu0 %v3097
    %3259 = vmatpush.bf16.msra.mxu0 %v3095
    %3260 = vmatpush.bf16.msra.mxu0 %v3093
    %3261 = vmatpush.bf16.msra.mxu0 %v3091
    %3262 = vmatpush.bf16.msra.mxu0 %v3089
    %3263 = vmatpush.bf16.msra.mxu0 %v3087
    %3264 = vmatpush.bf16.msra.mxu0 %v3085
    %3265 = vmatpush.bf16.msra.mxu0 %v3083
    %3266 = vmatmul.bf16.gmra.mxu0 %v3201
    %v3267 = vpop.f32.mrf.mxu0
    %v3268 = vadd.f32 0.0, %v3267
    %v3269 = vpop.f32.mrf.mxu0
    %3270 = vdwg.mxu0
    %3271 = vmatpush.bf16.msra.mxu0 %v3113
    %3272 = vmatpush.bf16.msra.mxu0 %v3111
    %3273 = vmatpush.bf16.msra.mxu0 %v3109
    %3274 = vmatpush.bf16.msra.mxu0 %v3107
    %3275 = vmatpush.bf16.msra.mxu0 %v3105
    %3276 = vmatpush.bf16.msra.mxu0 %v3103
    %3277 = vmatpush.bf16.msra.mxu0 %v3101
    %3278 = vmatpush.bf16.msra.mxu0 %v3099
    %3279 = vmatmul.bf16.gmra.mxu0 %v3256
    %v3280 = vpop.f32.mrf.mxu0
    %v3281 = vadd.f32 %v3268, %v3280
    %v3282 = vpop.f32.mrf.mxu0
    %3283 = vdwg.mxu0
    %3284 = vmatpush.bf16.msra.mxu0 %v3098
    %3285 = vmatpush.bf16.msra.mxu0 %v3096
    %3286 = vmatpush.bf16.msra.mxu0 %v3094
    %3287 = vmatpush.bf16.msra.mxu0 %v3092
    %3288 = vmatpush.bf16.msra.mxu0 %v3090
    %3289 = vmatpush.bf16.msra.mxu0 %v3088
    %3290 = vmatpush.bf16.msra.mxu0 %v3086
    %3291 = vmatpush.bf16.msra.mxu0 %v3084
    %3292 = vmatmul.bf16.gmra.mxu0 %v3201
    %v3293 = vpop.f32.mrf.mxu0
    %v3294 = vadd.f32 0.0, %v3293
    %v3295 = vpop.f32.mrf.mxu0
    %3296 = vdwg.mxu0
    %3297 = vmatpush.bf16.msra.mxu0 %v3114
    %3298 = vmatpush.bf16.msra.mxu0 %v3112
    %3299 = vmatpush.bf16.msra.mxu0 %v3110
    %3300 = vmatpush.bf16.msra.mxu0 %v3108
    %3301 = vmatpush.bf16.msra.mxu0 %v3106
    %3302 = vmatpush.bf16.msra.mxu0 %v3104
    %3303 = vmatpush.bf16.msra.mxu0 %v3102
    %3304 = vmatpush.bf16.msra.mxu0 %v3100
    %3305 = vmatmul.bf16.gmra.mxu0 %v3256
    %v3306 = vpop.f32.mrf.mxu0
    %v3307 = vadd.f32 %v3294, %v3306
    %v3308 = vpop.f32.mrf.mxu0
    %3309 = vdwg.mxu0
    %v3311 = vunpack.c.l.b16 %v2978
    %v3312 = vpack.c.b16 %v3311, %v3311
    %3314 = vmatpush.bf16.msra.mxu0 %v3097
    %3315 = vmatpush.bf16.msra.mxu0 %v3095
    %3316 = vmatpush.bf16.msra.mxu0 %v3093
    %3317 = vmatpush.bf16.msra.mxu0 %v3091
    %3318 = vmatpush.bf16.msra.mxu0 %v3089
    %3319 = vmatpush.bf16.msra.mxu0 %v3087
    %3320 = vmatpush.bf16.msra.mxu0 %v3085
    %3321 = vmatpush.bf16.msra.mxu0 %v3083
    %3322 = vmatmul.bf16.gmra.mxu0 %v3256
    %v3323 = vpop.f32.mrf.mxu0
    %v3324 = vadd.f32 0.0, %v3323
    %v3325 = vpop.f32.mrf.mxu0
    %3326 = vdwg.mxu0
    %3327 = vmatpush.bf16.msra.mxu0 %v3113
    %3328 = vmatpush.bf16.msra.mxu0 %v3111
    %3329 = vmatpush.bf16.msra.mxu0 %v3109
    %3330 = vmatpush.bf16.msra.mxu0 %v3107
    %3331 = vmatpush.bf16.msra.mxu0 %v3105
    %3332 = vmatpush.bf16.msra.mxu0 %v3103
    %3333 = vmatpush.bf16.msra.mxu0 %v3101
    %3334 = vmatpush.bf16.msra.mxu0 %v3099
    %3335 = vmatmul.bf16.gmra.mxu0 %v3312
    %v3336 = vpop.f32.mrf.mxu0
    %v3337 = vadd.f32 %v3324, %v3336
    %v3338 = vpop.f32.mrf.mxu0
    %3339 = vdwg.mxu0
    %3340 = vmatpush.bf16.msra.mxu0 %v3098
    %3341 = vmatpush.bf16.msra.mxu0 %v3096
    %3342 = vmatpush.bf16.msra.mxu0 %v3094
    %3343 = vmatpush.bf16.msra.mxu0 %v3092
    %3344 = vmatpush.bf16.msra.mxu0 %v3090
    %3345 = vmatpush.bf16.msra.mxu0 %v3088
    %3346 = vmatpush.bf16.msra.mxu0 %v3086
    %3347 = vmatpush.bf16.msra.mxu0 %v3084
    %3348 = vmatmul.bf16.gmra.mxu0 %v3256
    %v3349 = vpop.f32.mrf.mxu0
    %v3350 = vadd.f32 0.0, %v3349
    %v3351 = vpop.f32.mrf.mxu0
    %3352 = vdwg.mxu0
    %3353 = vmatpush.bf16.msra.mxu0 %v3114
    %3354 = vmatpush.bf16.msra.mxu0 %v3112
    %3355 = vmatpush.bf16.msra.mxu0 %v3110
    %3356 = vmatpush.bf16.msra.mxu0 %v3108
    %3357 = vmatpush.bf16.msra.mxu0 %v3106
    %3358 = vmatpush.bf16.msra.mxu0 %v3104
    %3359 = vmatpush.bf16.msra.mxu0 %v3102
    %3360 = vmatpush.bf16.msra.mxu0 %v3100
    %3361 = vmatmul.bf16.gmra.mxu0 %v3312
    %v3362 = vpop.f32.mrf.mxu0
    %v3363 = vadd.f32 %v3350, %v3362
    %v3364 = vpop.f32.mrf.mxu0
    %3365 = vdwg.mxu0
    %v3366 = vunpack.c.h.b16 %v2978
    %v3367 = vpack.c.b16 %v3366, %v3366
    %3369 = vmatpush.bf16.msra.mxu0 %v3097
    %3370 = vmatpush.bf16.msra.mxu0 %v3095
    %3371 = vmatpush.bf16.msra.mxu0 %v3093
    %3372 = vmatpush.bf16.msra.mxu0 %v3091
    %3373 = vmatpush.bf16.msra.mxu0 %v3089
    %3374 = vmatpush.bf16.msra.mxu0 %v3087
    %3375 = vmatpush.bf16.msra.mxu0 %v3085
    %3376 = vmatpush.bf16.msra.mxu0 %v3083
    %3377 = vmatmul.bf16.gmra.mxu0 %v3312
    %v3378 = vpop.f32.mrf.mxu0
    %v3379 = vadd.f32 0.0, %v3378
    %v3380 = vpop.f32.mrf.mxu0
    %3381 = vdwg.mxu0
    %3382 = vmatpush.bf16.msra.mxu0 %v3113
    %3383 = vmatpush.bf16.msra.mxu0 %v3111
    %3384 = vmatpush.bf16.msra.mxu0 %v3109
    %3385 = vmatpush.bf16.msra.mxu0 %v3107
    %3386 = vmatpush.bf16.msra.mxu0 %v3105
    %3387 = vmatpush.bf16.msra.mxu0 %v3103
    %3388 = vmatpush.bf16.msra.mxu0 %v3101
    %3389 = vmatpush.bf16.msra.mxu0 %v3099
    %3390 = vmatmul.bf16.gmra.mxu0 %v3367
    %v3391 = vpop.f32.mrf.mxu0
    %v3392 = vadd.f32 %v3379, %v3391
    %v3393 = vpop.f32.mrf.mxu0
    %3394 = vdwg.mxu0
    %3395 = vmatpush.bf16.msra.mxu0 %v3098
    %3396 = vmatpush.bf16.msra.mxu0 %v3096
    %3397 = vmatpush.bf16.msra.mxu0 %v3094
    %3398 = vmatpush.bf16.msra.mxu0 %v3092
    %3399 = vmatpush.bf16.msra.mxu0 %v3090
    %3400 = vmatpush.bf16.msra.mxu0 %v3088
    %3401 = vmatpush.bf16.msra.mxu0 %v3086
    %3402 = vmatpush.bf16.msra.mxu0 %v3084
    %3403 = vmatmul.bf16.gmra.mxu0 %v3312
    %v3404 = vpop.f32.mrf.mxu0
    %v3405 = vadd.f32 0.0, %v3404
    %v3406 = vpop.f32.mrf.mxu0
    %3407 = vdwg.mxu0
    %3408 = vmatpush.bf16.msra.mxu0 %v3114
    %3409 = vmatpush.bf16.msra.mxu0 %v3112
    %3410 = vmatpush.bf16.msra.mxu0 %v3110
    %3411 = vmatpush.bf16.msra.mxu0 %v3108
    %3412 = vmatpush.bf16.msra.mxu0 %v3106
    %3413 = vmatpush.bf16.msra.mxu0 %v3104
    %3414 = vmatpush.bf16.msra.mxu0 %v3102
    %3415 = vmatpush.bf16.msra.mxu0 %v3100
    %3416 = vmatmul.bf16.gmra.mxu0 %v3367
    %v3417 = vpop.f32.mrf.mxu0
    %v3418 = vadd.f32 %v3405, %v3417
    %v3419 = vpop.f32.mrf.mxu0
    %3420 = vdwg.mxu0
    %v3422 = vunpack.c.l.b16 %v2979
    %v3423 = vpack.c.b16 %v3422, %v3422
    %3425 = vmatpush.bf16.msra.mxu0 %v3097
    %3426 = vmatpush.bf16.msra.mxu0 %v3095
    %3427 = vmatpush.bf16.msra.mxu0 %v3093
    %3428 = vmatpush.bf16.msra.mxu0 %v3091
    %3429 = vmatpush.bf16.msra.mxu0 %v3089
    %3430 = vmatpush.bf16.msra.mxu0 %v3087
    %3431 = vmatpush.bf16.msra.mxu0 %v3085
    %3432 = vmatpush.bf16.msra.mxu0 %v3083
    %3433 = vmatmul.bf16.gmra.mxu0 %v3367
    %v3434 = vpop.f32.mrf.mxu0
    %v3435 = vadd.f32 0.0, %v3434
    %v3436 = vpop.f32.mrf.mxu0
    %3437 = vdwg.mxu0
    %3438 = vmatpush.bf16.msra.mxu0 %v3113
    %3439 = vmatpush.bf16.msra.mxu0 %v3111
    %3440 = vmatpush.bf16.msra.mxu0 %v3109
    %3441 = vmatpush.bf16.msra.mxu0 %v3107
    %3442 = vmatpush.bf16.msra.mxu0 %v3105
    %3443 = vmatpush.bf16.msra.mxu0 %v3103
    %3444 = vmatpush.bf16.msra.mxu0 %v3101
    %3445 = vmatpush.bf16.msra.mxu0 %v3099
    %3446 = vmatmul.bf16.gmra.mxu0 %v3423
    %v3447 = vpop.f32.mrf.mxu0
    %v3448 = vadd.f32 %v3435, %v3447
    %v3449 = vpop.f32.mrf.mxu0
    %3450 = vdwg.mxu0
    %3451 = vmatpush.bf16.msra.mxu0 %v3098
    %3452 = vmatpush.bf16.msra.mxu0 %v3096
    %3453 = vmatpush.bf16.msra.mxu0 %v3094
    %3454 = vmatpush.bf16.msra.mxu0 %v3092
    %3455 = vmatpush.bf16.msra.mxu0 %v3090
    %3456 = vmatpush.bf16.msra.mxu0 %v3088
    %3457 = vmatpush.bf16.msra.mxu0 %v3086
    %3458 = vmatpush.bf16.msra.mxu0 %v3084
    %3459 = vmatmul.bf16.gmra.mxu0 %v3367
    %v3460 = vpop.f32.mrf.mxu0
    %v3461 = vadd.f32 0.0, %v3460
    %v3462 = vpop.f32.mrf.mxu0
    %3463 = vdwg.mxu0
    %3464 = vmatpush.bf16.msra.mxu0 %v3114
    %3465 = vmatpush.bf16.msra.mxu0 %v3112
    %3466 = vmatpush.bf16.msra.mxu0 %v3110
    %3467 = vmatpush.bf16.msra.mxu0 %v3108
    %3468 = vmatpush.bf16.msra.mxu0 %v3106
    %3469 = vmatpush.bf16.msra.mxu0 %v3104
    %3470 = vmatpush.bf16.msra.mxu0 %v3102
    %3471 = vmatpush.bf16.msra.mxu0 %v3100
    %3472 = vmatmul.bf16.gmra.mxu0 %v3423
    %v3473 = vpop.f32.mrf.mxu0
    %v3474 = vadd.f32 %v3461, %v3473
    %v3475 = vpop.f32.mrf.mxu0
    %3476 = vdwg.mxu0
    %v3477 = vunpack.c.h.b16 %v2979
    %v3478 = vpack.c.b16 %v3477, %v3477
    %3480 = vmatpush.bf16.msra.mxu0 %v3097
    %3481 = vmatpush.bf16.msra.mxu0 %v3095
    %3482 = vmatpush.bf16.msra.mxu0 %v3093
    %3483 = vmatpush.bf16.msra.mxu0 %v3091
    %3484 = vmatpush.bf16.msra.mxu0 %v3089
    %3485 = vmatpush.bf16.msra.mxu0 %v3087
    %3486 = vmatpush.bf16.msra.mxu0 %v3085
    %3487 = vmatpush.bf16.msra.mxu0 %v3083
    %3488 = vmatmul.bf16.gmra.mxu0 %v3423
    %v3489 = vpop.f32.mrf.mxu0
    %v3490 = vadd.f32 0.0, %v3489
    %v3491 = vpop.f32.mrf.mxu0
    %3492 = vdwg.mxu0
    %3493 = vmatpush.bf16.msra.mxu0 %v3113
    %3494 = vmatpush.bf16.msra.mxu0 %v3111
    %3495 = vmatpush.bf16.msra.mxu0 %v3109
    %3496 = vmatpush.bf16.msra.mxu0 %v3107
    %3497 = vmatpush.bf16.msra.mxu0 %v3105
    %3498 = vmatpush.bf16.msra.mxu0 %v3103
    %3499 = vmatpush.bf16.msra.mxu0 %v3101
    %3500 = vmatpush.bf16.msra.mxu0 %v3099
    %3501 = vmatmul.bf16.gmra.mxu0 %v3478
    %v3502 = vpop.f32.mrf.mxu0
    %v3503 = vadd.f32 %v3490, %v3502
    %v3504 = vpop.f32.mrf.mxu0
    %3505 = vdwg.mxu0
    %3506 = vmatpush.bf16.msra.mxu0 %v3098
    %3507 = vmatpush.bf16.msra.mxu0 %v3096
    %3508 = vmatpush.bf16.msra.mxu0 %v3094
    %3509 = vmatpush.bf16.msra.mxu0 %v3092
    %3510 = vmatpush.bf16.msra.mxu0 %v3090
    %3511 = vmatpush.bf16.msra.mxu0 %v3088
    %3512 = vmatpush.bf16.msra.mxu0 %v3086
    %3513 = vmatpush.bf16.msra.mxu0 %v3084
    %3514 = vmatmul.bf16.gmra.mxu0 %v3423
    %v3515 = vpop.f32.mrf.mxu0
    %v3516 = vadd.f32 0.0, %v3515
    %v3517 = vpop.f32.mrf.mxu0
    %3518 = vdwg.mxu0
    %3519 = vmatpush.bf16.msra.mxu0 %v3114
    %3520 = vmatpush.bf16.msra.mxu0 %v3112
    %3521 = vmatpush.bf16.msra.mxu0 %v3110
    %3522 = vmatpush.bf16.msra.mxu0 %v3108
    %3523 = vmatpush.bf16.msra.mxu0 %v3106
    %3524 = vmatpush.bf16.msra.mxu0 %v3104
    %3525 = vmatpush.bf16.msra.mxu0 %v3102
    %3526 = vmatpush.bf16.msra.mxu0 %v3100
    %3527 = vmatmul.bf16.gmra.mxu0 %v3478
    %v3528 = vpop.f32.mrf.mxu0
    %v3529 = vadd.f32 %v3516, %v3528
    %v3530 = vpop.f32.mrf.mxu0
    %3531 = vdwg.mxu0
    %v3534 = vperm.slane %v2094, 0
    %v3535 = vperm.slane %v2094, 1
    %v3536 = vperm.slane %v2094, 2
    %v3537 = vperm.slane %v2094, 3
    %v3538 = vperm.slane %v2094, 4
    %v3539 = vperm.slane %v2094, 5
    %v3540 = vperm.slane %v2094, 6
    %v3541 = vperm.slane %v2094, 7
    %v3542 = vperm.slane %v2095, 0
    %v3543 = vperm.slane %v2095, 1
    %v3544 = vperm.slane %v2095, 2
    %v3545 = vperm.slane %v2095, 3
    %v3546 = vperm.slane %v2095, 4
    %v3547 = vperm.slane %v2095, 5
    %v3562 = vadd.f32 %v3170, %v3534
    %v3563 = vadd.f32 %v3196, %v3535
    %v3564 = vadd.f32 %v3226, %v3536
    %v3565 = vadd.f32 %v3252, %v3537
    %v3566 = vadd.f32 %v3281, %v3538
    %v3567 = vadd.f32 %v3307, %v3539
    %v3568 = vadd.f32 %v3337, %v3540
    %v3569 = vadd.f32 %v3363, %v3541
    %v3570 = vadd.f32 %v3392, %v3542
    %v3571 = vadd.f32 %v3418, %v3543
    %v3572 = vadd.f32 %v3448, %v3544
    %v3573 = vadd.f32 %v3474, %v3545
    %v3574 = vadd.f32 %v3503, %v3546
    %v3575 = vadd.f32 %v3529, %v3547
    %v3576 = vmax.f32 %v3562, 0.0
    %v3577 = vmax.f32 %v3563, 0.0
    %v3578 = vmax.f32 %v3564, 0.0
    %v3579 = vmax.f32 %v3565, 0.0
    %v3580 = vmax.f32 %v3566, 0.0
    %v3581 = vmax.f32 %v3567, 0.0
    %v3582 = vmax.f32 %v3568, 0.0
    %v3583 = vmax.f32 %v3569, 0.0
    %v3584 = vmax.f32 %v3570, 0.0
    %v3585 = vmax.f32 %v3571, 0.0
    %v3586 = vmax.f32 %v3572, 0.0
    %v3587 = vmax.f32 %v3573, 0.0
    %v3588 = vmax.f32 %v3574, 0.0
    %v3589 = vmax.f32 %v3575, 0.0
    %v3590 = vpack.c.bf16 %v3576, %v3576
    %v3591 = vpack.c.bf16 %v3577, %v3577
    %v3592 = vpack.c.bf16 %v3578, %v3578
    %v3593 = vpack.c.bf16 %v3579, %v3579
    %v3594 = vpack.c.bf16 %v3580, %v3580
    %v3595 = vpack.c.bf16 %v3581, %v3581
    %v3596 = vpack.c.bf16 %v3582, %v3582
    %v3597 = vpack.c.bf16 %v3583, %v3583
    %v3598 = vpack.c.bf16 %v3584, %v3584
    %v3599 = vpack.c.bf16 %v3585, %v3585
    %v3600 = vpack.c.bf16 %v3586, %v3586
    %v3601 = vpack.c.bf16 %v3587, %v3587
    %v3602 = vpack.c.bf16 %v3588, %v3588
    %v3603 = vpack.c.bf16 %v3589, %v3589
    %v3604 = vld [vmem:[#allocation13] sm:$0xf]
    %v3605 = vld [vmem:[#allocation13 + $0x4] sm:$0xf]
    %v3606 = vld [vmem:[#allocation13 + $0x8] sm:$0xf]
    %v3607 = vld [vmem:[#allocation13 + $0xc] sm:$0xf]
    %v3608 = vld [vmem:[#allocation13 + $0x10] sm:$0xf]
    %v3609 = vld [vmem:[#allocation13 + $0x14] sm:$0xf]
    %v3610 = vld [vmem:[#allocation13 + $0x18] sm:$0xf]
    %v3611 = vld [vmem:[#allocation13 + $0x1c] sm:$0xf]
    %v3612 = vld [vmem:[#allocation13 + $0x20] sm:$0xf]
    %v3613 = vld [vmem:[#allocation13 + $0x24] sm:$0xf]
    %v3614 = vld [vmem:[#allocation13 + $0x28] sm:$0xf]
    %v3615 = vld [vmem:[#allocation13 + $0x2c] sm:$0xf]
    %v3616 = vld [vmem:[#allocation13 + $0x30] sm:$0xf]
    %v3617 = vld [vmem:[#allocation13 + $0x34] sm:$0xf]
    %v3618 = vld [vmem:[#allocation13 + $0x38] sm:$0xf]
    %v3619 = vld [vmem:[#allocation13 + $0x3c] sm:$0xf]
    %v3620 = vld [vmem:[#allocation13 + $0x40] sm:$0xf]
    %v3621 = vld [vmem:[#allocation13 + $0x44] sm:$0xf]
    %v3622 = vld [vmem:[#allocation13 + $0x48] sm:$0xf]
    %v3623 = vld [vmem:[#allocation13 + $0x4c] sm:$0xf]
    %v3624 = vld [vmem:[#allocation13 + $0x50] sm:$0xf]
    %v3625 = vld [vmem:[#allocation13 + $0x54] sm:$0xf]
    %v3626 = vld [vmem:[#allocation13 + $0x58] sm:$0xf]
    %v3627 = vld [vmem:[#allocation13 + $0x5c] sm:$0xf]
    %v3628 = vld [vmem:[#allocation13 + $0x60] sm:$0xf]
    %v3629 = vld [vmem:[#allocation13 + $0x64] sm:$0xf]
    %v3630 = vld [vmem:[#allocation13 + $0x68] sm:$0xf]
    %v3631 = vld [vmem:[#allocation13 + $0x6c] sm:$0xf]
    %v3632 = vld [vmem:[#allocation13 + $0x70] sm:$0xf]
    %v3633 = vld [vmem:[#allocation13 + $0x74] sm:$0xf]
    %v3634 = vld [vmem:[#allocation13 + $0x78] sm:$0xf]
    %v3635 = vld [vmem:[#allocation13 + $0x7c] sm:$0xf]
    %v3636 = vld [vmem:[#allocation13 + $0x80] sm:$0xf]
    %v3637 = vld [vmem:[#allocation13 + $0x84] sm:$0xf]
    %v3638 = vld [vmem:[#allocation13 + $0x88] sm:$0xf]
    %v3639 = vld [vmem:[#allocation13 + $0x8c] sm:$0xf]
    %v3640 = vld [vmem:[#allocation13 + $0x90] sm:$0xf]
    %v3641 = vld [vmem:[#allocation13 + $0x94] sm:$0xf]
    %v3642 = vld [vmem:[#allocation13 + $0x98] sm:$0xf]
    %v3643 = vld [vmem:[#allocation13 + $0x9c] sm:$0xf]
    %v3644 = vld [vmem:[#allocation13 + $0xa0] sm:$0xf]
    %v3645 = vld [vmem:[#allocation13 + $0xa4] sm:$0xf]
    %v3646 = vld [vmem:[#allocation13 + $0xa8] sm:$0xf]
    %v3647 = vld [vmem:[#allocation13 + $0xac] sm:$0xf]
    %v3648 = vld [vmem:[#allocation13 + $0xb0] sm:$0xf]
    %v3649 = vld [vmem:[#allocation13 + $0xb4] sm:$0xf]
    %v3650 = vld [vmem:[#allocation13 + $0xb8] sm:$0xf]
    %v3651 = vld [vmem:[#allocation13 + $0xbc] sm:$0xf]
    %v3652 = vld [vmem:[#allocation13 + $0xc0] sm:$0xf]
    %v3653 = vld [vmem:[#allocation13 + $0xc4] sm:$0xf]
    %v3654 = vld [vmem:[#allocation13 + $0xc8] sm:$0xf]
    %v3655 = vld [vmem:[#allocation13 + $0xcc] sm:$0xf]
    %v3656 = vld [vmem:[#allocation13 + $0xd0] sm:$0xf]
    %v3657 = vld [vmem:[#allocation13 + $0xd4] sm:$0xf]
    %v3658 = vld [vmem:[#allocation13 + $0xd8] sm:$0xf]
    %v3659 = vld [vmem:[#allocation13 + $0xdc] sm:$0xf]
    %v3660 = vld [vmem:[#allocation13 + $0xe0] sm:$0xf]
    %v3661 = vld [vmem:[#allocation13 + $0xe4] sm:$0xf]
    %v3662 = vld [vmem:[#allocation13 + $0xe8] sm:$0xf]
    %v3663 = vld [vmem:[#allocation13 + $0xec] sm:$0xf]
    %v3664 = vld [vmem:[#allocation13 + $0xf0] sm:$0xf]
    %v3665 = vld [vmem:[#allocation13 + $0xf4] sm:$0xf]
    %v3666 = vld [vmem:[#allocation13 + $0xf8] sm:$0xf]
    %v3667 = vld [vmem:[#allocation13 + $0xfc] sm:$0xf]
    %v3668 = vld [vmem:[#allocation13 + $0x100] sm:$0xf]
    %v3669 = vld [vmem:[#allocation13 + $0x104] sm:$0xf]
    %v3670 = vld [vmem:[#allocation13 + $0x108] sm:$0xf]
    %v3671 = vld [vmem:[#allocation13 + $0x10c] sm:$0xf]
    %v3672 = vld [vmem:[#allocation13 + $0x110] sm:$0xf]
    %v3673 = vld [vmem:[#allocation13 + $0x114] sm:$0xf]
    %v3674 = vld [vmem:[#allocation13 + $0x118] sm:$0xf]
    %v3675 = vld [vmem:[#allocation13 + $0x11c] sm:$0xf]
    %v3676 = vld [vmem:[#allocation13 + $0x120] sm:$0xf]
    %v3677 = vld [vmem:[#allocation13 + $0x124] sm:$0xf]
    %v3678 = vld [vmem:[#allocation13 + $0x128] sm:$0xf]
    %v3679 = vld [vmem:[#allocation13 + $0x12c] sm:$0xf]
    %v3680 = vld [vmem:[#allocation13 + $0x130] sm:$0xf]
    %v3681 = vld [vmem:[#allocation13 + $0x134] sm:$0xf]
    %v3682 = vld [vmem:[#allocation13 + $0x138] sm:$0xf]
    %v3683 = vld [vmem:[#allocation13 + $0x13c] sm:$0xf]
    %v3684 = vld [vmem:[#allocation13 + $0x140] sm:$0xf]
    %v3685 = vld [vmem:[#allocation13 + $0x144] sm:$0xf]
    %v3686 = vld [vmem:[#allocation13 + $0x148] sm:$0xf]
    %v3687 = vld [vmem:[#allocation13 + $0x14c] sm:$0xf]
    %v3688 = vld [vmem:[#allocation13 + $0x150] sm:$0xf]
    %v3689 = vld [vmem:[#allocation13 + $0x154] sm:$0xf]
    %v3690 = vld [vmem:[#allocation13 + $0x158] sm:$0xf]
    %v3691 = vld [vmem:[#allocation13 + $0x15c] sm:$0xf]
    %v3692 = vld [vmem:[#allocation13 + $0x160] sm:$0xf]
    %v3693 = vld [vmem:[#allocation13 + $0x164] sm:$0xf]
    %v3694 = vld [vmem:[#allocation13 + $0x168] sm:$0xf]
    %v3695 = vld [vmem:[#allocation13 + $0x16c] sm:$0xf]
    %v3696 = vld [vmem:[#allocation13 + $0x170] sm:$0xf]
    %v3697 = vld [vmem:[#allocation13 + $0x174] sm:$0xf]
    %v3698 = vld [vmem:[#allocation13 + $0x178] sm:$0xf]
    %v3699 = vld [vmem:[#allocation13 + $0x17c] sm:$0xf]
    %v3700 = vld [vmem:[#allocation13 + $0x180] sm:$0xf]
    %v3701 = vld [vmem:[#allocation13 + $0x184] sm:$0xf]
    %v3702 = vld [vmem:[#allocation13 + $0x188] sm:$0xf]
    %v3703 = vld [vmem:[#allocation13 + $0x18c] sm:$0xf]
    %v3704 = vld [vmem:[#allocation13 + $0x190] sm:$0xf]
    %v3705 = vld [vmem:[#allocation13 + $0x194] sm:$0xf]
    %v3706 = vld [vmem:[#allocation13 + $0x198] sm:$0xf]
    %v3707 = vld [vmem:[#allocation13 + $0x19c] sm:$0xf]
    %v3708 = vld [vmem:[#allocation13 + $0x1a0] sm:$0xf]
    %v3709 = vld [vmem:[#allocation13 + $0x1a4] sm:$0xf]
    %v3710 = vld [vmem:[#allocation13 + $0x1a8] sm:$0xf]
    %v3711 = vld [vmem:[#allocation13 + $0x1ac] sm:$0xf]
    %v3712 = vld [vmem:[#allocation13 + $0x1b0] sm:$0xf]
    %v3713 = vld [vmem:[#allocation13 + $0x1b4] sm:$0xf]
    %v3714 = vld [vmem:[#allocation13 + $0x1b8] sm:$0xf]
    %v3715 = vld [vmem:[#allocation13 + $0x1bc] sm:$0xf]
    %v3716 = vld [vmem:[#allocation13 + $0x1c0] sm:$0xf]
    %v3717 = vld [vmem:[#allocation13 + $0x1c4] sm:$0xf]
    %v3718 = vld [vmem:[#allocation13 + $0x1c8] sm:$0xf]
    %v3719 = vld [vmem:[#allocation13 + $0x1cc] sm:$0xf]
    %v3720 = vld [vmem:[#allocation13 + $0x1d0] sm:$0xf]
    %v3721 = vld [vmem:[#allocation13 + $0x1d4] sm:$0xf]
    %v3722 = vld [vmem:[#allocation13 + $0x1d8] sm:$0xf]
    %v3723 = vld [vmem:[#allocation13 + $0x1dc] sm:$0xf]
    %v3724 = vld [vmem:[#allocation13 + $0x1e0] sm:$0xf]
    %v3725 = vld [vmem:[#allocation13 + $0x1e4] sm:$0xf]
    %v3726 = vld [vmem:[#allocation13 + $0x1e8] sm:$0xf]
    %v3727 = vld [vmem:[#allocation13 + $0x1ec] sm:$0xf]
    %v3728 = vld [vmem:[#allocation13 + $0x1f0] sm:$0xf]
    %v3729 = vld [vmem:[#allocation13 + $0x1f4] sm:$0xf]
    %v3730 = vld [vmem:[#allocation13 + $0x1f8] sm:$0xf]
    %v3731 = vld [vmem:[#allocation13 + $0x1fc] sm:$0xf]
    %v3732 = vld [vmem:[#allocation13 + $0x200] sm:$0xf]
    %v3733 = vld [vmem:[#allocation13 + $0x204] sm:$0xf]
    %v3734 = vld [vmem:[#allocation13 + $0x208] sm:$0xf]
    %v3735 = vld [vmem:[#allocation13 + $0x20c] sm:$0xf]
    %v3736 = vld [vmem:[#allocation13 + $0x210] sm:$0xf]
    %v3737 = vld [vmem:[#allocation13 + $0x214] sm:$0xf]
    %v3738 = vld [vmem:[#allocation13 + $0x218] sm:$0xf]
    %v3739 = vld [vmem:[#allocation13 + $0x21c] sm:$0xf]
    %v3740 = vld [vmem:[#allocation13 + $0x220] sm:$0xf]
    %v3741 = vld [vmem:[#allocation13 + $0x224] sm:$0xf]
    %v3742 = vld [vmem:[#allocation13 + $0x228] sm:$0xf]
    %v3743 = vld [vmem:[#allocation13 + $0x22c] sm:$0xf]
    %v3744 = vld [vmem:[#allocation13 + $0x230] sm:$0xf]
    %v3745 = vld [vmem:[#allocation13 + $0x234] sm:$0xf]
    %v3746 = vld [vmem:[#allocation13 + $0x238] sm:$0xf]
    %v3747 = vld [vmem:[#allocation13 + $0x23c] sm:$0xf]
    %v3748 = vld [vmem:[#allocation13 + $0x240] sm:$0xf]
    %v3749 = vld [vmem:[#allocation13 + $0x244] sm:$0xf]
    %v3750 = vld [vmem:[#allocation13 + $0x248] sm:$0xf]
    %v3751 = vld [vmem:[#allocation13 + $0x24c] sm:$0xf]
    %v3752 = vld [vmem:[#allocation13 + $0x250] sm:$0xf]
    %v3753 = vld [vmem:[#allocation13 + $0x254] sm:$0xf]
    %v3754 = vld [vmem:[#allocation13 + $0x258] sm:$0xf]
    %v3755 = vld [vmem:[#allocation13 + $0x25c] sm:$0xf]
    %v3756 = vld [vmem:[#allocation13 + $0x260] sm:$0xf]
    %v3757 = vld [vmem:[#allocation13 + $0x264] sm:$0xf]
    %v3758 = vld [vmem:[#allocation13 + $0x268] sm:$0xf]
    %v3759 = vld [vmem:[#allocation13 + $0x26c] sm:$0xf]
    %v3760 = vld [vmem:[#allocation13 + $0x270] sm:$0xf]
    %v3761 = vld [vmem:[#allocation13 + $0x274] sm:$0xf]
    %v3762 = vld [vmem:[#allocation13 + $0x278] sm:$0xf]
    %v3763 = vld [vmem:[#allocation13 + $0x27c] sm:$0xf]
    %v3764 = vld [vmem:[#allocation13 + $0x280] sm:$0xf]
    %v3765 = vld [vmem:[#allocation13 + $0x284] sm:$0xf]
    %v3766 = vld [vmem:[#allocation13 + $0x288] sm:$0xf]
    %v3767 = vld [vmem:[#allocation13 + $0x28c] sm:$0xf]
    %v3768 = vld [vmem:[#allocation13 + $0x290] sm:$0xf]
    %v3769 = vld [vmem:[#allocation13 + $0x294] sm:$0xf]
    %v3770 = vld [vmem:[#allocation13 + $0x298] sm:$0xf]
    %v3771 = vld [vmem:[#allocation13 + $0x29c] sm:$0xf]
    %v3772 = vld [vmem:[#allocation13 + $0x2a0] sm:$0xf]
    %v3773 = vld [vmem:[#allocation13 + $0x2a4] sm:$0xf]
    %v3774 = vld [vmem:[#allocation13 + $0x2a8] sm:$0xf]
    %v3775 = vld [vmem:[#allocation13 + $0x2ac] sm:$0xf]
    %v3776 = vld [vmem:[#allocation13 + $0x2b0] sm:$0xf]
    %v3777 = vld [vmem:[#allocation13 + $0x2b4] sm:$0xf]
    %v3778 = vld [vmem:[#allocation13 + $0x2b8] sm:$0xf]
    %v3779 = vld [vmem:[#allocation13 + $0x2bc] sm:$0xf]
    %v3780 = vld [vmem:[#allocation13 + $0x2c0] sm:$0xf]
    %v3781 = vld [vmem:[#allocation13 + $0x2c4] sm:$0xf]
    %v3782 = vld [vmem:[#allocation13 + $0x2c8] sm:$0xf]
    %v3783 = vld [vmem:[#allocation13 + $0x2cc] sm:$0xf]
    %v3784 = vld [vmem:[#allocation13 + $0x2d0] sm:$0xf]
    %v3785 = vld [vmem:[#allocation13 + $0x2d4] sm:$0xf]
    %v3786 = vld [vmem:[#allocation13 + $0x2d8] sm:$0xf]
    %v3787 = vld [vmem:[#allocation13 + $0x2dc] sm:$0xf]
    %v3788 = vld [vmem:[#allocation13 + $0x2e0] sm:$0xf]
    %v3789 = vld [vmem:[#allocation13 + $0x2e4] sm:$0xf]
    %v3790 = vld [vmem:[#allocation13 + $0x2e8] sm:$0xf]
    %v3791 = vld [vmem:[#allocation13 + $0x2ec] sm:$0xf]
    %v3792 = vld [vmem:[#allocation13 + $0x2f0] sm:$0xf]
    %v3793 = vld [vmem:[#allocation13 + $0x2f4] sm:$0xf]
    %v3794 = vld [vmem:[#allocation13 + $0x2f8] sm:$0xf]
    %v3795 = vld [vmem:[#allocation13 + $0x2fc] sm:$0xf]
    %v3796 = vld [vmem:[#allocation13 + $0x300] sm:$0xf]
    %v3797 = vld [vmem:[#allocation13 + $0x304] sm:$0xf]
    %v3798 = vld [vmem:[#allocation13 + $0x308] sm:$0xf]
    %v3799 = vld [vmem:[#allocation13 + $0x30c] sm:$0xf]
    %v3800 = vld [vmem:[#allocation13 + $0x310] sm:$0xf]
    %v3801 = vld [vmem:[#allocation13 + $0x314] sm:$0xf]
    %v3802 = vld [vmem:[#allocation13 + $0x318] sm:$0xf]
    %v3803 = vld [vmem:[#allocation13 + $0x31c] sm:$0xf]
    %v3804 = vld [vmem:[#allocation13 + $0x320] sm:$0xf]
    %v3805 = vld [vmem:[#allocation13 + $0x324] sm:$0xf]
    %v3806 = vld [vmem:[#allocation13 + $0x328] sm:$0xf]
    %v3807 = vld [vmem:[#allocation13 + $0x32c] sm:$0xf]
    %v3808 = vld [vmem:[#allocation13 + $0x330] sm:$0xf]
    %v3809 = vld [vmem:[#allocation13 + $0x334] sm:$0xf]
    %v3810 = vld [vmem:[#allocation13 + $0x338] sm:$0xf]
    %v3811 = vld [vmem:[#allocation13 + $0x33c] sm:$0xf]
    %v3812 = vld [vmem:[#allocation13 + $0x340] sm:$0xf]
    %v3813 = vld [vmem:[#allocation13 + $0x344] sm:$0xf]
    %v3814 = vld [vmem:[#allocation13 + $0x348] sm:$0xf]
    %v3815 = vld [vmem:[#allocation13 + $0x34c] sm:$0xf]
    %v3816 = vld [vmem:[#allocation13 + $0x350] sm:$0xf]
    %v3817 = vld [vmem:[#allocation13 + $0x354] sm:$0xf]
    %v3818 = vld [vmem:[#allocation13 + $0x358] sm:$0xf]
    %v3819 = vld [vmem:[#allocation13 + $0x35c] sm:$0xf]
    %v3820 = vld [vmem:[#allocation13 + $0x360] sm:$0xf]
    %v3821 = vld [vmem:[#allocation13 + $0x364] sm:$0xf]
    %v3822 = vld [vmem:[#allocation13 + $0x368] sm:$0xf]
    %v3823 = vld [vmem:[#allocation13 + $0x36c] sm:$0xf]
    %v3824 = vld [vmem:[#allocation13 + $0x370] sm:$0xf]
    %v3825 = vld [vmem:[#allocation13 + $0x374] sm:$0xf]
    %v3826 = vld [vmem:[#allocation13 + $0x378] sm:$0xf]
    %v3827 = vld [vmem:[#allocation13 + $0x37c] sm:$0xf]
    %v3828 = vld [vmem:[#allocation15] sm:$0xf]
    %v3829 = vld [vmem:[#allocation15 + $0x4] sm:$0xf]
    %v3830 = vld [vmem:[#allocation15 + $0x8] sm:$0xf]
    %v3831 = vld [vmem:[#allocation15 + $0xc] sm:$0xf]
    %v3832 = vld [vmem:[#allocation15 + $0x10] sm:$0xf]
    %v3833 = vld [vmem:[#allocation15 + $0x14] sm:$0xf]
    %v3834 = vld [vmem:[#allocation15 + $0x18] sm:$0xf]
    %v3835 = vld [vmem:[#allocation15 + $0x1c] sm:$0xf]
    %v3836 = vld [vmem:[#allocation15 + $0x20] sm:$0xf]
    %v3837 = vld [vmem:[#allocation15 + $0x24] sm:$0xf]
    %v3838 = vld [vmem:[#allocation15 + $0x28] sm:$0xf]
    %v3839 = vld [vmem:[#allocation15 + $0x2c] sm:$0xf]
    %v3840 = vld [vmem:[#allocation15 + $0x30] sm:$0xf]
    %v3841 = vld [vmem:[#allocation15 + $0x34] sm:$0xf]
    %v3842 = vld [vmem:[#allocation15 + $0x38] sm:$0xf]
    %v3843 = vld [vmem:[#allocation15 + $0x3c] sm:$0xf]
    %v3844 = vld [vmem:[#allocation15 + $0x40] sm:$0xf]
    %v3845 = vld [vmem:[#allocation15 + $0x44] sm:$0xf]
    %v3846 = vld [vmem:[#allocation15 + $0x48] sm:$0xf]
    %v3847 = vld [vmem:[#allocation15 + $0x4c] sm:$0xf]
    %v3848 = vld [vmem:[#allocation15 + $0x50] sm:$0xf]
    %v3849 = vld [vmem:[#allocation15 + $0x54] sm:$0xf]
    %v3850 = vld [vmem:[#allocation15 + $0x58] sm:$0xf]
    %v3851 = vld [vmem:[#allocation15 + $0x5c] sm:$0xf]
    %v3852 = vld [vmem:[#allocation15 + $0x60] sm:$0xf]
    %v3853 = vld [vmem:[#allocation15 + $0x64] sm:$0xf]
    %v3854 = vld [vmem:[#allocation15 + $0x68] sm:$0xf]
    %v3855 = vld [vmem:[#allocation15 + $0x6c] sm:$0xf]
    %v3856 = vld [vmem:[#allocation15 + $0x70] sm:$0xf]
    %v3857 = vld [vmem:[#allocation15 + $0x74] sm:$0xf]
    %v3858 = vld [vmem:[#allocation15 + $0x78] sm:$0xf]
    %v3859 = vld [vmem:[#allocation15 + $0x7c] sm:$0xf]
    %v3860 = vld [vmem:[#allocation15 + $0x80] sm:$0xf]
    %v3861 = vld [vmem:[#allocation15 + $0x84] sm:$0xf]
    %v3862 = vld [vmem:[#allocation15 + $0x88] sm:$0xf]
    %v3863 = vld [vmem:[#allocation15 + $0x8c] sm:$0xf]
    %v3864 = vld [vmem:[#allocation15 + $0x90] sm:$0xf]
    %v3865 = vld [vmem:[#allocation15 + $0x94] sm:$0xf]
    %v3866 = vld [vmem:[#allocation15 + $0x98] sm:$0xf]
    %v3867 = vld [vmem:[#allocation15 + $0x9c] sm:$0xf]
    %v3868 = vld [vmem:[#allocation15 + $0xa0] sm:$0xf]
    %v3869 = vld [vmem:[#allocation15 + $0xa4] sm:$0xf]
    %v3870 = vld [vmem:[#allocation15 + $0xa8] sm:$0xf]
    %v3871 = vld [vmem:[#allocation15 + $0xac] sm:$0xf]
    %v3872 = vld [vmem:[#allocation15 + $0xb0] sm:$0xf]
    %v3873 = vld [vmem:[#allocation15 + $0xb4] sm:$0xf]
    %v3874 = vld [vmem:[#allocation15 + $0xb8] sm:$0xf]
    %v3875 = vld [vmem:[#allocation15 + $0xbc] sm:$0xf]
    %v3876 = vld [vmem:[#allocation15 + $0xc0] sm:$0xf]
    %v3877 = vld [vmem:[#allocation15 + $0xc4] sm:$0xf]
    %v3878 = vld [vmem:[#allocation15 + $0xc8] sm:$0xf]
    %v3879 = vld [vmem:[#allocation15 + $0xcc] sm:$0xf]
    %v3880 = vld [vmem:[#allocation15 + $0xd0] sm:$0xf]
    %v3881 = vld [vmem:[#allocation15 + $0xd4] sm:$0xf]
    %v3882 = vld [vmem:[#allocation15 + $0xd8] sm:$0xf]
    %v3883 = vld [vmem:[#allocation15 + $0xdc] sm:$0xf]
    %v3884 = vld [vmem:[#allocation15 + $0xe0] sm:$0xf]
    %v3885 = vld [vmem:[#allocation15 + $0xe4] sm:$0xf]
    %v3886 = vld [vmem:[#allocation15 + $0xe8] sm:$0xf]
    %v3887 = vld [vmem:[#allocation15 + $0xec] sm:$0xf]
    %v3888 = vld [vmem:[#allocation15 + $0xf0] sm:$0xf]
    %v3889 = vld [vmem:[#allocation15 + $0xf4] sm:$0xf]
    %v3890 = vld [vmem:[#allocation15 + $0xf8] sm:$0xf]
    %v3891 = vld [vmem:[#allocation15 + $0xfc] sm:$0xf]
    %v3892 = vld [vmem:[#allocation15 + $0x100] sm:$0xf]
    %v3893 = vld [vmem:[#allocation15 + $0x104] sm:$0xf]
    %v3894 = vld [vmem:[#allocation15 + $0x108] sm:$0xf]
    %v3895 = vld [vmem:[#allocation15 + $0x10c] sm:$0xf]
    %v3896 = vld [vmem:[#allocation15 + $0x110] sm:$0xf]
    %v3897 = vld [vmem:[#allocation15 + $0x114] sm:$0xf]
    %v3898 = vld [vmem:[#allocation15 + $0x118] sm:$0xf]
    %v3899 = vld [vmem:[#allocation15 + $0x11c] sm:$0xf]
    %v3900 = vld [vmem:[#allocation15 + $0x120] sm:$0xf]
    %v3901 = vld [vmem:[#allocation15 + $0x124] sm:$0xf]
    %v3902 = vld [vmem:[#allocation15 + $0x128] sm:$0xf]
    %v3903 = vld [vmem:[#allocation15 + $0x12c] sm:$0xf]
    %v3904 = vld [vmem:[#allocation15 + $0x130] sm:$0xf]
    %v3905 = vld [vmem:[#allocation15 + $0x134] sm:$0xf]
    %v3906 = vld [vmem:[#allocation15 + $0x138] sm:$0xf]
    %v3907 = vld [vmem:[#allocation15 + $0x13c] sm:$0xf]
    %v3908 = vld [vmem:[#allocation15 + $0x140] sm:$0xf]
    %v3909 = vld [vmem:[#allocation15 + $0x144] sm:$0xf]
    %v3910 = vld [vmem:[#allocation15 + $0x148] sm:$0xf]
    %v3911 = vld [vmem:[#allocation15 + $0x14c] sm:$0xf]
    %v3912 = vld [vmem:[#allocation15 + $0x150] sm:$0xf]
    %v3913 = vld [vmem:[#allocation15 + $0x154] sm:$0xf]
    %v3914 = vld [vmem:[#allocation15 + $0x158] sm:$0xf]
    %v3915 = vld [vmem:[#allocation15 + $0x15c] sm:$0xf]
    %v3916 = vld [vmem:[#allocation15 + $0x160] sm:$0xf]
    %v3917 = vld [vmem:[#allocation15 + $0x164] sm:$0xf]
    %v3918 = vld [vmem:[#allocation15 + $0x168] sm:$0xf]
    %v3919 = vld [vmem:[#allocation15 + $0x16c] sm:$0xf]
    %v3920 = vld [vmem:[#allocation15 + $0x170] sm:$0xf]
    %v3921 = vld [vmem:[#allocation15 + $0x174] sm:$0xf]
    %v3922 = vld [vmem:[#allocation15 + $0x178] sm:$0xf]
    %v3923 = vld [vmem:[#allocation15 + $0x17c] sm:$0xf]
    %v3924 = vld [vmem:[#allocation15 + $0x180] sm:$0xf]
    %v3925 = vld [vmem:[#allocation15 + $0x184] sm:$0xf]
    %v3926 = vld [vmem:[#allocation15 + $0x188] sm:$0xf]
    %v3927 = vld [vmem:[#allocation15 + $0x18c] sm:$0xf]
    %v3928 = vld [vmem:[#allocation15 + $0x190] sm:$0xf]
    %v3929 = vld [vmem:[#allocation15 + $0x194] sm:$0xf]
    %v3930 = vld [vmem:[#allocation15 + $0x198] sm:$0xf]
    %v3931 = vld [vmem:[#allocation15 + $0x19c] sm:$0xf]
    %v3932 = vld [vmem:[#allocation15 + $0x1a0] sm:$0xf]
    %v3933 = vld [vmem:[#allocation15 + $0x1a4] sm:$0xf]
    %v3934 = vld [vmem:[#allocation15 + $0x1a8] sm:$0xf]
    %v3935 = vld [vmem:[#allocation15 + $0x1ac] sm:$0xf]
    %v3936 = vld [vmem:[#allocation15 + $0x1b0] sm:$0xf]
    %v3937 = vld [vmem:[#allocation15 + $0x1b4] sm:$0xf]
    %v3938 = vld [vmem:[#allocation15 + $0x1b8] sm:$0xf]
    %v3939 = vld [vmem:[#allocation15 + $0x1bc] sm:$0xf]
    %v3940 = vld [vmem:[#allocation15 + $0x1c0] sm:$0xf]
    %v3941 = vld [vmem:[#allocation15 + $0x1c4] sm:$0xf]
    %v3942 = vld [vmem:[#allocation15 + $0x1c8] sm:$0xf]
    %v3943 = vld [vmem:[#allocation15 + $0x1cc] sm:$0xf]
    %v3944 = vld [vmem:[#allocation15 + $0x1d0] sm:$0xf]
    %v3945 = vld [vmem:[#allocation15 + $0x1d4] sm:$0xf]
    %v3946 = vld [vmem:[#allocation15 + $0x1d8] sm:$0xf]
    %v3947 = vld [vmem:[#allocation15 + $0x1dc] sm:$0xf]
    %v3948 = vld [vmem:[#allocation15 + $0x1e0] sm:$0xf]
    %v3949 = vld [vmem:[#allocation15 + $0x1e4] sm:$0xf]
    %v3950 = vld [vmem:[#allocation15 + $0x1e8] sm:$0xf]
    %v3951 = vld [vmem:[#allocation15 + $0x1ec] sm:$0xf]
    %v3952 = vld [vmem:[#allocation15 + $0x1f0] sm:$0xf]
    %v3953 = vld [vmem:[#allocation15 + $0x1f4] sm:$0xf]
    %v3954 = vld [vmem:[#allocation15 + $0x1f8] sm:$0xf]
    %v3955 = vld [vmem:[#allocation15 + $0x1fc] sm:$0xf]
    %v3956 = vld [vmem:[#allocation15 + $0x200] sm:$0xf]
    %v3957 = vld [vmem:[#allocation15 + $0x204] sm:$0xf]
    %v3958 = vld [vmem:[#allocation15 + $0x208] sm:$0xf]
    %v3959 = vld [vmem:[#allocation15 + $0x20c] sm:$0xf]
    %v3960 = vld [vmem:[#allocation15 + $0x210] sm:$0xf]
    %v3961 = vld [vmem:[#allocation15 + $0x214] sm:$0xf]
    %v3962 = vld [vmem:[#allocation15 + $0x218] sm:$0xf]
    %v3963 = vld [vmem:[#allocation15 + $0x21c] sm:$0xf]
    %v3964 = vld [vmem:[#allocation15 + $0x220] sm:$0xf]
    %v3965 = vld [vmem:[#allocation15 + $0x224] sm:$0xf]
    %v3966 = vld [vmem:[#allocation15 + $0x228] sm:$0xf]
    %v3967 = vld [vmem:[#allocation15 + $0x22c] sm:$0xf]
    %v3968 = vld [vmem:[#allocation15 + $0x230] sm:$0xf]
    %v3969 = vld [vmem:[#allocation15 + $0x234] sm:$0xf]
    %v3970 = vld [vmem:[#allocation15 + $0x238] sm:$0xf]
    %v3971 = vld [vmem:[#allocation15 + $0x23c] sm:$0xf]
    %v3972 = vld [vmem:[#allocation15 + $0x240] sm:$0xf]
    %v3973 = vld [vmem:[#allocation15 + $0x244] sm:$0xf]
    %v3974 = vld [vmem:[#allocation15 + $0x248] sm:$0xf]
    %v3975 = vld [vmem:[#allocation15 + $0x24c] sm:$0xf]
    %v3976 = vld [vmem:[#allocation15 + $0x250] sm:$0xf]
    %v3977 = vld [vmem:[#allocation15 + $0x254] sm:$0xf]
    %v3978 = vld [vmem:[#allocation15 + $0x258] sm:$0xf]
    %v3979 = vld [vmem:[#allocation15 + $0x25c] sm:$0xf]
    %v3980 = vld [vmem:[#allocation15 + $0x260] sm:$0xf]
    %v3981 = vld [vmem:[#allocation15 + $0x264] sm:$0xf]
    %v3982 = vld [vmem:[#allocation15 + $0x268] sm:$0xf]
    %v3983 = vld [vmem:[#allocation15 + $0x26c] sm:$0xf]
    %v3984 = vld [vmem:[#allocation15 + $0x270] sm:$0xf]
    %v3985 = vld [vmem:[#allocation15 + $0x274] sm:$0xf]
    %v3986 = vld [vmem:[#allocation15 + $0x278] sm:$0xf]
    %v3987 = vld [vmem:[#allocation15 + $0x27c] sm:$0xf]
    %v3988 = vld [vmem:[#allocation15 + $0x280] sm:$0xf]
    %v3989 = vld [vmem:[#allocation15 + $0x284] sm:$0xf]
    %v3990 = vld [vmem:[#allocation15 + $0x288] sm:$0xf]
    %v3991 = vld [vmem:[#allocation15 + $0x28c] sm:$0xf]
    %v3992 = vld [vmem:[#allocation15 + $0x290] sm:$0xf]
    %v3993 = vld [vmem:[#allocation15 + $0x294] sm:$0xf]
    %v3994 = vld [vmem:[#allocation15 + $0x298] sm:$0xf]
    %v3995 = vld [vmem:[#allocation15 + $0x29c] sm:$0xf]
    %v3996 = vld [vmem:[#allocation15 + $0x2a0] sm:$0xf]
    %v3997 = vld [vmem:[#allocation15 + $0x2a4] sm:$0xf]
    %v3998 = vld [vmem:[#allocation15 + $0x2a8] sm:$0xf]
    %v3999 = vld [vmem:[#allocation15 + $0x2ac] sm:$0xf]
    %v4000 = vld [vmem:[#allocation15 + $0x2b0] sm:$0xf]
    %v4001 = vld [vmem:[#allocation15 + $0x2b4] sm:$0xf]
    %v4002 = vld [vmem:[#allocation15 + $0x2b8] sm:$0xf]
    %v4003 = vld [vmem:[#allocation15 + $0x2bc] sm:$0xf]
    %v4004 = vld [vmem:[#allocation15 + $0x2c0] sm:$0xf]
    %v4005 = vld [vmem:[#allocation15 + $0x2c4] sm:$0xf]
    %v4006 = vld [vmem:[#allocation15 + $0x2c8] sm:$0xf]
    %v4007 = vld [vmem:[#allocation15 + $0x2cc] sm:$0xf]
    %v4008 = vld [vmem:[#allocation15 + $0x2d0] sm:$0xf]
    %v4009 = vld [vmem:[#allocation15 + $0x2d4] sm:$0xf]
    %v4010 = vld [vmem:[#allocation15 + $0x2d8] sm:$0xf]
    %v4011 = vld [vmem:[#allocation15 + $0x2dc] sm:$0xf]
    %v4012 = vld [vmem:[#allocation15 + $0x2e0] sm:$0xf]
    %v4013 = vld [vmem:[#allocation15 + $0x2e4] sm:$0xf]
    %v4014 = vld [vmem:[#allocation15 + $0x2e8] sm:$0xf]
    %v4015 = vld [vmem:[#allocation15 + $0x2ec] sm:$0xf]
    %v4016 = vld [vmem:[#allocation15 + $0x2f0] sm:$0xf]
    %v4017 = vld [vmem:[#allocation15 + $0x2f4] sm:$0xf]
    %v4018 = vld [vmem:[#allocation15 + $0x2f8] sm:$0xf]
    %v4019 = vld [vmem:[#allocation15 + $0x2fc] sm:$0xf]
    %v4020 = vld [vmem:[#allocation15 + $0x300] sm:$0xf]
    %v4021 = vld [vmem:[#allocation15 + $0x304] sm:$0xf]
    %v4022 = vld [vmem:[#allocation15 + $0x308] sm:$0xf]
    %v4023 = vld [vmem:[#allocation15 + $0x30c] sm:$0xf]
    %v4024 = vld [vmem:[#allocation15 + $0x310] sm:$0xf]
    %v4025 = vld [vmem:[#allocation15 + $0x314] sm:$0xf]
    %v4026 = vld [vmem:[#allocation15 + $0x318] sm:$0xf]
    %v4027 = vld [vmem:[#allocation15 + $0x31c] sm:$0xf]
    %v4028 = vld [vmem:[#allocation15 + $0x320] sm:$0xf]
    %v4029 = vld [vmem:[#allocation15 + $0x324] sm:$0xf]
    %v4030 = vld [vmem:[#allocation15 + $0x328] sm:$0xf]
    %v4031 = vld [vmem:[#allocation15 + $0x32c] sm:$0xf]
    %v4032 = vld [vmem:[#allocation15 + $0x330] sm:$0xf]
    %v4033 = vld [vmem:[#allocation15 + $0x334] sm:$0xf]
    %v4034 = vld [vmem:[#allocation15 + $0x338] sm:$0xf]
    %v4035 = vld [vmem:[#allocation15 + $0x33c] sm:$0xf]
    %v4036 = vld [vmem:[#allocation15 + $0x340] sm:$0xf]
    %v4037 = vld [vmem:[#allocation15 + $0x344] sm:$0xf]
    %v4038 = vld [vmem:[#allocation15 + $0x348] sm:$0xf]
    %v4039 = vld [vmem:[#allocation15 + $0x34c] sm:$0xf]
    %v4040 = vld [vmem:[#allocation15 + $0x350] sm:$0xf]
    %v4041 = vld [vmem:[#allocation15 + $0x354] sm:$0xf]
    %v4042 = vld [vmem:[#allocation15 + $0x358] sm:$0xf]
    %v4043 = vld [vmem:[#allocation15 + $0x35c] sm:$0xf]
    %v4044 = vld [vmem:[#allocation15 + $0x360] sm:$0xf]
    %v4045 = vld [vmem:[#allocation15 + $0x364] sm:$0xf]
    %v4046 = vld [vmem:[#allocation15 + $0x368] sm:$0xf]
    %v4047 = vld [vmem:[#allocation15 + $0x36c] sm:$0xf]
    %v4048 = vld [vmem:[#allocation15 + $0x370] sm:$0xf]
    %v4049 = vld [vmem:[#allocation15 + $0x374] sm:$0xf]
    %v4050 = vld [vmem:[#allocation15 + $0x378] sm:$0xf]
    %v4051 = vld [vmem:[#allocation15 + $0x37c] sm:$0xf]
    %v4276 = vunpack.c.l.b16 %v3828
    %v4277 = vunpack.c.l.b16 %v3829
    %v4278 = vunpack.c.l.b16 %v3830
    %v4279 = vunpack.c.l.b16 %v3831
    %v4280 = vunpack.c.l.b16 %v3832
    %v4281 = vunpack.c.l.b16 %v3833
    %v4282 = vunpack.c.l.b16 %v3834
    %v4283 = vunpack.c.l.b16 %v3835
    %v4284 = vunpack.c.l.b16 %v3836
    %v4285 = vunpack.c.l.b16 %v3837
    %v4286 = vunpack.c.l.b16 %v3838
    %v4287 = vunpack.c.l.b16 %v3839
    %v4288 = vunpack.c.l.b16 %v3840
    %v4289 = vunpack.c.l.b16 %v3841
    %v4290 = vunpack.c.l.b16 %v3842
    %v4291 = vunpack.c.l.b16 %v3843
    %v4292 = vunpack.c.l.b16 %v3844
    %v4293 = vunpack.c.l.b16 %v3845
    %v4294 = vunpack.c.l.b16 %v3846
    %v4295 = vunpack.c.l.b16 %v3847
    %v4296 = vunpack.c.l.b16 %v3848
    %v4297 = vunpack.c.l.b16 %v3849
    %v4298 = vunpack.c.l.b16 %v3850
    %v4299 = vunpack.c.l.b16 %v3851
    %v4300 = vunpack.c.l.b16 %v3852
    %v4301 = vunpack.c.l.b16 %v3853
    %v4302 = vunpack.c.l.b16 %v3854
    %v4303 = vunpack.c.l.b16 %v3855
    %v4304 = vunpack.c.l.b16 %v3856
    %v4305 = vunpack.c.l.b16 %v3857
    %v4306 = vunpack.c.l.b16 %v3858
    %v4307 = vunpack.c.l.b16 %v3859
    %v4308 = vunpack.c.l.b16 %v3860
    %v4309 = vunpack.c.l.b16 %v3861
    %v4310 = vunpack.c.l.b16 %v3862
    %v4311 = vunpack.c.l.b16 %v3863
    %v4312 = vunpack.c.l.b16 %v3864
    %v4313 = vunpack.c.l.b16 %v3865
    %v4314 = vunpack.c.l.b16 %v3866
    %v4315 = vunpack.c.l.b16 %v3867
    %v4316 = vunpack.c.l.b16 %v3868
    %v4317 = vunpack.c.l.b16 %v3869
    %v4318 = vunpack.c.l.b16 %v3870
    %v4319 = vunpack.c.l.b16 %v3871
    %v4320 = vunpack.c.l.b16 %v3872
    %v4321 = vunpack.c.l.b16 %v3873
    %v4322 = vunpack.c.l.b16 %v3874
    %v4323 = vunpack.c.l.b16 %v3875
    %v4324 = vunpack.c.l.b16 %v3876
    %v4325 = vunpack.c.l.b16 %v3877
    %v4326 = vunpack.c.l.b16 %v3878
    %v4327 = vunpack.c.l.b16 %v3879
    %v4328 = vunpack.c.l.b16 %v3880
    %v4329 = vunpack.c.l.b16 %v3881
    %v4330 = vunpack.c.l.b16 %v3882
    %v4331 = vunpack.c.l.b16 %v3883
    %v4332 = vunpack.c.l.b16 %v3884
    %v4333 = vunpack.c.l.b16 %v3885
    %v4334 = vunpack.c.l.b16 %v3886
    %v4335 = vunpack.c.l.b16 %v3887
    %v4336 = vunpack.c.l.b16 %v3888
    %v4337 = vunpack.c.l.b16 %v3889
    %v4338 = vunpack.c.l.b16 %v3890
    %v4339 = vunpack.c.l.b16 %v3891
    %v4340 = vunpack.c.l.b16 %v3892
    %v4341 = vunpack.c.l.b16 %v3893
    %v4342 = vunpack.c.l.b16 %v3894
    %v4343 = vunpack.c.l.b16 %v3895
    %v4344 = vunpack.c.l.b16 %v3896
    %v4345 = vunpack.c.l.b16 %v3897
    %v4346 = vunpack.c.l.b16 %v3898
    %v4347 = vunpack.c.l.b16 %v3899
    %v4348 = vunpack.c.l.b16 %v3900
    %v4349 = vunpack.c.l.b16 %v3901
    %v4350 = vunpack.c.l.b16 %v3902
    %v4351 = vunpack.c.l.b16 %v3903
    %v4352 = vunpack.c.l.b16 %v3904
    %v4353 = vunpack.c.l.b16 %v3905
    %v4354 = vunpack.c.l.b16 %v3906
    %v4355 = vunpack.c.l.b16 %v3907
    %v4356 = vunpack.c.l.b16 %v3908
    %v4357 = vunpack.c.l.b16 %v3909
    %v4358 = vunpack.c.l.b16 %v3910
    %v4359 = vunpack.c.l.b16 %v3911
    %v4360 = vunpack.c.l.b16 %v3912
    %v4361 = vunpack.c.l.b16 %v3913
    %v4362 = vunpack.c.l.b16 %v3914
    %v4363 = vunpack.c.l.b16 %v3915
    %v4364 = vunpack.c.l.b16 %v3916
    %v4365 = vunpack.c.l.b16 %v3917
    %v4366 = vunpack.c.l.b16 %v3918
    %v4367 = vunpack.c.l.b16 %v3919
    %v4368 = vunpack.c.l.b16 %v3920
    %v4369 = vunpack.c.l.b16 %v3921
    %v4370 = vunpack.c.l.b16 %v3922
    %v4371 = vunpack.c.l.b16 %v3923
    %v4372 = vunpack.c.l.b16 %v3924
    %v4373 = vunpack.c.l.b16 %v3925
    %v4374 = vunpack.c.l.b16 %v3926
    %v4375 = vunpack.c.l.b16 %v3927
    %v4376 = vunpack.c.l.b16 %v3928
    %v4377 = vunpack.c.l.b16 %v3929
    %v4378 = vunpack.c.l.b16 %v3930
    %v4379 = vunpack.c.l.b16 %v3931
    %v4380 = vunpack.c.l.b16 %v3932
    %v4381 = vunpack.c.l.b16 %v3933
    %v4382 = vunpack.c.l.b16 %v3934
    %v4383 = vunpack.c.l.b16 %v3935
    %v4384 = vunpack.c.l.b16 %v3936
    %v4385 = vunpack.c.l.b16 %v3937
    %v4386 = vunpack.c.l.b16 %v3938
    %v4387 = vunpack.c.l.b16 %v3939
    %v4388 = vunpack.c.l.b16 %v3940
    %v4389 = vunpack.c.l.b16 %v3941
    %v4390 = vunpack.c.l.b16 %v3942
    %v4391 = vunpack.c.l.b16 %v3943
    %v4392 = vunpack.c.l.b16 %v3944
    %v4393 = vunpack.c.l.b16 %v3945
    %v4394 = vunpack.c.l.b16 %v3946
    %v4395 = vunpack.c.l.b16 %v3947
    %v4396 = vunpack.c.l.b16 %v3948
    %v4397 = vunpack.c.l.b16 %v3949
    %v4398 = vunpack.c.l.b16 %v3950
    %v4399 = vunpack.c.l.b16 %v3951
    %v4400 = vunpack.c.l.b16 %v3952
    %v4401 = vunpack.c.l.b16 %v3953
    %v4402 = vunpack.c.l.b16 %v3954
    %v4403 = vunpack.c.l.b16 %v3955
    %v4404 = vunpack.c.l.b16 %v3956
    %v4405 = vunpack.c.l.b16 %v3957
    %v4406 = vunpack.c.l.b16 %v3958
    %v4407 = vunpack.c.l.b16 %v3959
    %v4408 = vunpack.c.l.b16 %v3960
    %v4409 = vunpack.c.l.b16 %v3961
    %v4410 = vunpack.c.l.b16 %v3962
    %v4411 = vunpack.c.l.b16 %v3963
    %v4412 = vunpack.c.l.b16 %v3964
    %v4413 = vunpack.c.l.b16 %v3965
    %v4414 = vunpack.c.l.b16 %v3966
    %v4415 = vunpack.c.l.b16 %v3967
    %v4416 = vunpack.c.l.b16 %v3968
    %v4417 = vunpack.c.l.b16 %v3969
    %v4418 = vunpack.c.l.b16 %v3970
    %v4419 = vunpack.c.l.b16 %v3971
    %v4420 = vunpack.c.l.b16 %v3972
    %v4421 = vunpack.c.l.b16 %v3973
    %v4422 = vunpack.c.l.b16 %v3974
    %v4423 = vunpack.c.l.b16 %v3975
    %v4424 = vunpack.c.l.b16 %v3976
    %v4425 = vunpack.c.l.b16 %v3977
    %v4426 = vunpack.c.l.b16 %v3978
    %v4427 = vunpack.c.l.b16 %v3979
    %v4428 = vunpack.c.l.b16 %v3980
    %v4429 = vunpack.c.l.b16 %v3981
    %v4430 = vunpack.c.l.b16 %v3982
    %v4431 = vunpack.c.l.b16 %v3983
    %v4432 = vunpack.c.l.b16 %v3984
    %v4433 = vunpack.c.l.b16 %v3985
    %v4434 = vunpack.c.l.b16 %v3986
    %v4435 = vunpack.c.l.b16 %v3987
    %v4436 = vunpack.c.l.b16 %v3988
    %v4437 = vunpack.c.l.b16 %v3989
    %v4438 = vunpack.c.l.b16 %v3990
    %v4439 = vunpack.c.l.b16 %v3991
    %v4440 = vunpack.c.l.b16 %v3992
    %v4441 = vunpack.c.l.b16 %v3993
    %v4442 = vunpack.c.l.b16 %v3994
    %v4443 = vunpack.c.l.b16 %v3995
    %v4444 = vunpack.c.l.b16 %v3996
    %v4445 = vunpack.c.l.b16 %v3997
    %v4446 = vunpack.c.l.b16 %v3998
    %v4447 = vunpack.c.l.b16 %v3999
    %v4448 = vunpack.c.l.b16 %v4000
    %v4449 = vunpack.c.l.b16 %v4001
    %v4450 = vunpack.c.l.b16 %v4002
    %v4451 = vunpack.c.l.b16 %v4003
    %v4452 = vunpack.c.l.b16 %v4004
    %v4453 = vunpack.c.l.b16 %v4005
    %v4454 = vunpack.c.l.b16 %v4006
    %v4455 = vunpack.c.l.b16 %v4007
    %v4456 = vunpack.c.l.b16 %v4008
    %v4457 = vunpack.c.l.b16 %v4009
    %v4458 = vunpack.c.l.b16 %v4010
    %v4459 = vunpack.c.l.b16 %v4011
    %v4460 = vunpack.c.l.b16 %v4012
    %v4461 = vunpack.c.l.b16 %v4013
    %v4462 = vunpack.c.l.b16 %v4014
    %v4463 = vunpack.c.l.b16 %v4015
    %v4464 = vunpack.c.l.b16 %v4016
    %v4465 = vunpack.c.l.b16 %v4017
    %v4466 = vunpack.c.l.b16 %v4018
    %v4467 = vunpack.c.l.b16 %v4019
    %v4468 = vunpack.c.l.b16 %v4020
    %v4469 = vunpack.c.l.b16 %v4021
    %v4470 = vunpack.c.l.b16 %v4022
    %v4471 = vunpack.c.l.b16 %v4023
    %v4472 = vunpack.c.l.b16 %v4024
    %v4473 = vunpack.c.l.b16 %v4025
    %v4474 = vunpack.c.l.b16 %v4026
    %v4475 = vunpack.c.l.b16 %v4027
    %v4476 = vunpack.c.l.b16 %v4028
    %v4477 = vunpack.c.l.b16 %v4029
    %v4478 = vunpack.c.l.b16 %v4030
    %v4479 = vunpack.c.l.b16 %v4031
    %v4480 = vunpack.c.l.b16 %v4032
    %v4481 = vunpack.c.l.b16 %v4033
    %v4482 = vunpack.c.l.b16 %v4034
    %v4483 = vunpack.c.l.b16 %v4035
    %v4484 = vunpack.c.l.b16 %v4036
    %v4485 = vunpack.c.l.b16 %v4037
    %v4486 = vunpack.c.l.b16 %v4038
    %v4487 = vunpack.c.l.b16 %v4039
    %v4488 = vunpack.c.l.b16 %v4040
    %v4489 = vunpack.c.l.b16 %v4041
    %v4490 = vunpack.c.l.b16 %v4042
    %v4491 = vunpack.c.l.b16 %v4043
    %v4492 = vunpack.c.l.b16 %v4044
    %v4493 = vunpack.c.l.b16 %v4045
    %v4494 = vunpack.c.l.b16 %v4046
    %v4495 = vunpack.c.l.b16 %v4047
    %v4496 = vunpack.c.l.b16 %v4048
    %v4497 = vunpack.c.l.b16 %v4049
    %v4498 = vunpack.c.l.b16 %v4050
    %v4499 = vunpack.c.l.b16 %v4051
    %v4500 = vpack.c.b16 %v4277, %v4276
    %v4501 = vpack.c.b16 %v4279, %v4278
    %v4502 = vpack.c.b16 %v4281, %v4280
    %v4503 = vpack.c.b16 %v4283, %v4282
    %v4504 = vpack.c.b16 %v4285, %v4284
    %v4505 = vpack.c.b16 %v4287, %v4286
    %v4506 = vpack.c.b16 %v4289, %v4288
    %v4507 = vpack.c.b16 %v4291, %v4290
    %v4508 = vpack.c.b16 %v4293, %v4292
    %v4509 = vpack.c.b16 %v4295, %v4294
    %v4510 = vpack.c.b16 %v4297, %v4296
    %v4511 = vpack.c.b16 %v4299, %v4298
    %v4512 = vpack.c.b16 %v4301, %v4300
    %v4513 = vpack.c.b16 %v4303, %v4302
    %v4514 = vpack.c.b16 %v4305, %v4304
    %v4515 = vpack.c.b16 %v4307, %v4306
    %v4516 = vpack.c.b16 %v4309, %v4308
    %v4517 = vpack.c.b16 %v4311, %v4310
    %v4518 = vpack.c.b16 %v4313, %v4312
    %v4519 = vpack.c.b16 %v4315, %v4314
    %v4520 = vpack.c.b16 %v4317, %v4316
    %v4521 = vpack.c.b16 %v4319, %v4318
    %v4522 = vpack.c.b16 %v4321, %v4320
    %v4523 = vpack.c.b16 %v4323, %v4322
    %v4524 = vpack.c.b16 %v4325, %v4324
    %v4525 = vpack.c.b16 %v4327, %v4326
    %v4526 = vpack.c.b16 %v4329, %v4328
    %v4527 = vpack.c.b16 %v4331, %v4330
    %v4528 = vpack.c.b16 %v4333, %v4332
    %v4529 = vpack.c.b16 %v4335, %v4334
    %v4530 = vpack.c.b16 %v4337, %v4336
    %v4531 = vpack.c.b16 %v4339, %v4338
    %v4532 = vpack.c.b16 %v4341, %v4340
    %v4533 = vpack.c.b16 %v4343, %v4342
    %v4534 = vpack.c.b16 %v4345, %v4344
    %v4535 = vpack.c.b16 %v4347, %v4346
    %v4536 = vpack.c.b16 %v4349, %v4348
    %v4537 = vpack.c.b16 %v4351, %v4350
    %v4538 = vpack.c.b16 %v4353, %v4352
    %v4539 = vpack.c.b16 %v4355, %v4354
    %v4540 = vpack.c.b16 %v4357, %v4356
    %v4541 = vpack.c.b16 %v4359, %v4358
    %v4542 = vpack.c.b16 %v4361, %v4360
    %v4543 = vpack.c.b16 %v4363, %v4362
    %v4544 = vpack.c.b16 %v4365, %v4364
    %v4545 = vpack.c.b16 %v4367, %v4366
    %v4546 = vpack.c.b16 %v4369, %v4368
    %v4547 = vpack.c.b16 %v4371, %v4370
    %v4548 = vpack.c.b16 %v4373, %v4372
    %v4549 = vpack.c.b16 %v4375, %v4374
    %v4550 = vpack.c.b16 %v4377, %v4376
    %v4551 = vpack.c.b16 %v4379, %v4378
    %v4552 = vpack.c.b16 %v4381, %v4380
    %v4553 = vpack.c.b16 %v4383, %v4382
    %v4554 = vpack.c.b16 %v4385, %v4384
    %v4555 = vpack.c.b16 %v4387, %v4386
    %v4556 = vpack.c.b16 %v4389, %v4388
    %v4557 = vpack.c.b16 %v4391, %v4390
    %v4558 = vpack.c.b16 %v4393, %v4392
    %v4559 = vpack.c.b16 %v4395, %v4394
    %v4560 = vpack.c.b16 %v4397, %v4396
    %v4561 = vpack.c.b16 %v4399, %v4398
    %v4562 = vpack.c.b16 %v4401, %v4400
    %v4563 = vpack.c.b16 %v4403, %v4402
    %v4564 = vpack.c.b16 %v4405, %v4404
    %v4565 = vpack.c.b16 %v4407, %v4406
    %v4566 = vpack.c.b16 %v4409, %v4408
    %v4567 = vpack.c.b16 %v4411, %v4410
    %v4568 = vpack.c.b16 %v4413, %v4412
    %v4569 = vpack.c.b16 %v4415, %v4414
    %v4570 = vpack.c.b16 %v4417, %v4416
    %v4571 = vpack.c.b16 %v4419, %v4418
    %v4572 = vpack.c.b16 %v4421, %v4420
    %v4573 = vpack.c.b16 %v4423, %v4422
    %v4574 = vpack.c.b16 %v4425, %v4424
    %v4575 = vpack.c.b16 %v4427, %v4426
    %v4576 = vpack.c.b16 %v4429, %v4428
    %v4577 = vpack.c.b16 %v4431, %v4430
    %v4578 = vpack.c.b16 %v4433, %v4432
    %v4579 = vpack.c.b16 %v4435, %v4434
    %v4580 = vpack.c.b16 %v4437, %v4436
    %v4581 = vpack.c.b16 %v4439, %v4438
    %v4582 = vpack.c.b16 %v4441, %v4440
    %v4583 = vpack.c.b16 %v4443, %v4442
    %v4584 = vpack.c.b16 %v4445, %v4444
    %v4585 = vpack.c.b16 %v4447, %v4446
    %v4586 = vpack.c.b16 %v4449, %v4448
    %v4587 = vpack.c.b16 %v4451, %v4450
    %v4588 = vpack.c.b16 %v4453, %v4452
    %v4589 = vpack.c.b16 %v4455, %v4454
    %v4590 = vpack.c.b16 %v4457, %v4456
    %v4591 = vpack.c.b16 %v4459, %v4458
    %v4592 = vpack.c.b16 %v4461, %v4460
    %v4593 = vpack.c.b16 %v4463, %v4462
    %v4594 = vpack.c.b16 %v4465, %v4464
    %v4595 = vpack.c.b16 %v4467, %v4466
    %v4596 = vpack.c.b16 %v4469, %v4468
    %v4597 = vpack.c.b16 %v4471, %v4470
    %v4598 = vpack.c.b16 %v4473, %v4472
    %v4599 = vpack.c.b16 %v4475, %v4474
    %v4600 = vpack.c.b16 %v4477, %v4476
    %v4601 = vpack.c.b16 %v4479, %v4478
    %v4602 = vpack.c.b16 %v4481, %v4480
    %v4603 = vpack.c.b16 %v4483, %v4482
    %v4604 = vpack.c.b16 %v4485, %v4484
    %v4605 = vpack.c.b16 %v4487, %v4486
    %v4606 = vpack.c.b16 %v4489, %v4488
    %v4607 = vpack.c.b16 %v4491, %v4490
    %v4608 = vpack.c.b16 %v4493, %v4492
    %v4609 = vpack.c.b16 %v4495, %v4494
    %v4610 = vpack.c.b16 %v4497, %v4496
    %v4611 = vpack.c.b16 %v4499, %v4498
    %4724 = vmatpush.bf16.msra.mxu0 %v4507
    %4725 = vmatpush.bf16.msra.mxu0 %v4506
    %4726 = vmatpush.bf16.msra.mxu0 %v4505
    %4727 = vmatpush.bf16.msra.mxu0 %v4504
    %4728 = vmatpush.bf16.msra.mxu0 %v4503
    %4729 = vmatpush.bf16.msra.mxu0 %v4502
    %4730 = vmatpush.bf16.msra.mxu0 %v4501
    %4731 = vmatpush.bf16.msra.mxu0 %v4500
    %4732 = vmatmul.bf16.gmra.mxu0 %v3590
    %v4733 = vpop.f32.mrf.mxu0
    %v4734 = vadd.f32 0.0, %v4733
    %v4735 = vpop.f32.mrf.mxu0
    %4736 = vdwg.mxu0
    %4737 = vmatpush.bf16.msra.mxu0 %v4515
    %4738 = vmatpush.bf16.msra.mxu0 %v4514
    %4739 = vmatpush.bf16.msra.mxu0 %v4513
    %4740 = vmatpush.bf16.msra.mxu0 %v4512
    %4741 = vmatpush.bf16.msra.mxu0 %v4511
    %4742 = vmatpush.bf16.msra.mxu0 %v4510
    %4743 = vmatpush.bf16.msra.mxu0 %v4509
    %4744 = vmatpush.bf16.msra.mxu0 %v4508
    %4745 = vmatmul.bf16.gmra.mxu0 %v3591
    %v4746 = vpop.f32.mrf.mxu0
    %v4747 = vadd.f32 %v4734, %v4746
    %v4748 = vpop.f32.mrf.mxu0
    %4749 = vdwg.mxu0
    %4750 = vmatpush.bf16.msra.mxu0 %v4523
    %4751 = vmatpush.bf16.msra.mxu0 %v4522
    %4752 = vmatpush.bf16.msra.mxu0 %v4521
    %4753 = vmatpush.bf16.msra.mxu0 %v4520
    %4754 = vmatpush.bf16.msra.mxu0 %v4519
    %4755 = vmatpush.bf16.msra.mxu0 %v4518
    %4756 = vmatpush.bf16.msra.mxu0 %v4517
    %4757 = vmatpush.bf16.msra.mxu0 %v4516
    %4758 = vmatmul.bf16.gmra.mxu0 %v3592
    %v4759 = vpop.f32.mrf.mxu0
    %v4760 = vadd.f32 %v4747, %v4759
    %v4761 = vpop.f32.mrf.mxu0
    %4762 = vdwg.mxu0
    %4763 = vmatpush.bf16.msra.mxu0 %v4531
    %4764 = vmatpush.bf16.msra.mxu0 %v4530
    %4765 = vmatpush.bf16.msra.mxu0 %v4529
    %4766 = vmatpush.bf16.msra.mxu0 %v4528
    %4767 = vmatpush.bf16.msra.mxu0 %v4527
    %4768 = vmatpush.bf16.msra.mxu0 %v4526
    %4769 = vmatpush.bf16.msra.mxu0 %v4525
    %4770 = vmatpush.bf16.msra.mxu0 %v4524
    %4771 = vmatmul.bf16.gmra.mxu0 %v3593
    %v4772 = vpop.f32.mrf.mxu0
    %v4773 = vadd.f32 %v4760, %v4772
    %v4774 = vpop.f32.mrf.mxu0
    %4775 = vdwg.mxu0
    %4776 = vmatpush.bf16.msra.mxu0 %v4539
    %4777 = vmatpush.bf16.msra.mxu0 %v4538
    %4778 = vmatpush.bf16.msra.mxu0 %v4537
    %4779 = vmatpush.bf16.msra.mxu0 %v4536
    %4780 = vmatpush.bf16.msra.mxu0 %v4535
    %4781 = vmatpush.bf16.msra.mxu0 %v4534
    %4782 = vmatpush.bf16.msra.mxu0 %v4533
    %4783 = vmatpush.bf16.msra.mxu0 %v4532
    %4784 = vmatmul.bf16.gmra.mxu0 %v3594
    %v4785 = vpop.f32.mrf.mxu0
    %v4786 = vadd.f32 %v4773, %v4785
    %v4787 = vpop.f32.mrf.mxu0
    %4788 = vdwg.mxu0
    %4789 = vmatpush.bf16.msra.mxu0 %v4547
    %4790 = vmatpush.bf16.msra.mxu0 %v4546
    %4791 = vmatpush.bf16.msra.mxu0 %v4545
    %4792 = vmatpush.bf16.msra.mxu0 %v4544
    %4793 = vmatpush.bf16.msra.mxu0 %v4543
    %4794 = vmatpush.bf16.msra.mxu0 %v4542
    %4795 = vmatpush.bf16.msra.mxu0 %v4541
    %4796 = vmatpush.bf16.msra.mxu0 %v4540
    %4797 = vmatmul.bf16.gmra.mxu0 %v3595
    %v4798 = vpop.f32.mrf.mxu0
    %v4799 = vadd.f32 %v4786, %v4798
    %v4800 = vpop.f32.mrf.mxu0
    %4801 = vdwg.mxu0
    %4802 = vmatpush.bf16.msra.mxu0 %v4555
    %4803 = vmatpush.bf16.msra.mxu0 %v4554
    %4804 = vmatpush.bf16.msra.mxu0 %v4553
    %4805 = vmatpush.bf16.msra.mxu0 %v4552
    %4806 = vmatpush.bf16.msra.mxu0 %v4551
    %4807 = vmatpush.bf16.msra.mxu0 %v4550
    %4808 = vmatpush.bf16.msra.mxu0 %v4549
    %4809 = vmatpush.bf16.msra.mxu0 %v4548
    %4810 = vmatmul.bf16.gmra.mxu0 %v3596
    %v4811 = vpop.f32.mrf.mxu0
    %v4812 = vadd.f32 %v4799, %v4811
    %v4813 = vpop.f32.mrf.mxu0
    %4814 = vdwg.mxu0
    %4815 = vmatpush.bf16.msra.mxu0 %v4563
    %4816 = vmatpush.bf16.msra.mxu0 %v4562
    %4817 = vmatpush.bf16.msra.mxu0 %v4561
    %4818 = vmatpush.bf16.msra.mxu0 %v4560
    %4819 = vmatpush.bf16.msra.mxu0 %v4559
    %4820 = vmatpush.bf16.msra.mxu0 %v4558
    %4821 = vmatpush.bf16.msra.mxu0 %v4557
    %4822 = vmatpush.bf16.msra.mxu0 %v4556
    %4823 = vmatmul.bf16.gmra.mxu0 %v3597
    %v4824 = vpop.f32.mrf.mxu0
    %v4825 = vadd.f32 %v4812, %v4824
    %v4826 = vpop.f32.mrf.mxu0
    %4827 = vdwg.mxu0
    %4828 = vmatpush.bf16.msra.mxu0 %v4571
    %4829 = vmatpush.bf16.msra.mxu0 %v4570
    %4830 = vmatpush.bf16.msra.mxu0 %v4569
    %4831 = vmatpush.bf16.msra.mxu0 %v4568
    %4832 = vmatpush.bf16.msra.mxu0 %v4567
    %4833 = vmatpush.bf16.msra.mxu0 %v4566
    %4834 = vmatpush.bf16.msra.mxu0 %v4565
    %4835 = vmatpush.bf16.msra.mxu0 %v4564
    %4836 = vmatmul.bf16.gmra.mxu0 %v3598
    %v4837 = vpop.f32.mrf.mxu0
    %v4838 = vadd.f32 %v4825, %v4837
    %v4839 = vpop.f32.mrf.mxu0
    %4840 = vdwg.mxu0
    %4841 = vmatpush.bf16.msra.mxu0 %v4579
    %4842 = vmatpush.bf16.msra.mxu0 %v4578
    %4843 = vmatpush.bf16.msra.mxu0 %v4577
    %4844 = vmatpush.bf16.msra.mxu0 %v4576
    %4845 = vmatpush.bf16.msra.mxu0 %v4575
    %4846 = vmatpush.bf16.msra.mxu0 %v4574
    %4847 = vmatpush.bf16.msra.mxu0 %v4573
    %4848 = vmatpush.bf16.msra.mxu0 %v4572
    %4849 = vmatmul.bf16.gmra.mxu0 %v3599
    %v4850 = vpop.f32.mrf.mxu0
    %v4851 = vadd.f32 %v4838, %v4850
    %v4852 = vpop.f32.mrf.mxu0
    %4853 = vdwg.mxu0
    %4854 = vmatpush.bf16.msra.mxu0 %v4587
    %4855 = vmatpush.bf16.msra.mxu0 %v4586
    %4856 = vmatpush.bf16.msra.mxu0 %v4585
    %4857 = vmatpush.bf16.msra.mxu0 %v4584
    %4858 = vmatpush.bf16.msra.mxu0 %v4583
    %4859 = vmatpush.bf16.msra.mxu0 %v4582
    %4860 = vmatpush.bf16.msra.mxu0 %v4581
    %4861 = vmatpush.bf16.msra.mxu0 %v4580
    %4862 = vmatmul.bf16.gmra.mxu0 %v3600
    %v4863 = vpop.f32.mrf.mxu0
    %v4864 = vadd.f32 %v4851, %v4863
    %v4865 = vpop.f32.mrf.mxu0
    %4866 = vdwg.mxu0
    %4867 = vmatpush.bf16.msra.mxu0 %v4595
    %4868 = vmatpush.bf16.msra.mxu0 %v4594
    %4869 = vmatpush.bf16.msra.mxu0 %v4593
    %4870 = vmatpush.bf16.msra.mxu0 %v4592
    %4871 = vmatpush.bf16.msra.mxu0 %v4591
    %4872 = vmatpush.bf16.msra.mxu0 %v4590
    %4873 = vmatpush.bf16.msra.mxu0 %v4589
    %4874 = vmatpush.bf16.msra.mxu0 %v4588
    %4875 = vmatmul.bf16.gmra.mxu0 %v3601
    %v4876 = vpop.f32.mrf.mxu0
    %v4877 = vadd.f32 %v4864, %v4876
    %v4878 = vpop.f32.mrf.mxu0
    %4879 = vdwg.mxu0
    %4880 = vmatpush.bf16.msra.mxu0 %v4603
    %4881 = vmatpush.bf16.msra.mxu0 %v4602
    %4882 = vmatpush.bf16.msra.mxu0 %v4601
    %4883 = vmatpush.bf16.msra.mxu0 %v4600
    %4884 = vmatpush.bf16.msra.mxu0 %v4599
    %4885 = vmatpush.bf16.msra.mxu0 %v4598
    %4886 = vmatpush.bf16.msra.mxu0 %v4597
    %4887 = vmatpush.bf16.msra.mxu0 %v4596
    %4888 = vmatmul.bf16.gmra.mxu0 %v3602
    %v4889 = vpop.f32.mrf.mxu0
    %v4890 = vadd.f32 %v4877, %v4889
    %v4891 = vpop.f32.mrf.mxu0
    %4892 = vdwg.mxu0
    %4893 = vmatpush.bf16.msra.mxu0 %v4611
    %4894 = vmatpush.bf16.msra.mxu0 %v4610
    %4895 = vmatpush.bf16.msra.mxu0 %v4609
    %4896 = vmatpush.bf16.msra.mxu0 %v4608
    %4897 = vmatpush.bf16.msra.mxu0 %v4607
    %4898 = vmatpush.bf16.msra.mxu0 %v4606
    %4899 = vmatpush.bf16.msra.mxu0 %v4605
    %4900 = vmatpush.bf16.msra.mxu0 %v4604
    %4901 = vmatmul.bf16.gmra.mxu0 %v3603
    %v4902 = vpop.f32.mrf.mxu0
    %v4903 = vadd.f32 %v4890, %v4902
    %v4904 = vpop.f32.mrf.mxu0
    %4905 = vdwg.mxu0
    %v5130 = vunpack.c.l.b16 %v3604
    %v5131 = vunpack.c.l.b16 %v3605
    %v5132 = vunpack.c.l.b16 %v3606
    %v5133 = vunpack.c.l.b16 %v3607
    %v5134 = vunpack.c.l.b16 %v3608
    %v5135 = vunpack.c.l.b16 %v3609
    %v5136 = vunpack.c.l.b16 %v3610
    %v5137 = vunpack.c.l.b16 %v3611
    %v5138 = vunpack.c.l.b16 %v3612
    %v5139 = vunpack.c.l.b16 %v3613
    %v5140 = vunpack.c.l.b16 %v3614
    %v5141 = vunpack.c.l.b16 %v3615
    %v5142 = vunpack.c.l.b16 %v3616
    %v5143 = vunpack.c.l.b16 %v3617
    %v5144 = vunpack.c.l.b16 %v3618
    %v5145 = vunpack.c.l.b16 %v3619
    %v5146 = vunpack.c.l.b16 %v3620
    %v5147 = vunpack.c.l.b16 %v3621
    %v5148 = vunpack.c.l.b16 %v3622
    %v5149 = vunpack.c.l.b16 %v3623
    %v5150 = vunpack.c.l.b16 %v3624
    %v5151 = vunpack.c.l.b16 %v3625
    %v5152 = vunpack.c.l.b16 %v3626
    %v5153 = vunpack.c.l.b16 %v3627
    %v5154 = vunpack.c.l.b16 %v3628
    %v5155 = vunpack.c.l.b16 %v3629
    %v5156 = vunpack.c.l.b16 %v3630
    %v5157 = vunpack.c.l.b16 %v3631
    %v5158 = vunpack.c.l.b16 %v3632
    %v5159 = vunpack.c.l.b16 %v3633
    %v5160 = vunpack.c.l.b16 %v3634
    %v5161 = vunpack.c.l.b16 %v3635
    %v5162 = vunpack.c.l.b16 %v3636
    %v5163 = vunpack.c.l.b16 %v3637
    %v5164 = vunpack.c.l.b16 %v3638
    %v5165 = vunpack.c.l.b16 %v3639
    %v5166 = vunpack.c.l.b16 %v3640
    %v5167 = vunpack.c.l.b16 %v3641
    %v5168 = vunpack.c.l.b16 %v3642
    %v5169 = vunpack.c.l.b16 %v3643
    %v5170 = vunpack.c.l.b16 %v3644
    %v5171 = vunpack.c.l.b16 %v3645
    %v5172 = vunpack.c.l.b16 %v3646
    %v5173 = vunpack.c.l.b16 %v3647
    %v5174 = vunpack.c.l.b16 %v3648
    %v5175 = vunpack.c.l.b16 %v3649
    %v5176 = vunpack.c.l.b16 %v3650
    %v5177 = vunpack.c.l.b16 %v3651
    %v5178 = vunpack.c.l.b16 %v3652
    %v5179 = vunpack.c.l.b16 %v3653
    %v5180 = vunpack.c.l.b16 %v3654
    %v5181 = vunpack.c.l.b16 %v3655
    %v5182 = vunpack.c.l.b16 %v3656
    %v5183 = vunpack.c.l.b16 %v3657
    %v5184 = vunpack.c.l.b16 %v3658
    %v5185 = vunpack.c.l.b16 %v3659
    %v5186 = vunpack.c.l.b16 %v3660
    %v5187 = vunpack.c.l.b16 %v3661
    %v5188 = vunpack.c.l.b16 %v3662
    %v5189 = vunpack.c.l.b16 %v3663
    %v5190 = vunpack.c.l.b16 %v3664
    %v5191 = vunpack.c.l.b16 %v3665
    %v5192 = vunpack.c.l.b16 %v3666
    %v5193 = vunpack.c.l.b16 %v3667
    %v5194 = vunpack.c.l.b16 %v3668
    %v5195 = vunpack.c.l.b16 %v3669
    %v5196 = vunpack.c.l.b16 %v3670
    %v5197 = vunpack.c.l.b16 %v3671
    %v5198 = vunpack.c.l.b16 %v3672
    %v5199 = vunpack.c.l.b16 %v3673
    %v5200 = vunpack.c.l.b16 %v3674
    %v5201 = vunpack.c.l.b16 %v3675
    %v5202 = vunpack.c.l.b16 %v3676
    %v5203 = vunpack.c.l.b16 %v3677
    %v5204 = vunpack.c.l.b16 %v3678
    %v5205 = vunpack.c.l.b16 %v3679
    %v5206 = vunpack.c.l.b16 %v3680
    %v5207 = vunpack.c.l.b16 %v3681
    %v5208 = vunpack.c.l.b16 %v3682
    %v5209 = vunpack.c.l.b16 %v3683
    %v5210 = vunpack.c.l.b16 %v3684
    %v5211 = vunpack.c.l.b16 %v3685
    %v5212 = vunpack.c.l.b16 %v3686
    %v5213 = vunpack.c.l.b16 %v3687
    %v5214 = vunpack.c.l.b16 %v3688
    %v5215 = vunpack.c.l.b16 %v3689
    %v5216 = vunpack.c.l.b16 %v3690
    %v5217 = vunpack.c.l.b16 %v3691
    %v5218 = vunpack.c.l.b16 %v3692
    %v5219 = vunpack.c.l.b16 %v3693
    %v5220 = vunpack.c.l.b16 %v3694
    %v5221 = vunpack.c.l.b16 %v3695
    %v5222 = vunpack.c.l.b16 %v3696
    %v5223 = vunpack.c.l.b16 %v3697
    %v5224 = vunpack.c.l.b16 %v3698
    %v5225 = vunpack.c.l.b16 %v3699
    %v5226 = vunpack.c.l.b16 %v3700
    %v5227 = vunpack.c.l.b16 %v3701
    %v5228 = vunpack.c.l.b16 %v3702
    %v5229 = vunpack.c.l.b16 %v3703
    %v5230 = vunpack.c.l.b16 %v3704
    %v5231 = vunpack.c.l.b16 %v3705
    %v5232 = vunpack.c.l.b16 %v3706
    %v5233 = vunpack.c.l.b16 %v3707
    %v5234 = vunpack.c.l.b16 %v3708
    %v5235 = vunpack.c.l.b16 %v3709
    %v5236 = vunpack.c.l.b16 %v3710
    %v5237 = vunpack.c.l.b16 %v3711
    %v5238 = vunpack.c.l.b16 %v3712
    %v5239 = vunpack.c.l.b16 %v3713
    %v5240 = vunpack.c.l.b16 %v3714
    %v5241 = vunpack.c.l.b16 %v3715
    %v5242 = vunpack.c.l.b16 %v3716
    %v5243 = vunpack.c.l.b16 %v3717
    %v5244 = vunpack.c.l.b16 %v3718
    %v5245 = vunpack.c.l.b16 %v3719
    %v5246 = vunpack.c.l.b16 %v3720
    %v5247 = vunpack.c.l.b16 %v3721
    %v5248 = vunpack.c.l.b16 %v3722
    %v5249 = vunpack.c.l.b16 %v3723
    %v5250 = vunpack.c.l.b16 %v3724
    %v5251 = vunpack.c.l.b16 %v3725
    %v5252 = vunpack.c.l.b16 %v3726
    %v5253 = vunpack.c.l.b16 %v3727
    %v5254 = vunpack.c.l.b16 %v3728
    %v5255 = vunpack.c.l.b16 %v3729
    %v5256 = vunpack.c.l.b16 %v3730
    %v5257 = vunpack.c.l.b16 %v3731
    %v5258 = vunpack.c.l.b16 %v3732
    %v5259 = vunpack.c.l.b16 %v3733
    %v5260 = vunpack.c.l.b16 %v3734
    %v5261 = vunpack.c.l.b16 %v3735
    %v5262 = vunpack.c.l.b16 %v3736
    %v5263 = vunpack.c.l.b16 %v3737
    %v5264 = vunpack.c.l.b16 %v3738
    %v5265 = vunpack.c.l.b16 %v3739
    %v5266 = vunpack.c.l.b16 %v3740
    %v5267 = vunpack.c.l.b16 %v3741
    %v5268 = vunpack.c.l.b16 %v3742
    %v5269 = vunpack.c.l.b16 %v3743
    %v5270 = vunpack.c.l.b16 %v3744
    %v5271 = vunpack.c.l.b16 %v3745
    %v5272 = vunpack.c.l.b16 %v3746
    %v5273 = vunpack.c.l.b16 %v3747
    %v5274 = vunpack.c.l.b16 %v3748
    %v5275 = vunpack.c.l.b16 %v3749
    %v5276 = vunpack.c.l.b16 %v3750
    %v5277 = vunpack.c.l.b16 %v3751
    %v5278 = vunpack.c.l.b16 %v3752
    %v5279 = vunpack.c.l.b16 %v3753
    %v5280 = vunpack.c.l.b16 %v3754
    %v5281 = vunpack.c.l.b16 %v3755
    %v5282 = vunpack.c.l.b16 %v3756
    %v5283 = vunpack.c.l.b16 %v3757
    %v5284 = vunpack.c.l.b16 %v3758
    %v5285 = vunpack.c.l.b16 %v3759
    %v5286 = vunpack.c.l.b16 %v3760
    %v5287 = vunpack.c.l.b16 %v3761
    %v5288 = vunpack.c.l.b16 %v3762
    %v5289 = vunpack.c.l.b16 %v3763
    %v5290 = vunpack.c.l.b16 %v3764
    %v5291 = vunpack.c.l.b16 %v3765
    %v5292 = vunpack.c.l.b16 %v3766
    %v5293 = vunpack.c.l.b16 %v3767
    %v5294 = vunpack.c.l.b16 %v3768
    %v5295 = vunpack.c.l.b16 %v3769
    %v5296 = vunpack.c.l.b16 %v3770
    %v5297 = vunpack.c.l.b16 %v3771
    %v5298 = vunpack.c.l.b16 %v3772
    %v5299 = vunpack.c.l.b16 %v3773
    %v5300 = vunpack.c.l.b16 %v3774
    %v5301 = vunpack.c.l.b16 %v3775
    %v5302 = vunpack.c.l.b16 %v3776
    %v5303 = vunpack.c.l.b16 %v3777
    %v5304 = vunpack.c.l.b16 %v3778
    %v5305 = vunpack.c.l.b16 %v3779
    %v5306 = vunpack.c.l.b16 %v3780
    %v5307 = vunpack.c.l.b16 %v3781
    %v5308 = vunpack.c.l.b16 %v3782
    %v5309 = vunpack.c.l.b16 %v3783
    %v5310 = vunpack.c.l.b16 %v3784
    %v5311 = vunpack.c.l.b16 %v3785
    %v5312 = vunpack.c.l.b16 %v3786
    %v5313 = vunpack.c.l.b16 %v3787
    %v5314 = vunpack.c.l.b16 %v3788
    %v5315 = vunpack.c.l.b16 %v3789
    %v5316 = vunpack.c.l.b16 %v3790
    %v5317 = vunpack.c.l.b16 %v3791
    %v5318 = vunpack.c.l.b16 %v3792
    %v5319 = vunpack.c.l.b16 %v3793
    %v5320 = vunpack.c.l.b16 %v3794
    %v5321 = vunpack.c.l.b16 %v3795
    %v5322 = vunpack.c.l.b16 %v3796
    %v5323 = vunpack.c.l.b16 %v3797
    %v5324 = vunpack.c.l.b16 %v3798
    %v5325 = vunpack.c.l.b16 %v3799
    %v5326 = vunpack.c.l.b16 %v3800
    %v5327 = vunpack.c.l.b16 %v3801
    %v5328 = vunpack.c.l.b16 %v3802
    %v5329 = vunpack.c.l.b16 %v3803
    %v5330 = vunpack.c.l.b16 %v3804
    %v5331 = vunpack.c.l.b16 %v3805
    %v5332 = vunpack.c.l.b16 %v3806
    %v5333 = vunpack.c.l.b16 %v3807
    %v5334 = vunpack.c.l.b16 %v3808
    %v5335 = vunpack.c.l.b16 %v3809
    %v5336 = vunpack.c.l.b16 %v3810
    %v5337 = vunpack.c.l.b16 %v3811
    %v5338 = vunpack.c.l.b16 %v3812
    %v5339 = vunpack.c.l.b16 %v3813
    %v5340 = vunpack.c.l.b16 %v3814
    %v5341 = vunpack.c.l.b16 %v3815
    %v5342 = vunpack.c.l.b16 %v3816
    %v5343 = vunpack.c.l.b16 %v3817
    %v5344 = vunpack.c.l.b16 %v3818
    %v5345 = vunpack.c.l.b16 %v3819
    %v5346 = vunpack.c.l.b16 %v3820
    %v5347 = vunpack.c.l.b16 %v3821
    %v5348 = vunpack.c.l.b16 %v3822
    %v5349 = vunpack.c.l.b16 %v3823
    %v5350 = vunpack.c.l.b16 %v3824
    %v5351 = vunpack.c.l.b16 %v3825
    %v5352 = vunpack.c.l.b16 %v3826
    %v5353 = vunpack.c.l.b16 %v3827
    %v5354 = vpack.c.b16 %v5131, %v5130
    %v5355 = vpack.c.b16 %v5133, %v5132
    %v5356 = vpack.c.b16 %v5135, %v5134
    %v5357 = vpack.c.b16 %v5137, %v5136
    %v5358 = vpack.c.b16 %v5139, %v5138
    %v5359 = vpack.c.b16 %v5141, %v5140
    %v5360 = vpack.c.b16 %v5143, %v5142
    %v5361 = vpack.c.b16 %v5145, %v5144
    %v5362 = vpack.c.b16 %v5147, %v5146
    %v5363 = vpack.c.b16 %v5149, %v5148
    %v5364 = vpack.c.b16 %v5151, %v5150
    %v5365 = vpack.c.b16 %v5153, %v5152
    %v5366 = vpack.c.b16 %v5155, %v5154
    %v5367 = vpack.c.b16 %v5157, %v5156
    %v5368 = vpack.c.b16 %v5159, %v5158
    %v5369 = vpack.c.b16 %v5161, %v5160
    %v5370 = vpack.c.b16 %v5163, %v5162
    %v5371 = vpack.c.b16 %v5165, %v5164
    %v5372 = vpack.c.b16 %v5167, %v5166
    %v5373 = vpack.c.b16 %v5169, %v5168
    %v5374 = vpack.c.b16 %v5171, %v5170
    %v5375 = vpack.c.b16 %v5173, %v5172
    %v5376 = vpack.c.b16 %v5175, %v5174
    %v5377 = vpack.c.b16 %v5177, %v5176
    %v5378 = vpack.c.b16 %v5179, %v5178
    %v5379 = vpack.c.b16 %v5181, %v5180
    %v5380 = vpack.c.b16 %v5183, %v5182
    %v5381 = vpack.c.b16 %v5185, %v5184
    %v5382 = vpack.c.b16 %v5187, %v5186
    %v5383 = vpack.c.b16 %v5189, %v5188
    %v5384 = vpack.c.b16 %v5191, %v5190
    %v5385 = vpack.c.b16 %v5193, %v5192
    %v5386 = vpack.c.b16 %v5195, %v5194
    %v5387 = vpack.c.b16 %v5197, %v5196
    %v5388 = vpack.c.b16 %v5199, %v5198
    %v5389 = vpack.c.b16 %v5201, %v5200
    %v5390 = vpack.c.b16 %v5203, %v5202
    %v5391 = vpack.c.b16 %v5205, %v5204
    %v5392 = vpack.c.b16 %v5207, %v5206
    %v5393 = vpack.c.b16 %v5209, %v5208
    %v5394 = vpack.c.b16 %v5211, %v5210
    %v5395 = vpack.c.b16 %v5213, %v5212
    %v5396 = vpack.c.b16 %v5215, %v5214
    %v5397 = vpack.c.b16 %v5217, %v5216
    %v5398 = vpack.c.b16 %v5219, %v5218
    %v5399 = vpack.c.b16 %v5221, %v5220
    %v5400 = vpack.c.b16 %v5223, %v5222
    %v5401 = vpack.c.b16 %v5225, %v5224
    %v5402 = vpack.c.b16 %v5227, %v5226
    %v5403 = vpack.c.b16 %v5229, %v5228
    %v5404 = vpack.c.b16 %v5231, %v5230
    %v5405 = vpack.c.b16 %v5233, %v5232
    %v5406 = vpack.c.b16 %v5235, %v5234
    %v5407 = vpack.c.b16 %v5237, %v5236
    %v5408 = vpack.c.b16 %v5239, %v5238
    %v5409 = vpack.c.b16 %v5241, %v5240
    %v5410 = vpack.c.b16 %v5243, %v5242
    %v5411 = vpack.c.b16 %v5245, %v5244
    %v5412 = vpack.c.b16 %v5247, %v5246
    %v5413 = vpack.c.b16 %v5249, %v5248
    %v5414 = vpack.c.b16 %v5251, %v5250
    %v5415 = vpack.c.b16 %v5253, %v5252
    %v5416 = vpack.c.b16 %v5255, %v5254
    %v5417 = vpack.c.b16 %v5257, %v5256
    %v5418 = vpack.c.b16 %v5259, %v5258
    %v5419 = vpack.c.b16 %v5261, %v5260
    %v5420 = vpack.c.b16 %v5263, %v5262
    %v5421 = vpack.c.b16 %v5265, %v5264
    %v5422 = vpack.c.b16 %v5267, %v5266
    %v5423 = vpack.c.b16 %v5269, %v5268
    %v5424 = vpack.c.b16 %v5271, %v5270
    %v5425 = vpack.c.b16 %v5273, %v5272
    %v5426 = vpack.c.b16 %v5275, %v5274
    %v5427 = vpack.c.b16 %v5277, %v5276
    %v5428 = vpack.c.b16 %v5279, %v5278
    %v5429 = vpack.c.b16 %v5281, %v5280
    %v5430 = vpack.c.b16 %v5283, %v5282
    %v5431 = vpack.c.b16 %v5285, %v5284
    %v5432 = vpack.c.b16 %v5287, %v5286
    %v5433 = vpack.c.b16 %v5289, %v5288
    %v5434 = vpack.c.b16 %v5291, %v5290
    %v5435 = vpack.c.b16 %v5293, %v5292
    %v5436 = vpack.c.b16 %v5295, %v5294
    %v5437 = vpack.c.b16 %v5297, %v5296
    %v5438 = vpack.c.b16 %v5299, %v5298
    %v5439 = vpack.c.b16 %v5301, %v5300
    %v5440 = vpack.c.b16 %v5303, %v5302
    %v5441 = vpack.c.b16 %v5305, %v5304
    %v5442 = vpack.c.b16 %v5307, %v5306
    %v5443 = vpack.c.b16 %v5309, %v5308
    %v5444 = vpack.c.b16 %v5311, %v5310
    %v5445 = vpack.c.b16 %v5313, %v5312
    %v5446 = vpack.c.b16 %v5315, %v5314
    %v5447 = vpack.c.b16 %v5317, %v5316
    %v5448 = vpack.c.b16 %v5319, %v5318
    %v5449 = vpack.c.b16 %v5321, %v5320
    %v5450 = vpack.c.b16 %v5323, %v5322
    %v5451 = vpack.c.b16 %v5325, %v5324
    %v5452 = vpack.c.b16 %v5327, %v5326
    %v5453 = vpack.c.b16 %v5329, %v5328
    %v5454 = vpack.c.b16 %v5331, %v5330
    %v5455 = vpack.c.b16 %v5333, %v5332
    %v5456 = vpack.c.b16 %v5335, %v5334
    %v5457 = vpack.c.b16 %v5337, %v5336
    %v5458 = vpack.c.b16 %v5339, %v5338
    %v5459 = vpack.c.b16 %v5341, %v5340
    %v5460 = vpack.c.b16 %v5343, %v5342
    %v5461 = vpack.c.b16 %v5345, %v5344
    %v5462 = vpack.c.b16 %v5347, %v5346
    %v5463 = vpack.c.b16 %v5349, %v5348
    %v5464 = vpack.c.b16 %v5351, %v5350
    %v5465 = vpack.c.b16 %v5353, %v5352
    %5578 = vmatpush.bf16.msra.mxu0 %v5361
    %5579 = vmatpush.bf16.msra.mxu0 %v5360
    %5580 = vmatpush.bf16.msra.mxu0 %v5359
    %5581 = vmatpush.bf16.msra.mxu0 %v5358
    %5582 = vmatpush.bf16.msra.mxu0 %v5357
    %5583 = vmatpush.bf16.msra.mxu0 %v5356
    %5584 = vmatpush.bf16.msra.mxu0 %v5355
    %5585 = vmatpush.bf16.msra.mxu0 %v5354
    %5586 = vmatmul.bf16.gmra.mxu0 %v1918
    %v5587 = vpop.f32.mrf.mxu0
    %v5588 = vadd.f32 %v4903, %v5587
    %v5589 = vpop.f32.mrf.mxu0
    %5590 = vdwg.mxu0
    %5591 = vmatpush.bf16.msra.mxu0 %v5369
    %5592 = vmatpush.bf16.msra.mxu0 %v5368
    %5593 = vmatpush.bf16.msra.mxu0 %v5367
    %5594 = vmatpush.bf16.msra.mxu0 %v5366
    %5595 = vmatpush.bf16.msra.mxu0 %v5365
    %5596 = vmatpush.bf16.msra.mxu0 %v5364
    %5597 = vmatpush.bf16.msra.mxu0 %v5363
    %5598 = vmatpush.bf16.msra.mxu0 %v5362
    %5599 = vmatmul.bf16.gmra.mxu0 %v1919
    %v5600 = vpop.f32.mrf.mxu0
    %v5601 = vadd.f32 %v5588, %v5600
    %v5602 = vpop.f32.mrf.mxu0
    %5603 = vdwg.mxu0
    %5604 = vmatpush.bf16.msra.mxu0 %v5377
    %5605 = vmatpush.bf16.msra.mxu0 %v5376
    %5606 = vmatpush.bf16.msra.mxu0 %v5375
    %5607 = vmatpush.bf16.msra.mxu0 %v5374
    %5608 = vmatpush.bf16.msra.mxu0 %v5373
    %5609 = vmatpush.bf16.msra.mxu0 %v5372
    %5610 = vmatpush.bf16.msra.mxu0 %v5371
    %5611 = vmatpush.bf16.msra.mxu0 %v5370
    %5612 = vmatmul.bf16.gmra.mxu0 %v1920
    %v5613 = vpop.f32.mrf.mxu0
    %v5614 = vadd.f32 %v5601, %v5613
    %v5615 = vpop.f32.mrf.mxu0
    %5616 = vdwg.mxu0
    %5617 = vmatpush.bf16.msra.mxu0 %v5385
    %5618 = vmatpush.bf16.msra.mxu0 %v5384
    %5619 = vmatpush.bf16.msra.mxu0 %v5383
    %5620 = vmatpush.bf16.msra.mxu0 %v5382
    %5621 = vmatpush.bf16.msra.mxu0 %v5381
    %5622 = vmatpush.bf16.msra.mxu0 %v5380
    %5623 = vmatpush.bf16.msra.mxu0 %v5379
    %5624 = vmatpush.bf16.msra.mxu0 %v5378
    %5625 = vmatmul.bf16.gmra.mxu0 %v1921
    %v5626 = vpop.f32.mrf.mxu0
    %v5627 = vadd.f32 %v5614, %v5626
    %v5628 = vpop.f32.mrf.mxu0
    %5629 = vdwg.mxu0
    %5630 = vmatpush.bf16.msra.mxu0 %v5393
    %5631 = vmatpush.bf16.msra.mxu0 %v5392
    %5632 = vmatpush.bf16.msra.mxu0 %v5391
    %5633 = vmatpush.bf16.msra.mxu0 %v5390
    %5634 = vmatpush.bf16.msra.mxu0 %v5389
    %5635 = vmatpush.bf16.msra.mxu0 %v5388
    %5636 = vmatpush.bf16.msra.mxu0 %v5387
    %5637 = vmatpush.bf16.msra.mxu0 %v5386
    %5638 = vmatmul.bf16.gmra.mxu0 %v1922
    %v5639 = vpop.f32.mrf.mxu0
    %v5640 = vadd.f32 %v5627, %v5639
    %v5641 = vpop.f32.mrf.mxu0
    %5642 = vdwg.mxu0
    %5643 = vmatpush.bf16.msra.mxu0 %v5401
    %5644 = vmatpush.bf16.msra.mxu0 %v5400
    %5645 = vmatpush.bf16.msra.mxu0 %v5399
    %5646 = vmatpush.bf16.msra.mxu0 %v5398
    %5647 = vmatpush.bf16.msra.mxu0 %v5397
    %5648 = vmatpush.bf16.msra.mxu0 %v5396
    %5649 = vmatpush.bf16.msra.mxu0 %v5395
    %5650 = vmatpush.bf16.msra.mxu0 %v5394
    %5651 = vmatmul.bf16.gmra.mxu0 %v1923
    %v5652 = vpop.f32.mrf.mxu0
    %v5653 = vadd.f32 %v5640, %v5652
    %v5654 = vpop.f32.mrf.mxu0
    %5655 = vdwg.mxu0
    %5656 = vmatpush.bf16.msra.mxu0 %v5409
    %5657 = vmatpush.bf16.msra.mxu0 %v5408
    %5658 = vmatpush.bf16.msra.mxu0 %v5407
    %5659 = vmatpush.bf16.msra.mxu0 %v5406
    %5660 = vmatpush.bf16.msra.mxu0 %v5405
    %5661 = vmatpush.bf16.msra.mxu0 %v5404
    %5662 = vmatpush.bf16.msra.mxu0 %v5403
    %5663 = vmatpush.bf16.msra.mxu0 %v5402
    %5664 = vmatmul.bf16.gmra.mxu0 %v1924
    %v5665 = vpop.f32.mrf.mxu0
    %v5666 = vadd.f32 %v5653, %v5665
    %v5667 = vpop.f32.mrf.mxu0
    %5668 = vdwg.mxu0
    %5669 = vmatpush.bf16.msra.mxu0 %v5417
    %5670 = vmatpush.bf16.msra.mxu0 %v5416
    %5671 = vmatpush.bf16.msra.mxu0 %v5415
    %5672 = vmatpush.bf16.msra.mxu0 %v5414
    %5673 = vmatpush.bf16.msra.mxu0 %v5413
    %5674 = vmatpush.bf16.msra.mxu0 %v5412
    %5675 = vmatpush.bf16.msra.mxu0 %v5411
    %5676 = vmatpush.bf16.msra.mxu0 %v5410
    %5677 = vmatmul.bf16.gmra.mxu0 %v1925
    %v5678 = vpop.f32.mrf.mxu0
    %v5679 = vadd.f32 %v5666, %v5678
    %v5680 = vpop.f32.mrf.mxu0
    %5681 = vdwg.mxu0
    %5682 = vmatpush.bf16.msra.mxu0 %v5425
    %5683 = vmatpush.bf16.msra.mxu0 %v5424
    %5684 = vmatpush.bf16.msra.mxu0 %v5423
    %5685 = vmatpush.bf16.msra.mxu0 %v5422
    %5686 = vmatpush.bf16.msra.mxu0 %v5421
    %5687 = vmatpush.bf16.msra.mxu0 %v5420
    %5688 = vmatpush.bf16.msra.mxu0 %v5419
    %5689 = vmatpush.bf16.msra.mxu0 %v5418
    %5690 = vmatmul.bf16.gmra.mxu0 %v1926
    %v5691 = vpop.f32.mrf.mxu0
    %v5692 = vadd.f32 %v5679, %v5691
    %v5693 = vpop.f32.mrf.mxu0
    %5694 = vdwg.mxu0
    %5695 = vmatpush.bf16.msra.mxu0 %v5433
    %5696 = vmatpush.bf16.msra.mxu0 %v5432
    %5697 = vmatpush.bf16.msra.mxu0 %v5431
    %5698 = vmatpush.bf16.msra.mxu0 %v5430
    %5699 = vmatpush.bf16.msra.mxu0 %v5429
    %5700 = vmatpush.bf16.msra.mxu0 %v5428
    %5701 = vmatpush.bf16.msra.mxu0 %v5427
    %5702 = vmatpush.bf16.msra.mxu0 %v5426
    %5703 = vmatmul.bf16.gmra.mxu0 %v1927
    %v5704 = vpop.f32.mrf.mxu0
    %v5705 = vadd.f32 %v5692, %v5704
    %v5706 = vpop.f32.mrf.mxu0
    %5707 = vdwg.mxu0
    %5708 = vmatpush.bf16.msra.mxu0 %v5441
    %5709 = vmatpush.bf16.msra.mxu0 %v5440
    %5710 = vmatpush.bf16.msra.mxu0 %v5439
    %5711 = vmatpush.bf16.msra.mxu0 %v5438
    %5712 = vmatpush.bf16.msra.mxu0 %v5437
    %5713 = vmatpush.bf16.msra.mxu0 %v5436
    %5714 = vmatpush.bf16.msra.mxu0 %v5435
    %5715 = vmatpush.bf16.msra.mxu0 %v5434
    %5716 = vmatmul.bf16.gmra.mxu0 %v1928
    %v5717 = vpop.f32.mrf.mxu0
    %v5718 = vadd.f32 %v5705, %v5717
    %v5719 = vpop.f32.mrf.mxu0
    %5720 = vdwg.mxu0
    %5721 = vmatpush.bf16.msra.mxu0 %v5449
    %5722 = vmatpush.bf16.msra.mxu0 %v5448
    %5723 = vmatpush.bf16.msra.mxu0 %v5447
    %5724 = vmatpush.bf16.msra.mxu0 %v5446
    %5725 = vmatpush.bf16.msra.mxu0 %v5445
    %5726 = vmatpush.bf16.msra.mxu0 %v5444
    %5727 = vmatpush.bf16.msra.mxu0 %v5443
    %5728 = vmatpush.bf16.msra.mxu0 %v5442
    %5729 = vmatmul.bf16.gmra.mxu0 %v1929
    %v5730 = vpop.f32.mrf.mxu0
    %v5731 = vadd.f32 %v5718, %v5730
    %v5732 = vpop.f32.mrf.mxu0
    %5733 = vdwg.mxu0
    %5734 = vmatpush.bf16.msra.mxu0 %v5457
    %5735 = vmatpush.bf16.msra.mxu0 %v5456
    %5736 = vmatpush.bf16.msra.mxu0 %v5455
    %5737 = vmatpush.bf16.msra.mxu0 %v5454
    %5738 = vmatpush.bf16.msra.mxu0 %v5453
    %5739 = vmatpush.bf16.msra.mxu0 %v5452
    %5740 = vmatpush.bf16.msra.mxu0 %v5451
    %5741 = vmatpush.bf16.msra.mxu0 %v5450
    %5742 = vmatmul.bf16.gmra.mxu0 %v1930
    %v5743 = vpop.f32.mrf.mxu0
    %v5744 = vadd.f32 %v5731, %v5743
    %v5745 = vpop.f32.mrf.mxu0
    %5746 = vdwg.mxu0
    %5747 = vmatpush.bf16.msra.mxu0 %v5465
    %5748 = vmatpush.bf16.msra.mxu0 %v5464
    %5749 = vmatpush.bf16.msra.mxu0 %v5463
    %5750 = vmatpush.bf16.msra.mxu0 %v5462
    %5751 = vmatpush.bf16.msra.mxu0 %v5461
    %5752 = vmatpush.bf16.msra.mxu0 %v5460
    %5753 = vmatpush.bf16.msra.mxu0 %v5459
    %5754 = vmatpush.bf16.msra.mxu0 %v5458
    %5755 = vmatmul.bf16.gmra.mxu0 %v1931
    %v5756 = vpop.f32.mrf.mxu0
    %v5757 = vadd.f32 %v5744, %v5756
    %v5758 = vpop.f32.mrf.mxu0
    %5759 = vdwg.mxu0
    %v5760 = vld [vmem:[%s2] sm:$0xf]
    %v5761 = vld [vmem:[%s13] sm:$0xf]
    %v5762 = vld [vmem:[%s13 + $0x4] sm:$0xf]
    %v5763 = vld [vmem:[%s13 + $0x8] sm:$0xf]
    %v5764 = vld [vmem:[%s13 + $0xc] sm:$0xf]
    %v5765 = vld [vmem:[%s13 + $0x10] sm:$0xf]
    %v5766 = vld [vmem:[%s13 + $0x14] sm:$0xf]
    %v5767 = vld [vmem:[%s13 + $0x18] sm:$0xf]
    %v5768 = vld [vmem:[%s13 + $0x1c] sm:$0xf]
    %v5769 = vld [vmem:[%s13 + $0x20] sm:$0xf]
    %v5770 = vld [vmem:[%s13 + $0x24] sm:$0xf]
    %v5771 = vld [vmem:[%s13 + $0x28] sm:$0xf]
    %v5772 = vld [vmem:[%s13 + $0x2c] sm:$0xf]
    %v5773 = vld [vmem:[%s13 + $0x30] sm:$0xf]
    %v5774 = vld [vmem:[%s13 + $0x34] sm:$0xf]
    %v5775 = vld [vmem:[%s13 + $0x38] sm:$0xf]
    %v5776 = vld [vmem:[%s13 + $0x3c] sm:$0xf]
    %v5793 = vunpack.c.l.b16 %v5761
    %v5794 = vunpack.c.l.b16 %v5762
    %v5795 = vunpack.c.l.b16 %v5763
    %v5796 = vunpack.c.l.b16 %v5764
    %v5797 = vunpack.c.l.b16 %v5765
    %v5798 = vunpack.c.l.b16 %v5766
    %v5799 = vunpack.c.l.b16 %v5767
    %v5800 = vunpack.c.l.b16 %v5768
    %v5801 = vunpack.c.l.b16 %v5769
    %v5802 = vunpack.c.l.b16 %v5770
    %v5803 = vunpack.c.l.b16 %v5771
    %v5804 = vunpack.c.l.b16 %v5772
    %v5805 = vunpack.c.l.b16 %v5773
    %v5806 = vunpack.c.l.b16 %v5774
    %v5807 = vunpack.c.l.b16 %v5775
    %v5808 = vunpack.c.l.b16 %v5776
    %v5809 = vpack.c.b16 %v5794, %v5793
    %v5810 = vpack.c.b16 %v5796, %v5795
    %v5811 = vpack.c.b16 %v5798, %v5797
    %v5812 = vpack.c.b16 %v5800, %v5799
    %v5813 = vpack.c.b16 %v5802, %v5801
    %v5814 = vpack.c.b16 %v5804, %v5803
    %v5815 = vpack.c.b16 %v5806, %v5805
    %v5816 = vpack.c.b16 %v5808, %v5807
    %5825 = vmatpush.bf16.msra.mxu0 %v5816
    %5826 = vmatpush.bf16.msra.mxu0 %v5815
    %5827 = vmatpush.bf16.msra.mxu0 %v5814
    %5828 = vmatpush.bf16.msra.mxu0 %v5813
    %5829 = vmatpush.bf16.msra.mxu0 %v5812
    %5830 = vmatpush.bf16.msra.mxu0 %v5811
    %5831 = vmatpush.bf16.msra.mxu0 %v5810
    %5832 = vmatpush.bf16.msra.mxu0 %v5809
    %5833 = vmatmul.bf16.gmra.mxu0 %v5760
    %v5834 = vpop.f32.mrf.mxu0
    %v5835 = vadd.f32 0.0, %v5834
    %v5836 = vpop.f32.mrf.mxu0
    %5837 = vdwg.mxu0
    %v5838 = vadd.f32 %v5757, %v5835
    %v5839 = vld [vmem:[%s14] sm:$0x1]
    %v5841 = vperm.slane %v5839, 0
    %v5843 = vadd.f32 %v5838, %v5841
    %v5844 = vmax.f32 %v5843, 0.0
    %v5845 = vpack.c.bf16 %v5844, %v5844
    %v5846 = vld [vmem:[%s15] sm:$0xf]
    %v5847 = vld [vmem:[%s15 + $0x4] sm:$0xf]
    %v5848 = vld [vmem:[%s15 + $0x8] sm:$0xf]
    %v5849 = vld [vmem:[%s15 + $0xc] sm:$0xf]
    %v5850 = vld [vmem:[%s15 + $0x10] sm:$0xf]
    %v5851 = vld [vmem:[%s15 + $0x14] sm:$0xf]
    %v5852 = vld [vmem:[%s15 + $0x18] sm:$0xf]
    %v5853 = vld [vmem:[%s15 + $0x1c] sm:$0xf]
    %v5854 = vld [vmem:[%s15 + $0x20] sm:$0xf]
    %v5855 = vld [vmem:[%s15 + $0x24] sm:$0xf]
    %v5856 = vld [vmem:[%s15 + $0x28] sm:$0xf]
    %v5857 = vld [vmem:[%s15 + $0x2c] sm:$0xf]
    %v5858 = vld [vmem:[%s15 + $0x30] sm:$0xf]
    %v5859 = vld [vmem:[%s15 + $0x34] sm:$0xf]
    %v5860 = vld [vmem:[%s15 + $0x38] sm:$0xf]
    %v5861 = vld [vmem:[%s15 + $0x3c] sm:$0xf]
    %v5862 = vld [vmem:[%s16] sm:$0x1]
    %v5864 = vperm.slane %v5862, 0
    %v5882 = vunpack.c.l.b16 %v5846
    %v5883 = vunpack.c.l.b16 %v5847
    %v5884 = vunpack.c.l.b16 %v5848
    %v5885 = vunpack.c.l.b16 %v5849
    %v5886 = vunpack.c.l.b16 %v5850
    %v5887 = vunpack.c.l.b16 %v5851
    %v5888 = vunpack.c.l.b16 %v5852
    %v5889 = vunpack.c.l.b16 %v5853
    %v5890 = vunpack.c.l.b16 %v5854
    %v5891 = vunpack.c.l.b16 %v5855
    %v5892 = vunpack.c.l.b16 %v5856
    %v5893 = vunpack.c.l.b16 %v5857
    %v5894 = vunpack.c.l.b16 %v5858
    %v5895 = vunpack.c.l.b16 %v5859
    %v5896 = vunpack.c.l.b16 %v5860
    %v5897 = vunpack.c.l.b16 %v5861
    %v5898 = vpack.c.b16 %v5883, %v5882
    %v5899 = vpack.c.b16 %v5885, %v5884
    %v5900 = vpack.c.b16 %v5887, %v5886
    %v5901 = vpack.c.b16 %v5889, %v5888
    %v5902 = vpack.c.b16 %v5891, %v5890
    %v5903 = vpack.c.b16 %v5893, %v5892
    %v5904 = vpack.c.b16 %v5895, %v5894
    %v5905 = vpack.c.b16 %v5897, %v5896
    %5914 = vmatpush.bf16.msra.mxu0 %v5905
    %5915 = vmatpush.bf16.msra.mxu0 %v5904
    %5916 = vmatpush.bf16.msra.mxu0 %v5903
    %5917 = vmatpush.bf16.msra.mxu0 %v5902
    %5918 = vmatpush.bf16.msra.mxu0 %v5901
    %5919 = vmatpush.bf16.msra.mxu0 %v5900
    %5920 = vmatpush.bf16.msra.mxu0 %v5899
    %5921 = vmatpush.bf16.msra.mxu0 %v5898
    %5922 = vmatmul.bf16.gmra.mxu0 %v5845
    %v5923 = vpop.f32.mrf.mxu0
    %v5924 = vadd.f32 %v5864, %v5923
    %v5925 = vpop.f32.mrf.mxu0
    %5926 = vdwg.mxu0
    %v5927 = vmax.f32 %v5924, 0.0
    %v5928 = vpack.c.bf16 %v5927, %v5927
    %v5929 = vld [vmem:[#allocation16] sm:$0xf]
    %v5930 = vld [vmem:[#allocation16 + $0x4] sm:$0xf]
    %v5931 = vld [vmem:[#allocation16 + $0x8] sm:$0xf]
    %v5932 = vld [vmem:[#allocation16 + $0xc] sm:$0xf]
    %v5933 = vld [vmem:[#allocation16 + $0x10] sm:$0xf]
    %v5934 = vld [vmem:[#allocation16 + $0x14] sm:$0xf]
    %v5935 = vld [vmem:[#allocation16 + $0x18] sm:$0xf]
    %v5936 = vld [vmem:[#allocation16 + $0x1c] sm:$0xf]
    %v5937 = vld [vmem:[#allocation16 + $0x20] sm:$0xf]
    %v5938 = vld [vmem:[#allocation16 + $0x24] sm:$0xf]
    %v5939 = vld [vmem:[#allocation16 + $0x28] sm:$0xf]
    %v5940 = vld [vmem:[#allocation16 + $0x2c] sm:$0xf]
    %v5941 = vld [vmem:[#allocation16 + $0x30] sm:$0xf]
    %v5942 = vld [vmem:[#allocation16 + $0x34] sm:$0xf]
    %v5943 = vld [vmem:[#allocation16 + $0x38] sm:$0xf]
    %v5944 = vld [vmem:[#allocation16 + $0x3c] sm:$0xf]
    %v5945 = vld [vmem:[#allocation18] sm:$0x1]
    %v5947 = vperm.slane %v5945, 0
    %v5965 = vunpack.c.l.b16 %v5929
    %v5966 = vunpack.c.l.b16 %v5930
    %v5967 = vunpack.c.l.b16 %v5931
    %v5968 = vunpack.c.l.b16 %v5932
    %v5969 = vunpack.c.l.b16 %v5933
    %v5970 = vunpack.c.l.b16 %v5934
    %v5971 = vunpack.c.l.b16 %v5935
    %v5972 = vunpack.c.l.b16 %v5936
    %v5973 = vunpack.c.l.b16 %v5937
    %v5974 = vunpack.c.l.b16 %v5938
    %v5975 = vunpack.c.l.b16 %v5939
    %v5976 = vunpack.c.l.b16 %v5940
    %v5977 = vunpack.c.l.b16 %v5941
    %v5978 = vunpack.c.l.b16 %v5942
    %v5979 = vunpack.c.l.b16 %v5943
    %v5980 = vunpack.c.l.b16 %v5944
    %v5981 = vpack.c.b16 %v5966, %v5965
    %v5982 = vpack.c.b16 %v5968, %v5967
    %v5983 = vpack.c.b16 %v5970, %v5969
    %v5984 = vpack.c.b16 %v5972, %v5971
    %v5985 = vpack.c.b16 %v5974, %v5973
    %v5986 = vpack.c.b16 %v5976, %v5975
    %v5987 = vpack.c.b16 %v5978, %v5977
    %v5988 = vpack.c.b16 %v5980, %v5979
    %5997 = vmatpush.bf16.msra.mxu0 %v5988
    %5998 = vmatpush.bf16.msra.mxu0 %v5987
    %5999 = vmatpush.bf16.msra.mxu0 %v5986
    %6000 = vmatpush.bf16.msra.mxu0 %v5985
    %6001 = vmatpush.bf16.msra.mxu0 %v5984
    %6002 = vmatpush.bf16.msra.mxu0 %v5983
    %6003 = vmatpush.bf16.msra.mxu0 %v5982
    %6004 = vmatpush.bf16.msra.mxu0 %v5981
    %6005 = vmatmul.bf16.gmra.mxu0 %v5928
    %v6006 = vpop.f32.mrf.mxu0
    %v6007 = vadd.f32 %v5947, %v6006
    %v6008 = vpop.f32.mrf.mxu0
    %6009 = vdwg.mxu0
    %v6010 = vmax.f32 %v6007, 0.0
    %v6011 = vpack.c.bf16 %v6010, %v6010
    %v6012 = vld [vmem:[#allocation19] sm:$0xf]
    %v6013 = vld [vmem:[#allocation19 + $0x4] sm:$0xf]
    %v6014 = vld [vmem:[#allocation19 + $0x8] sm:$0xf]
    %v6015 = vld [vmem:[#allocation19 + $0xc] sm:$0xf]
    %v6016 = vld [vmem:[#allocation19 + $0x10] sm:$0xf]
    %v6017 = vld [vmem:[#allocation19 + $0x14] sm:$0xf]
    %v6018 = vld [vmem:[#allocation19 + $0x18] sm:$0xf]
    %v6019 = vld [vmem:[#allocation19 + $0x1c] sm:$0xf]
    %v6020 = vld [vmem:[#allocation19 + $0x20] sm:$0xf]
    %v6021 = vld [vmem:[#allocation19 + $0x24] sm:$0xf]
    %v6022 = vld [vmem:[#allocation19 + $0x28] sm:$0xf]
    %v6023 = vld [vmem:[#allocation19 + $0x2c] sm:$0xf]
    %v6024 = vld [vmem:[#allocation19 + $0x30] sm:$0xf]
    %v6025 = vld [vmem:[#allocation19 + $0x34] sm:$0xf]
    %v6026 = vld [vmem:[#allocation19 + $0x38] sm:$0xf]
    %v6027 = vld [vmem:[#allocation19 + $0x3c] sm:$0xf]
    %v6028 = vld [vmem:[#allocation21] sm:$0x1]
    %v6030 = vperm.slane %v6028, 0
    %v6048 = vunpack.c.l.b16 %v6012
    %v6049 = vunpack.c.l.b16 %v6013
    %v6050 = vunpack.c.l.b16 %v6014
    %v6051 = vunpack.c.l.b16 %v6015
    %v6052 = vunpack.c.l.b16 %v6016
    %v6053 = vunpack.c.l.b16 %v6017
    %v6054 = vunpack.c.l.b16 %v6018
    %v6055 = vunpack.c.l.b16 %v6019
    %v6056 = vunpack.c.l.b16 %v6020
    %v6057 = vunpack.c.l.b16 %v6021
    %v6058 = vunpack.c.l.b16 %v6022
    %v6059 = vunpack.c.l.b16 %v6023
    %v6060 = vunpack.c.l.b16 %v6024
    %v6061 = vunpack.c.l.b16 %v6025
    %v6062 = vunpack.c.l.b16 %v6026
    %v6063 = vunpack.c.l.b16 %v6027
    %v6064 = vpack.c.b16 %v6049, %v6048
    %v6065 = vpack.c.b16 %v6051, %v6050
    %v6066 = vpack.c.b16 %v6053, %v6052
    %v6067 = vpack.c.b16 %v6055, %v6054
    %v6068 = vpack.c.b16 %v6057, %v6056
    %v6069 = vpack.c.b16 %v6059, %v6058
    %v6070 = vpack.c.b16 %v6061, %v6060
    %v6071 = vpack.c.b16 %v6063, %v6062
    %6080 = vmatpush.bf16.msra.mxu0 %v6071
    %6081 = vmatpush.bf16.msra.mxu0 %v6070
    %6082 = vmatpush.bf16.msra.mxu0 %v6069
    %6083 = vmatpush.bf16.msra.mxu0 %v6068
    %6084 = vmatpush.bf16.msra.mxu0 %v6067
    %6085 = vmatpush.bf16.msra.mxu0 %v6066
    %6086 = vmatpush.bf16.msra.mxu0 %v6065
    %6087 = vmatpush.bf16.msra.mxu0 %v6064
    %6088 = vmatmul.bf16.gmra.mxu0 %v6011
    %v6089 = vpop.f32.mrf.mxu0
    %v6090 = vadd.f32 %v6030, %v6089
    %v6091 = vpop.f32.mrf.mxu0
    %6092 = vdwg.mxu0
    %6093 = vst [vmem:[%s21] sm:$0xff] %v6090
    // Predicated region
    $region138: #{dqn_forward.1} parent=1 // pred_check
      _
    $region139: #{dqn_forward.1} parent=1 // pred_check_branch
      %6095 = sbr.rel (0) target = $region141
    $region140: #{dqn_forward.1} parent=1 // pred_region
      _
    $region141: #{dqn_forward.1} parent=1 // pred_fallthru
      _
    // Predicated region
    $region142: #{dqn_forward.1} parent=1 // pred_check
      _
    $region143: #{dqn_forward.1} parent=1 // pred_check_branch
      %6097 = sbr.rel (0) target = $region145
    $region144: #{dqn_forward.1} parent=1 // pred_region
      _
    $region145: #{dqn_forward.1} parent=1 // pred_fallthru
      _
    %6098 = vsyncpa [#allocation3], 1
    %6099 = vsyncpa [#allocation5], 1
    %6100 = vsyncpa [#allocation8], 1
    %6101 = vsyncpa [#allocation11], 1
    %6102 = vsyncpa [#allocation14], 1
    %6103 = vsyncpa [#allocation17], 1
    %6104 = vsyncpa [#allocation20], 1

</llo_original>
